<compile_context>
chip_gen: v6e
topology: v6e:2x2x1
jax: 0.10.0
libtpu: 0.0.40
codegen_flags: <defaults>
</compile_context>

<pallas_src>
import jax
import jax.numpy as jnp
from jax.experimental import pallas as pl
from jax.experimental.pallas import tpu as pltpu

# ----------------------------- configuration --------------------------------
B = 8              # graphs per batch (grid axis)
N = 64             # nodes per graph
D_IN = 16          # input feature dim
HIDDEN = 48        # hidden_dim (divisible by HEADS and by 2)
HEADS = 6          # GAT heads
F_HEAD = HIDDEN // HEADS     # 8
H_HALF = HIDDEN // 2         # 24
OUT_DIM = 6        # output classes
OUT_PAD = 128      # lane-dense padded output width (sliced to OUT_DIM on host)
EPS = 1e-5         # LayerNorm eps (PyTorch default)
LANES = 128

# --- vector-parameter slab rows (biases / LN gamma & beta, one row each) ----
VP_IN_G, VP_IN_B = 0, 1
VP_GB = 2
VP_GN_G, VP_GN_B = 3, 4
VP_B0, VP_B1, VP_B2, VP_BA = 5, 6, 7, 8
VP_LN0_G, VP_LN0_B = 9, 10
VP_LN1_G, VP_LN1_B = 11, 12
VP_LN2_G, VP_LN2_B = 13, 14
VP_LN3_G, VP_LN3_B = 15, 16
VP_BF = 17
VP_FN_G, VP_FN_B = 18, 19
VP_BM1 = 20
VP_MN_G, VP_MN_B = 21, 22
VP_BM2 = 23
VP_ROWS = 24

# --- weight slab row offsets (every block starts on an 8-sublane boundary) --
R_WG, R_W0, R_W1, R_W2 = 0, 16, 32, 80
R_WA, R_WFL, R_WFG = 128, 176, 224
R_WM1, R_WM2 = 248, 296
R_WST, R_WD = 320, 328
W_ROWS = 376


# ------------------------------ kernel helpers -------------------------------
def _layernorm(x, g, b):
    mu = jnp.mean(x, axis=-1, keepdims=True)
    var = jnp.mean((x - mu) ** 2, axis=-1, keepdims=True)
    return (x - mu) * jax.lax.rsqrt(var + EPS) * g + b


def _silu(x):
    return x * jax.nn.sigmoid(x)


# --------------------------------- kernel ------------------------------------
def improved_gnn_kernel(x_ref, a_ref, vp_ref, w_ref, out_ref):
    x = x_ref[0]               # [N, D_IN]  f32 node features
    a = a_ref[0]               # [N, N]     bf16 normalized adjacency (w/ self loops)
    mask = a > 0               # neighbor mask for the GAT softmax
    vp = vp_ref[...]           # [VP_ROWS, 128] f32, read once, sliced below

    def vrow(r, d):            # (1, d) bias / gamma / beta row
        return vp[r:r + 1, :d]

    def wblk(r0, rows, cols):  # bf16 weight block from the packed slab
        return w_ref[r0:r0 + rows, :cols]

    def bdot(lhs, rhs):        # bf16 MXU inputs, f32 accumulation
        return jnp.dot(lhs.astype(jnp.bfloat16), rhs,
                       preferred_element_type=jnp.float32)

    # ---- x = self.input_norm(x) ----
    h = _layernorm(x, vrow(VP_IN_G, D_IN), vrow(VP_IN_B, D_IN))

    # ---- global branch: GCNConv -> LN -> SiLU -> (dropout = id) ----
    g = bdot(a, bdot(h, wblk(R_WG, D_IN, H_HALF))) + vrow(VP_GB, H_HALF)
    g = _silu(_layernorm(g, vrow(VP_GN_G, H_HALF), vrow(VP_GN_B, H_HALF)))

    # ---- local branch, layer 0: GCNConv(D_IN -> HIDDEN), no residual ----
    loc = bdot(a, bdot(h, wblk(R_W0, D_IN, HIDDEN))) + vrow(VP_B0, HIDDEN)
    loc = _silu(_layernorm(loc, vrow(VP_LN0_G, HIDDEN), vrow(VP_LN0_B, HIDDEN)))

    # ---- layers 1-2: GCNConv(HIDDEN -> HIDDEN) + residual ----
    for rw, rb, rg, rbe in ((R_W1, VP_B1, VP_LN1_G, VP_LN1_B),
                            (R_W2, VP_B2, VP_LN2_G, VP_LN2_B)):
        res = loc
        loc = bdot(a, bdot(loc, wblk(rw, HIDDEN, HIDDEN))) + vrow(rb, HIDDEN)
        loc = _silu(_layernorm(loc, vrow(rg, HIDDEN), vrow(rbe, HIDDEN))) + res

    # ---- layer 3: GATConv(HIDDEN, HIDDEN/heads, heads, concat) + residual ----
    res = loc
    xw = bdot(loc, wblk(R_WA, HIDDEN, HIDDEN))            # [N, HIDDEN] f32
    xw_bf = xw.astype(jnp.bfloat16)
    xw_t = xw.T                                           # [HIDDEN, N] f32
    xw_t_bf = xw_t.astype(jnp.bfloat16)

    # attention logits via block-structured matmuls (replaces per-head slices)
    a_dst = jnp.dot(xw_bf, wblk(R_WD, HIDDEN, HEADS),
                    preferred_element_type=jnp.float32)   # [N, HEADS]  att_dst.x_i
    a_src = jnp.dot(wblk(R_WST, HEADS, HIDDEN), xw_t_bf,
                    preferred_element_type=jnp.float32)   # [HEADS, N]  att_src.x_j

    # e[h, i, j] = att_dst.x_i + att_src.x_j
    dst3 = jnp.stack([a_dst[:, hh:hh + 1] for hh in range(HEADS)], axis=0)  # [H,N,1]
    src3 = a_src[:, None, :]                                                # [H,1,N]
    e = dst3 + src3                                                         # [H,N,N]
    e = jnp.where(e >= 0.0, e, 0.2 * e)                   # LeakyReLU(0.2)
    e = jnp.where(mask[None, :, :], e, -1e30)             # mask non-edges
    e = e - jnp.max(e, axis=-1, keepdims=True)
    p = jnp.exp(e)
    p = p * pl.reciprocal(jnp.sum(p, axis=-1, keepdims=True), approx=True)

    # batched aggregation: out[h, f, i] = sum_j xw[h, f, j] * p[h, i, j]
    xw_h = xw_t.reshape(HEADS, F_HEAD, N).astype(jnp.bfloat16)              # [H,F,N]
    out_ht = jnp.einsum('hfj,hij->hfi', xw_h, p.astype(jnp.bfloat16),
                        preferred_element_type=jnp.float32)                 # [H,F,N]
    gat = out_ht.reshape(HIDDEN, N).T + vrow(VP_BA, HIDDEN)                 # [N,HIDDEN]
    loc = _silu(_layernorm(gat, vrow(VP_LN3_G, HIDDEN),
                           vrow(VP_LN3_B, HIDDEN))) + res

    # ---- fusion: Linear(cat([loc, g])) == loc@Wf_loc + g@Wf_glob + bf ----
    fused = (bdot(loc, wblk(R_WFL, HIDDEN, HIDDEN))
             + bdot(g, wblk(R_WFG, H_HALF, HIDDEN)) + vrow(VP_BF, HIDDEN))
    fused = _silu(_layernorm(fused, vrow(VP_FN_G, HIDDEN), vrow(VP_FN_B, HIDDEN)))

    # ---- output MLP (second linear lane-padded to OUT_PAD for dense stores) ----
    h1 = bdot(fused, wblk(R_WM1, HIDDEN, H_HALF)) + vrow(VP_BM1, H_HALF)
    h1 = _silu(_layernorm(h1, vrow(VP_MN_G, H_HALF), vrow(VP_MN_B, H_HALF)))
    out = bdot(h1, wblk(R_WM2, H_HALF, OUT_PAD)) + vrow(VP_BM2, OUT_PAD)
    out_ref[0] = out.astype(out_ref.dtype)


# ------------------------------- host wrapper ---------------------------------
@jax.jit
def improved_gnn_forward(x, a_norm, vec_params, w_slab):
    b = x.shape[0]
    out = pl.pallas_call(
        improved_gnn_kernel,
        out_shape=jax.ShapeDtypeStruct((b, N, OUT_PAD), jnp.float32),
        grid=(b,),
        in_specs=[
            pl.BlockSpec((1, N, D_IN), lambda i: (i, 0, 0)),      # per-graph features
            pl.BlockSpec((1, N, N), lambda i: (i, 0, 0)),         # per-graph adjacency
            pl.BlockSpec((VP_ROWS, LANES), lambda i: (0, 0)),     # resident bias/LN slab
            pl.BlockSpec((W_ROWS, LANES), lambda i: (0, 0)),      # resident weight slab
        ],
        out_specs=pl.BlockSpec((1, N, OUT_PAD), lambda i: (i, 0, 0)),
        compiler_params=pltpu.CompilerParams(
            dimension_semantics=("parallel",)),
    )(x, a_norm, vec_params, w_slab)
    return out[..., :OUT_DIM]


# ----------------------------- parameter / graph setup ------------------------
def _xavier(key, shape):
    fan_in, fan_out = shape[0], shape[-1]
    bound = (6.0 / (fan_in + fan_out)) ** 0.5
    return jax.random.uniform(key, shape, jnp.float32, -bound, bound)


def make_packed_params(key):
    ks = jax.random.split(key, 11)
    wg = _xavier(ks[0], (D_IN, H_HALF))        # global_conv
    w0 = _xavier(ks[1], (D_IN, HIDDEN))        # GCN layer 0
    w1 = _xavier(ks[2], (HIDDEN, HIDDEN))      # GCN layer 1
    w2 = _xavier(ks[3], (HIDDEN, HIDDEN))      # GCN layer 2
    wa = _xavier(ks[4], (HIDDEN, HIDDEN))      # GAT lin
    att_src = _xavier(ks[5], (HEADS, F_HEAD))  # GAT att_src
    att_dst = _xavier(ks[6], (HEADS, F_HEAD))  # GAT att_dst
    wf_loc = _xavier(ks[7], (HIDDEN, HIDDEN))  # fusion (local part)
    wf_glob = _xavier(ks[8], (H_HALF, HIDDEN)) # fusion (global part)
    wm1 = _xavier(ks[9], (HIDDEN, H_HALF))     # mlp linear 1
    wm2 = _xavier(ks[10], (H_HALF, OUT_DIM))   # mlp linear 2

    # ---- f32 vector-parameter slab: biases = 0, LN gamma = 1, LN beta = 0 ----
    vp = jnp.zeros((VP_ROWS, LANES), jnp.float32)
    for r, d in ((VP_IN_G, D_IN), (VP_GN_G, H_HALF),
                 (VP_LN0_G, HIDDEN), (VP_LN1_G, HIDDEN),
                 (VP_LN2_G, HIDDEN), (VP_LN3_G, HIDDEN),
                 (VP_FN_G, HIDDEN), (VP_MN_G, H_HALF)):
        vp = vp.at[r, :d].set(1.0)

    # ---- bf16 packed weight slab ----
    w = jnp.zeros((W_ROWS, LANES), jnp.float32)

    def put(slab, r0, mat):
        rr, cc = mat.shape
        return slab.at[r0:r0 + rr, :cc].set(mat)

    w = put(w, R_WG, wg)
    w = put(w, R_W0, w0)
    w = put(w, R_W1, w1)
    w = put(w, R_W2, w2)
    w = put(w, R_WA, wa)
    w = put(w, R_WFL, wf_loc)
    w = put(w, R_WFG, wf_glob)
    w = put(w, R_WM1, wm1)
    w = put(w, R_WM2, wm2)                      # columns 6:128 stay zero (lane padding)

    # block-structured GAT attention matrices:
    #   wsT[h, h*F+f] = att_src[h, f]  ->  a_src = wsT @ xw^T   is [HEADS, N]
    #   wd [h*F+f, h] = att_dst[h, f]  ->  a_dst = xw @ wd      is [N, HEADS]
    wsT = jnp.zeros((HEADS, HIDDEN), jnp.float32)
    wd = jnp.zeros((HIDDEN, HEADS), jnp.float32)
    for hh in range(HEADS):
        wsT = wsT.at[hh, hh * F_HEAD:(hh + 1) * F_HEAD].set(att_src[hh])
        wd = wd.at[hh * F_HEAD:(hh + 1) * F_HEAD, hh].set(att_dst[hh])
    w = put(w, R_WST, wsT)
    w = put(w, R_WD, wd)
    return vp, w.astype(jnp.bfloat16)


def build_graph(edge_index, n):
    """Dense GCN-normalized adjacency (with self loops)."""
    src, dst = edge_index[0], edge_index[1]
    adj = jnp.zeros((n, n), jnp.float32).at[dst, src].set(1.0)   # adj[i, j]: edge j->i
    adj = adj.at[jnp.arange(n), jnp.arange(n)].set(1.0)          # self loops
    deg = jnp.sum(adj, axis=1)
    dinv = jax.lax.rsqrt(deg)
    return adj * dinv[:, None] * dinv[None, :]


# ----------------------------------- main --------------------------------------
if __name__ == "__main__":
    key = jax.random.PRNGKey(0)
    k_x, k_p = jax.random.split(key)

    # deterministic node features and a small batch of ring+skip graphs
    x = jax.random.normal(k_x, (B, N, D_IN), jnp.float32)
    nodes = jnp.arange(N)
    a_list = []
    for bb in range(B):
        src = jnp.concatenate([nodes, nodes, nodes])
        dst = jnp.concatenate([(nodes + 1) % N, (nodes - 1) % N,
                               (nodes + 2 + bb) % N])
        edge_index = jnp.stack([src, dst]).astype(jnp.int32)
        a_list.append(build_graph(edge_index, N))
    a_norm = jnp.stack(a_list).astype(jnp.bfloat16)   # bf16 MXU operand

    vec_params, w_slab = make_packed_params(k_p)

    # TODO(synk): forward_sampled (NeighborSampler path) is not implemented;
    # this kernel covers the full-graph forward() in inference mode.
    out = improved_gnn_forward(x, a_norm, vec_params, w_slab)
    out = jax.block_until_ready(out)
    assert out.shape == (B, N, OUT_DIM)
    assert bool(jnp.all(jnp.isfinite(out)))
    print("KERNEL_OK")
</pallas_src>

<mosaic_0001>
module attributes {stable_mosaic.version = 11 : i64} {
  func.func @improved_gnn_kernel(%arg0: i32, %arg1: memref<1x64x16xf32, #tpu.memory_space<vmem>>, %arg2: memref<1x64x64xbf16, #tpu.memory_space<vmem>>, %arg3: memref<24x128xf32, #tpu.memory_space<vmem>>, %arg4: memref<376x128xbf16, #tpu.memory_space<vmem>>, %arg5: memref<1x64x128xf32, #tpu.memory_space<vmem>>) attributes {dimension_semantics = [#tpu.dimension_semantics<parallel>], iteration_bounds = array<i64: 8>, scalar_prefetch = 0 : i64, scratch_operands = 0 : i64, tpu.core_type = #tpu.core_type<tc>, window_params = [{transform_indices = @transform_0, window_bounds = array<i64: 1, 64, 16>}, {transform_indices = @transform_1, window_bounds = array<i64: 1, 64, 64>}, {pipeline_mode = #tpu.pipeline_mode<synchronous>, transform_indices = @transform_2, window_bounds = array<i64: 24, 128>}, {pipeline_mode = #tpu.pipeline_mode<synchronous>, transform_indices = @transform_3, window_bounds = array<i64: 376, 128>}, {transform_indices = @transform_4, window_bounds = array<i64: 1, 64, 128>}]} {
    %c0 = arith.constant 0 : index
    %c0_0 = arith.constant 0 : index
    %c0_1 = arith.constant 0 : index
    %0 = vector.load %arg1[%c0, %c0_0, %c0_1] : memref<1x64x16xf32, #tpu.memory_space<vmem>>, vector<1x64x16xf32>
    %1 = vector.shape_cast %0 : vector<1x64x16xf32> to vector<64x16xf32>
    %c0_2 = arith.constant 0 : index
    %c0_3 = arith.constant 0 : index
    %c0_4 = arith.constant 0 : index
    %2 = vector.load %arg2[%c0_2, %c0_3, %c0_4] : memref<1x64x64xbf16, #tpu.memory_space<vmem>>, vector<1x64x64xbf16>
    %3 = vector.shape_cast %2 : vector<1x64x64xbf16> to vector<64x64xbf16>
    %cst = arith.constant 0.000000e+00 : bf16
    %4 = vector.broadcast %cst : bf16 to vector<64x64xbf16>
    %5 = arith.cmpf ogt, %3, %4 : vector<64x64xbf16>
    %c0_5 = arith.constant 0 : index
    %c0_6 = arith.constant 0 : index
    %6 = vector.load %arg3[%c0_5, %c0_6] : memref<24x128xf32, #tpu.memory_space<vmem>>, vector<24x128xf32>
    %7 = vector.extract_strided_slice %6 {offsets = [0, 0], sizes = [1, 16], strides = [1, 1]} : vector<24x128xf32> to vector<1x16xf32>
    %8 = vector.extract_strided_slice %6 {offsets = [1, 0], sizes = [1, 16], strides = [1, 1]} : vector<24x128xf32> to vector<1x16xf32>
    %cst_7 = arith.constant dense<0.000000e+00> : vector<64xf32>
    %9 = vector.multi_reduction <add>, %1, %cst_7 [1] : vector<64x16xf32> to vector<64xf32>
    %10 = vector.shape_cast %9 : vector<64xf32> to vector<64x1xf32>
    %cst_8 = arith.constant 1.600000e+01 : f32
    %11 = vector.broadcast %cst_8 : f32 to vector<64x1xf32>
    %12 = arith.divf %10, %11 : vector<64x1xf32>
    %13 = vector.broadcast %12 : vector<64x1xf32> to vector<64x16xf32>
    %14 = arith.subf %1, %13 : vector<64x16xf32>
    %15 = arith.mulf %14, %14 : vector<64x16xf32>
    %cst_9 = arith.constant dense<0.000000e+00> : vector<64xf32>
    %16 = vector.multi_reduction <add>, %15, %cst_9 [1] : vector<64x16xf32> to vector<64xf32>
    %17 = vector.shape_cast %16 : vector<64xf32> to vector<64x1xf32>
    %cst_10 = arith.constant 1.600000e+01 : f32
    %18 = vector.broadcast %cst_10 : f32 to vector<64x1xf32>
    %19 = arith.divf %17, %18 : vector<64x1xf32>
    %20 = vector.broadcast %12 : vector<64x1xf32> to vector<64x16xf32>
    %21 = arith.subf %1, %20 : vector<64x16xf32>
    %cst_11 = arith.constant 9.99999974E-6 : f32
    %22 = vector.broadcast %cst_11 : f32 to vector<64x1xf32>
    %23 = arith.addf %19, %22 : vector<64x1xf32>
    %24 = math.rsqrt %23 : vector<64x1xf32>
    %25 = vector.broadcast %24 : vector<64x1xf32> to vector<64x16xf32>
    %26 = arith.mulf %21, %25 : vector<64x16xf32>
    %27 = vector.broadcast %7 : vector<1x16xf32> to vector<64x16xf32>
    %28 = arith.mulf %26, %27 : vector<64x16xf32>
    %29 = vector.broadcast %8 : vector<1x16xf32> to vector<64x16xf32>
    %30 = arith.addf %28, %29 : vector<64x16xf32>
    %c0_12 = arith.constant 0 : index
    %c0_13 = arith.constant 0 : index
    %31 = vector.load %arg4[%c0_12, %c0_13] : memref<376x128xbf16, #tpu.memory_space<vmem>>, vector<16x24xbf16>
    %32 = arith.truncf %30 : vector<64x16xf32> to vector<64x16xbf16>
    %cst_14 = arith.constant dense<0.000000e+00> : vector<64x24xf32>
    %33 = tpu.matmul %32, %31, %cst_14 {dimension_numbers = #tpu.dot_dimension_numbers<[1], [0], [0], [1], [0, 0, 1, 1], [], []>} : vector<64x16xbf16>, vector<16x24xbf16>, vector<64x24xf32> -> vector<64x24xf32>
    %cst_15 = arith.constant dense<0.000000e+00> : vector<64x24xf32>
    %34 = tpu.matmul %3, %33, %cst_15 {dimension_numbers = #tpu.dot_dimension_numbers<[1], [0], [0], [1], [0, 0, 1, 1], [], []>} : vector<64x64xbf16>, vector<64x24xf32>, vector<64x24xf32> -> vector<64x24xf32>
    %35 = vector.extract_strided_slice %6 {offsets = [2, 0], sizes = [1, 24], strides = [1, 1]} : vector<24x128xf32> to vector<1x24xf32>
    %36 = vector.broadcast %35 : vector<1x24xf32> to vector<64x24xf32>
    %37 = arith.addf %34, %36 : vector<64x24xf32>
    %38 = vector.extract_strided_slice %6 {offsets = [3, 0], sizes = [1, 24], strides = [1, 1]} : vector<24x128xf32> to vector<1x24xf32>
    %39 = vector.extract_strided_slice %6 {offsets = [4, 0], sizes = [1, 24], strides = [1, 1]} : vector<24x128xf32> to vector<1x24xf32>
    %cst_16 = arith.constant dense<0.000000e+00> : vector<64xf32>
    %40 = vector.multi_reduction <add>, %37, %cst_16 [1] : vector<64x24xf32> to vector<64xf32>
    %41 = vector.shape_cast %40 : vector<64xf32> to vector<64x1xf32>
    %cst_17 = arith.constant 2.400000e+01 : f32
    %42 = vector.broadcast %cst_17 : f32 to vector<64x1xf32>
    %43 = arith.divf %41, %42 : vector<64x1xf32>
    %44 = vector.broadcast %43 : vector<64x1xf32> to vector<64x24xf32>
    %45 = arith.subf %37, %44 : vector<64x24xf32>
    %46 = arith.mulf %45, %45 : vector<64x24xf32>
    %cst_18 = arith.constant dense<0.000000e+00> : vector<64xf32>
    %47 = vector.multi_reduction <add>, %46, %cst_18 [1] : vector<64x24xf32> to vector<64xf32>
    %48 = vector.shape_cast %47 : vector<64xf32> to vector<64x1xf32>
    %cst_19 = arith.constant 2.400000e+01 : f32
    %49 = vector.broadcast %cst_19 : f32 to vector<64x1xf32>
    %50 = arith.divf %48, %49 : vector<64x1xf32>
    %51 = vector.broadcast %43 : vector<64x1xf32> to vector<64x24xf32>
    %52 = arith.subf %37, %51 : vector<64x24xf32>
    %cst_20 = arith.constant 9.99999974E-6 : f32
    %53 = vector.broadcast %cst_20 : f32 to vector<64x1xf32>
    %54 = arith.addf %50, %53 : vector<64x1xf32>
    %55 = math.rsqrt %54 : vector<64x1xf32>
    %56 = vector.broadcast %55 : vector<64x1xf32> to vector<64x24xf32>
    %57 = arith.mulf %52, %56 : vector<64x24xf32>
    %58 = vector.broadcast %38 : vector<1x24xf32> to vector<64x24xf32>
    %59 = arith.mulf %57, %58 : vector<64x24xf32>
    %60 = vector.broadcast %39 : vector<1x24xf32> to vector<64x24xf32>
    %61 = arith.addf %59, %60 : vector<64x24xf32>
    %62 = arith.negf %61 : vector<64x24xf32>
    %63 = math.exp %62 : vector<64x24xf32>
    %cst_21 = arith.constant 1.000000e+00 : f32
    %64 = vector.broadcast %cst_21 : f32 to vector<64x24xf32>
    %65 = arith.addf %64, %63 : vector<64x24xf32>
    %66 = arith.divf %64, %65 : vector<64x24xf32>
    %67 = arith.mulf %61, %66 : vector<64x24xf32>
    %c16 = arith.constant 16 : index
    %c0_22 = arith.constant 0 : index
    %68 = vector.load %arg4[%c16, %c0_22] : memref<376x128xbf16, #tpu.memory_space<vmem>>, vector<16x48xbf16>
    %69 = arith.truncf %30 : vector<64x16xf32> to vector<64x16xbf16>
    %cst_23 = arith.constant dense<0.000000e+00> : vector<64x48xf32>
    %70 = tpu.matmul %69, %68, %cst_23 {dimension_numbers = #tpu.dot_dimension_numbers<[1], [0], [0], [1], [0, 0, 1, 1], [], []>} : vector<64x16xbf16>, vector<16x48xbf16>, vector<64x48xf32> -> vector<64x48xf32>
    %cst_24 = arith.constant dense<0.000000e+00> : vector<64x48xf32>
    %71 = tpu.matmul %3, %70, %cst_24 {dimension_numbers = #tpu.dot_dimension_numbers<[1], [0], [0], [1], [0, 0, 1, 1], [], []>} : vector<64x64xbf16>, vector<64x48xf32>, vector<64x48xf32> -> vector<64x48xf32>
    %72 = vector.extract_strided_slice %6 {offsets = [5, 0], sizes = [1, 48], strides = [1, 1]} : vector<24x128xf32> to vector<1x48xf32>
    %73 = vector.broadcast %72 : vector<1x48xf32> to vector<64x48xf32>
    %74 = arith.addf %71, %73 : vector<64x48xf32>
    %75 = vector.extract_strided_slice %6 {offsets = [9, 0], sizes = [1, 48], strides = [1, 1]} : vector<24x128xf32> to vector<1x48xf32>
    %76 = vector.extract_strided_slice %6 {offsets = [10, 0], sizes = [1, 48], strides = [1, 1]} : vector<24x128xf32> to vector<1x48xf32>
    %cst_25 = arith.constant dense<0.000000e+00> : vector<64xf32>
    %77 = vector.multi_reduction <add>, %74, %cst_25 [1] : vector<64x48xf32> to vector<64xf32>
    %78 = vector.shape_cast %77 : vector<64xf32> to vector<64x1xf32>
    %cst_26 = arith.constant 4.800000e+01 : f32
    %79 = vector.broadcast %cst_26 : f32 to vector<64x1xf32>
    %80 = arith.divf %78, %79 : vector<64x1xf32>
    %81 = vector.broadcast %80 : vector<64x1xf32> to vector<64x48xf32>
    %82 = arith.subf %74, %81 : vector<64x48xf32>
    %83 = arith.mulf %82, %82 : vector<64x48xf32>
    %cst_27 = arith.constant dense<0.000000e+00> : vector<64xf32>
    %84 = vector.multi_reduction <add>, %83, %cst_27 [1] : vector<64x48xf32> to vector<64xf32>
    %85 = vector.shape_cast %84 : vector<64xf32> to vector<64x1xf32>
    %cst_28 = arith.constant 4.800000e+01 : f32
    %86 = vector.broadcast %cst_28 : f32 to vector<64x1xf32>
    %87 = arith.divf %85, %86 : vector<64x1xf32>
    %88 = vector.broadcast %80 : vector<64x1xf32> to vector<64x48xf32>
    %89 = arith.subf %74, %88 : vector<64x48xf32>
    %cst_29 = arith.constant 9.99999974E-6 : f32
    %90 = vector.broadcast %cst_29 : f32 to vector<64x1xf32>
    %91 = arith.addf %87, %90 : vector<64x1xf32>
    %92 = math.rsqrt %91 : vector<64x1xf32>
    %93 = vector.broadcast %92 : vector<64x1xf32> to vector<64x48xf32>
    %94 = arith.mulf %89, %93 : vector<64x48xf32>
    %95 = vector.broadcast %75 : vector<1x48xf32> to vector<64x48xf32>
    %96 = arith.mulf %94, %95 : vector<64x48xf32>
    %97 = vector.broadcast %76 : vector<1x48xf32> to vector<64x48xf32>
    %98 = arith.addf %96, %97 : vector<64x48xf32>
    %99 = arith.negf %98 : vector<64x48xf32>
    %100 = math.exp %99 : vector<64x48xf32>
    %cst_30 = arith.constant 1.000000e+00 : f32
    %101 = vector.broadcast %cst_30 : f32 to vector<64x48xf32>
    %102 = arith.addf %101, %100 : vector<64x48xf32>
    %103 = arith.divf %101, %102 : vector<64x48xf32>
    %104 = arith.mulf %98, %103 : vector<64x48xf32>
    %c32 = arith.constant 32 : index
    %c0_31 = arith.constant 0 : index
    %105 = vector.load %arg4[%c32, %c0_31] : memref<376x128xbf16, #tpu.memory_space<vmem>>, vector<48x48xbf16>
    %106 = arith.truncf %104 : vector<64x48xf32> to vector<64x48xbf16>
    %cst_32 = arith.constant dense<0.000000e+00> : vector<64x48xf32>
    %107 = tpu.matmul %106, %105, %cst_32 {dimension_numbers = #tpu.dot_dimension_numbers<[1], [0], [0], [1], [0, 0, 1, 1], [], []>} : vector<64x48xbf16>, vector<48x48xbf16>, vector<64x48xf32> -> vector<64x48xf32>
    %cst_33 = arith.constant dense<0.000000e+00> : vector<64x48xf32>
    %108 = tpu.matmul %3, %107, %cst_33 {dimension_numbers = #tpu.dot_dimension_numbers<[1], [0], [0], [1], [0, 0, 1, 1], [], []>} : vector<64x64xbf16>, vector<64x48xf32>, vector<64x48xf32> -> vector<64x48xf32>
    %109 = vector.extract_strided_slice %6 {offsets = [6, 0], sizes = [1, 48], strides = [1, 1]} : vector<24x128xf32> to vector<1x48xf32>
    %110 = vector.broadcast %109 : vector<1x48xf32> to vector<64x48xf32>
    %111 = arith.addf %108, %110 : vector<64x48xf32>
    %112 = vector.extract_strided_slice %6 {offsets = [11, 0], sizes = [1, 48], strides = [1, 1]} : vector<24x128xf32> to vector<1x48xf32>
    %113 = vector.extract_strided_slice %6 {offsets = [12, 0], sizes = [1, 48], strides = [1, 1]} : vector<24x128xf32> to vector<1x48xf32>
    %cst_34 = arith.constant dense<0.000000e+00> : vector<64xf32>
    %114 = vector.multi_reduction <add>, %111, %cst_34 [1] : vector<64x48xf32> to vector<64xf32>
    %115 = vector.shape_cast %114 : vector<64xf32> to vector<64x1xf32>
    %cst_35 = arith.constant 4.800000e+01 : f32
    %116 = vector.broadcast %cst_35 : f32 to vector<64x1xf32>
    %117 = arith.divf %115, %116 : vector<64x1xf32>
    %118 = vector.broadcast %117 : vector<64x1xf32> to vector<64x48xf32>
    %119 = arith.subf %111, %118 : vector<64x48xf32>
    %120 = arith.mulf %119, %119 : vector<64x48xf32>
    %cst_36 = arith.constant dense<0.000000e+00> : vector<64xf32>
    %121 = vector.multi_reduction <add>, %120, %cst_36 [1] : vector<64x48xf32> to vector<64xf32>
    %122 = vector.shape_cast %121 : vector<64xf32> to vector<64x1xf32>
    %cst_37 = arith.constant 4.800000e+01 : f32
    %123 = vector.broadcast %cst_37 : f32 to vector<64x1xf32>
    %124 = arith.divf %122, %123 : vector<64x1xf32>
    %125 = vector.broadcast %117 : vector<64x1xf32> to vector<64x48xf32>
    %126 = arith.subf %111, %125 : vector<64x48xf32>
    %cst_38 = arith.constant 9.99999974E-6 : f32
    %127 = vector.broadcast %cst_38 : f32 to vector<64x1xf32>
    %128 = arith.addf %124, %127 : vector<64x1xf32>
    %129 = math.rsqrt %128 : vector<64x1xf32>
    %130 = vector.broadcast %129 : vector<64x1xf32> to vector<64x48xf32>
    %131 = arith.mulf %126, %130 : vector<64x48xf32>
    %132 = vector.broadcast %112 : vector<1x48xf32> to vector<64x48xf32>
    %133 = arith.mulf %131, %132 : vector<64x48xf32>
    %134 = vector.broadcast %113 : vector<1x48xf32> to vector<64x48xf32>
    %135 = arith.addf %133, %134 : vector<64x48xf32>
    %136 = arith.negf %135 : vector<64x48xf32>
    %137 = math.exp %136 : vector<64x48xf32>
    %cst_39 = arith.constant 1.000000e+00 : f32
    %138 = vector.broadcast %cst_39 : f32 to vector<64x48xf32>
    %139 = arith.addf %138, %137 : vector<64x48xf32>
    %140 = arith.divf %138, %139 : vector<64x48xf32>
    %141 = arith.mulf %135, %140 : vector<64x48xf32>
    %142 = arith.addf %141, %104 : vector<64x48xf32>
    %c80 = arith.constant 80 : index
    %c0_40 = arith.constant 0 : index
    %143 = vector.load %arg4[%c80, %c0_40] : memref<376x128xbf16, #tpu.memory_space<vmem>>, vector<48x48xbf16>
    %144 = arith.truncf %142 : vector<64x48xf32> to vector<64x48xbf16>
    %cst_41 = arith.constant dense<0.000000e+00> : vector<64x48xf32>
    %145 = tpu.matmul %144, %143, %cst_41 {dimension_numbers = #tpu.dot_dimension_numbers<[1], [0], [0], [1], [0, 0, 1, 1], [], []>} : vector<64x48xbf16>, vector<48x48xbf16>, vector<64x48xf32> -> vector<64x48xf32>
    %cst_42 = arith.constant dense<0.000000e+00> : vector<64x48xf32>
    %146 = tpu.matmul %3, %145, %cst_42 {dimension_numbers = #tpu.dot_dimension_numbers<[1], [0], [0], [1], [0, 0, 1, 1], [], []>} : vector<64x64xbf16>, vector<64x48xf32>, vector<64x48xf32> -> vector<64x48xf32>
    %147 = vector.extract_strided_slice %6 {offsets = [7, 0], sizes = [1, 48], strides = [1, 1]} : vector<24x128xf32> to vector<1x48xf32>
    %148 = vector.broadcast %147 : vector<1x48xf32> to vector<64x48xf32>
    %149 = arith.addf %146, %148 : vector<64x48xf32>
    %150 = vector.extract_strided_slice %6 {offsets = [13, 0], sizes = [1, 48], strides = [1, 1]} : vector<24x128xf32> to vector<1x48xf32>
    %151 = vector.extract_strided_slice %6 {offsets = [14, 0], sizes = [1, 48], strides = [1, 1]} : vector<24x128xf32> to vector<1x48xf32>
    %cst_43 = arith.constant dense<0.000000e+00> : vector<64xf32>
    %152 = vector.multi_reduction <add>, %149, %cst_43 [1] : vector<64x48xf32> to vector<64xf32>
    %153 = vector.shape_cast %152 : vector<64xf32> to vector<64x1xf32>
    %cst_44 = arith.constant 4.800000e+01 : f32
    %154 = vector.broadcast %cst_44 : f32 to vector<64x1xf32>
    %155 = arith.divf %153, %154 : vector<64x1xf32>
    %156 = vector.broadcast %155 : vector<64x1xf32> to vector<64x48xf32>
    %157 = arith.subf %149, %156 : vector<64x48xf32>
    %158 = arith.mulf %157, %157 : vector<64x48xf32>
    %cst_45 = arith.constant dense<0.000000e+00> : vector<64xf32>
    %159 = vector.multi_reduction <add>, %158, %cst_45 [1] : vector<64x48xf32> to vector<64xf32>
    %160 = vector.shape_cast %159 : vector<64xf32> to vector<64x1xf32>
    %cst_46 = arith.constant 4.800000e+01 : f32
    %161 = vector.broadcast %cst_46 : f32 to vector<64x1xf32>
    %162 = arith.divf %160, %161 : vector<64x1xf32>
    %163 = vector.broadcast %155 : vector<64x1xf32> to vector<64x48xf32>
    %164 = arith.subf %149, %163 : vector<64x48xf32>
    %cst_47 = arith.constant 9.99999974E-6 : f32
    %165 = vector.broadcast %cst_47 : f32 to vector<64x1xf32>
    %166 = arith.addf %162, %165 : vector<64x1xf32>
    %167 = math.rsqrt %166 : vector<64x1xf32>
    %168 = vector.broadcast %167 : vector<64x1xf32> to vector<64x48xf32>
    %169 = arith.mulf %164, %168 : vector<64x48xf32>
    %170 = vector.broadcast %150 : vector<1x48xf32> to vector<64x48xf32>
    %171 = arith.mulf %169, %170 : vector<64x48xf32>
    %172 = vector.broadcast %151 : vector<1x48xf32> to vector<64x48xf32>
    %173 = arith.addf %171, %172 : vector<64x48xf32>
    %174 = arith.negf %173 : vector<64x48xf32>
    %175 = math.exp %174 : vector<64x48xf32>
    %cst_48 = arith.constant 1.000000e+00 : f32
    %176 = vector.broadcast %cst_48 : f32 to vector<64x48xf32>
    %177 = arith.addf %176, %175 : vector<64x48xf32>
    %178 = arith.divf %176, %177 : vector<64x48xf32>
    %179 = arith.mulf %173, %178 : vector<64x48xf32>
    %180 = arith.addf %179, %142 : vector<64x48xf32>
    %c128 = arith.constant 128 : index
    %c0_49 = arith.constant 0 : index
    %181 = vector.load %arg4[%c128, %c0_49] : memref<376x128xbf16, #tpu.memory_space<vmem>>, vector<48x48xbf16>
    %182 = arith.truncf %180 : vector<64x48xf32> to vector<64x48xbf16>
    %cst_50 = arith.constant dense<0.000000e+00> : vector<64x48xf32>
    %183 = tpu.matmul %182, %181, %cst_50 {dimension_numbers = #tpu.dot_dimension_numbers<[1], [0], [0], [1], [0, 0, 1, 1], [], []>} : vector<64x48xbf16>, vector<48x48xbf16>, vector<64x48xf32> -> vector<64x48xf32>
    %184 = arith.truncf %183 : vector<64x48xf32> to vector<64x48xbf16>
    %185 = tpu.transpose %183, [1, 0] : vector<64x48xf32> -> vector<48x64xf32>
    %186 = arith.truncf %185 : vector<48x64xf32> to vector<48x64xbf16>
    %c328 = arith.constant 328 : index
    %c0_51 = arith.constant 0 : index
    %187 = vector.load %arg4[%c328, %c0_51] : memref<376x128xbf16, #tpu.memory_space<vmem>>, vector<48x6xbf16>
    %cst_52 = arith.constant dense<0.000000e+00> : vector<64x6xf32>
    %188 = tpu.matmul %184, %187, %cst_52 {dimension_numbers = #tpu.dot_dimension_numbers<[1], [0], [0], [1], [0, 0, 1, 1], [], []>} : vector<64x48xbf16>, vector<48x6xbf16>, vector<64x6xf32> -> vector<64x6xf32>
    %c320 = arith.constant 320 : index
    %c0_53 = arith.constant 0 : index
    %189 = vector.load %arg4[%c320, %c0_53] : memref<376x128xbf16, #tpu.memory_space<vmem>>, vector<6x48xbf16>
    %cst_54 = arith.constant dense<0.000000e+00> : vector<6x64xf32>
    %190 = tpu.matmul %189, %186, %cst_54 {dimension_numbers = #tpu.dot_dimension_numbers<[1], [0], [0], [1], [0, 0, 1, 1], [], []>} : vector<6x48xbf16>, vector<48x64xbf16>, vector<6x64xf32> -> vector<6x64xf32>
    %191 = vector.extract_strided_slice %188 {offsets = [0, 0], sizes = [64, 1], strides = [1, 1]} : vector<64x6xf32> to vector<64x1xf32>
    %192 = vector.extract_strided_slice %188 {offsets = [0, 1], sizes = [64, 1], strides = [1, 1]} : vector<64x6xf32> to vector<64x1xf32>
    %193 = vector.extract_strided_slice %188 {offsets = [0, 2], sizes = [64, 1], strides = [1, 1]} : vector<64x6xf32> to vector<64x1xf32>
    %194 = vector.extract_strided_slice %188 {offsets = [0, 3], sizes = [64, 1], strides = [1, 1]} : vector<64x6xf32> to vector<64x1xf32>
    %195 = vector.extract_strided_slice %188 {offsets = [0, 4], sizes = [64, 1], strides = [1, 1]} : vector<64x6xf32> to vector<64x1xf32>
    %196 = vector.extract_strided_slice %188 {offsets = [0, 5], sizes = [64, 1], strides = [1, 1]} : vector<64x6xf32> to vector<64x1xf32>
    %197 = vector.shape_cast %191 : vector<64x1xf32> to vector<1x64x1xf32>
    %198 = vector.shape_cast %192 : vector<64x1xf32> to vector<1x64x1xf32>
    %199 = vector.shape_cast %193 : vector<64x1xf32> to vector<1x64x1xf32>
    %200 = vector.shape_cast %194 : vector<64x1xf32> to vector<1x64x1xf32>
    %201 = vector.shape_cast %195 : vector<64x1xf32> to vector<1x64x1xf32>
    %202 = vector.shape_cast %196 : vector<64x1xf32> to vector<1x64x1xf32>
    %203 = tpu.concatenate %197, %198, %199, %200, %201, %202 in 0 : vector<1x64x1xf32>, vector<1x64x1xf32>, vector<1x64x1xf32>, vector<1x64x1xf32>, vector<1x64x1xf32>, vector<1x64x1xf32> -> vector<6x64x1xf32>
    %204 = vector.shape_cast %190 : vector<6x64xf32> to vector<6x1x64xf32>
    %205 = vector.broadcast %203 : vector<6x64x1xf32> to vector<6x64x64xf32>
    %206 = vector.broadcast %204 : vector<6x1x64xf32> to vector<6x64x64xf32>
    %207 = arith.addf %205, %206 : vector<6x64x64xf32>
    %cst_55 = arith.constant 0.000000e+00 : f32
    %208 = vector.broadcast %cst_55 : f32 to vector<6x64x64xf32>
    %209 = arith.cmpf oge, %207, %208 : vector<6x64x64xf32>
    %cst_56 = arith.constant 2.000000e-01 : f32
    %210 = vector.broadcast %cst_56 : f32 to vector<6x64x64xf32>
    %211 = arith.mulf %210, %207 : vector<6x64x64xf32>
    %212 = arith.select %209, %207, %211 : vector<6x64x64xi1>, vector<6x64x64xf32>
    %213 = vector.shape_cast %5 : vector<64x64xi1> to vector<1x64x64xi1>
    %cst_57 = arith.constant -1.000000e+30 : f32
    %214 = vector.shape_cast %213 : vector<1x64x64xi1> to vector<1x64x64xi1>
    %215 = vector.broadcast %214 : vector<1x64x64xi1> to vector<6x64x64xi1>
    %216 = vector.broadcast %cst_57 : f32 to vector<6x64x64xf32>
    %217 = arith.select %215, %212, %216 : vector<6x64x64xi1>, vector<6x64x64xf32>
    %cst_58 = arith.constant dense<0xFF800000> : vector<6x64xf32>
    %218 = vector.multi_reduction <maximumf>, %217, %cst_58 [2] : vector<6x64x64xf32> to vector<6x64xf32>
    %219 = vector.shape_cast %218 : vector<6x64xf32> to vector<6x64x1xf32>
    %220 = vector.broadcast %219 : vector<6x64x1xf32> to vector<6x64x64xf32>
    %221 = arith.subf %217, %220 : vector<6x64x64xf32>
    %222 = math.exp %221 : vector<6x64x64xf32>
    %cst_59 = arith.constant dense<0.000000e+00> : vector<6x64xf32>
    %223 = vector.multi_reduction <add>, %222, %cst_59 [2] : vector<6x64x64xf32> to vector<6x64xf32>
    %224 = vector.shape_cast %223 : vector<6x64xf32> to vector<6x64x1xf32>
    %225 = tpu.reciprocal %224 {approx = true} : vector<6x64x1xf32> -> vector<6x64x1xf32>
    %226 = vector.broadcast %225 : vector<6x64x1xf32> to vector<6x64x64xf32>
    %227 = arith.mulf %222, %226 : vector<6x64x64xf32>
    %228 = vector.shape_cast %185 : vector<48x64xf32> to vector<6x8x64xf32>
    %229 = arith.truncf %228 : vector<6x8x64xf32> to vector<6x8x64xbf16>
    %230 = arith.truncf %227 : vector<6x64x64xf32> to vector<6x64x64xbf16>
    "tpu.trace_start"() <{level = 10 : i32, message = "hfj,hij->hfi"}> : () -> ()
    %cst_60 = arith.constant dense<0.000000e+00> : vector<6x8x64xf32>
    %231 = tpu.matmul %229, %230, %cst_60 {dimension_numbers = #tpu.dot_dimension_numbers<[2], [2], [1], [1], [0, 0, 0, 1, 1, 1], [0], [0]>} : vector<6x8x64xbf16>, vector<6x64x64xbf16>, vector<6x8x64xf32> -> vector<6x8x64xf32>
    "tpu.trace_stop"() : () -> ()
    %232 = vector.shape_cast %231 : vector<6x8x64xf32> to vector<48x64xf32>
    %233 = tpu.transpose %232, [1, 0] : vector<48x64xf32> -> vector<64x48xf32>
    %234 = vector.extract_strided_slice %6 {offsets = [8, 0], sizes = [1, 48], strides = [1, 1]} : vector<24x128xf32> to vector<1x48xf32>
    %235 = vector.broadcast %234 : vector<1x48xf32> to vector<64x48xf32>
    %236 = arith.addf %233, %235 : vector<64x48xf32>
    %237 = vector.extract_strided_slice %6 {offsets = [15, 0], sizes = [1, 48], strides = [1, 1]} : vector<24x128xf32> to vector<1x48xf32>
    %238 = vector.extract_strided_slice %6 {offsets = [16, 0], sizes = [1, 48], strides = [1, 1]} : vector<24x128xf32> to vector<1x48xf32>
    %cst_61 = arith.constant dense<0.000000e+00> : vector<64xf32>
    %239 = vector.multi_reduction <add>, %236, %cst_61 [1] : vector<64x48xf32> to vector<64xf32>
    %240 = vector.shape_cast %239 : vector<64xf32> to vector<64x1xf32>
    %cst_62 = arith.constant 4.800000e+01 : f32
    %241 = vector.broadcast %cst_62 : f32 to vector<64x1xf32>
    %242 = arith.divf %240, %241 : vector<64x1xf32>
    %243 = vector.broadcast %242 : vector<64x1xf32> to vector<64x48xf32>
    %244 = arith.subf %236, %243 : vector<64x48xf32>
    %245 = arith.mulf %244, %244 : vector<64x48xf32>
    %cst_63 = arith.constant dense<0.000000e+00> : vector<64xf32>
    %246 = vector.multi_reduction <add>, %245, %cst_63 [1] : vector<64x48xf32> to vector<64xf32>
    %247 = vector.shape_cast %246 : vector<64xf32> to vector<64x1xf32>
    %cst_64 = arith.constant 4.800000e+01 : f32
    %248 = vector.broadcast %cst_64 : f32 to vector<64x1xf32>
    %249 = arith.divf %247, %248 : vector<64x1xf32>
    %250 = vector.broadcast %242 : vector<64x1xf32> to vector<64x48xf32>
    %251 = arith.subf %236, %250 : vector<64x48xf32>
    %cst_65 = arith.constant 9.99999974E-6 : f32
    %252 = vector.broadcast %cst_65 : f32 to vector<64x1xf32>
    %253 = arith.addf %249, %252 : vector<64x1xf32>
    %254 = math.rsqrt %253 : vector<64x1xf32>
    %255 = vector.broadcast %254 : vector<64x1xf32> to vector<64x48xf32>
    %256 = arith.mulf %251, %255 : vector<64x48xf32>
    %257 = vector.broadcast %237 : vector<1x48xf32> to vector<64x48xf32>
    %258 = arith.mulf %256, %257 : vector<64x48xf32>
    %259 = vector.broadcast %238 : vector<1x48xf32> to vector<64x48xf32>
    %260 = arith.addf %258, %259 : vector<64x48xf32>
    %261 = arith.negf %260 : vector<64x48xf32>
    %262 = math.exp %261 : vector<64x48xf32>
    %cst_66 = arith.constant 1.000000e+00 : f32
    %263 = vector.broadcast %cst_66 : f32 to vector<64x48xf32>
    %264 = arith.addf %263, %262 : vector<64x48xf32>
    %265 = arith.divf %263, %264 : vector<64x48xf32>
    %266 = arith.mulf %260, %265 : vector<64x48xf32>
    %267 = arith.addf %266, %180 : vector<64x48xf32>
    %c176 = arith.constant 176 : index
    %c0_67 = arith.constant 0 : index
    %268 = vector.load %arg4[%c176, %c0_67] : memref<376x128xbf16, #tpu.memory_space<vmem>>, vector<48x48xbf16>
    %269 = arith.truncf %267 : vector<64x48xf32> to vector<64x48xbf16>
    %cst_68 = arith.constant dense<0.000000e+00> : vector<64x48xf32>
    %270 = tpu.matmul %269, %268, %cst_68 {dimension_numbers = #tpu.dot_dimension_numbers<[1], [0], [0], [1], [0, 0, 1, 1], [], []>} : vector<64x48xbf16>, vector<48x48xbf16>, vector<64x48xf32> -> vector<64x48xf32>
    %c224 = arith.constant 224 : index
    %c0_69 = arith.constant 0 : index
    %271 = vector.load %arg4[%c224, %c0_69] : memref<376x128xbf16, #tpu.memory_space<vmem>>, vector<24x48xbf16>
    %272 = arith.truncf %67 : vector<64x24xf32> to vector<64x24xbf16>
    %cst_70 = arith.constant dense<0.000000e+00> : vector<64x48xf32>
    %273 = tpu.matmul %272, %271, %cst_70 {dimension_numbers = #tpu.dot_dimension_numbers<[1], [0], [0], [1], [0, 0, 1, 1], [], []>} : vector<64x24xbf16>, vector<24x48xbf16>, vector<64x48xf32> -> vector<64x48xf32>
    %274 = arith.addf %270, %273 : vector<64x48xf32>
    %275 = vector.extract_strided_slice %6 {offsets = [17, 0], sizes = [1, 48], strides = [1, 1]} : vector<24x128xf32> to vector<1x48xf32>
    %276 = vector.broadcast %275 : vector<1x48xf32> to vector<64x48xf32>
    %277 = arith.addf %274, %276 : vector<64x48xf32>
    %278 = vector.extract_strided_slice %6 {offsets = [18, 0], sizes = [1, 48], strides = [1, 1]} : vector<24x128xf32> to vector<1x48xf32>
    %279 = vector.extract_strided_slice %6 {offsets = [19, 0], sizes = [1, 48], strides = [1, 1]} : vector<24x128xf32> to vector<1x48xf32>
    %cst_71 = arith.constant dense<0.000000e+00> : vector<64xf32>
    %280 = vector.multi_reduction <add>, %277, %cst_71 [1] : vector<64x48xf32> to vector<64xf32>
    %281 = vector.shape_cast %280 : vector<64xf32> to vector<64x1xf32>
    %cst_72 = arith.constant 4.800000e+01 : f32
    %282 = vector.broadcast %cst_72 : f32 to vector<64x1xf32>
    %283 = arith.divf %281, %282 : vector<64x1xf32>
    %284 = vector.broadcast %283 : vector<64x1xf32> to vector<64x48xf32>
    %285 = arith.subf %277, %284 : vector<64x48xf32>
    %286 = arith.mulf %285, %285 : vector<64x48xf32>
    %cst_73 = arith.constant dense<0.000000e+00> : vector<64xf32>
    %287 = vector.multi_reduction <add>, %286, %cst_73 [1] : vector<64x48xf32> to vector<64xf32>
    %288 = vector.shape_cast %287 : vector<64xf32> to vector<64x1xf32>
    %cst_74 = arith.constant 4.800000e+01 : f32
    %289 = vector.broadcast %cst_74 : f32 to vector<64x1xf32>
    %290 = arith.divf %288, %289 : vector<64x1xf32>
    %291 = vector.broadcast %283 : vector<64x1xf32> to vector<64x48xf32>
    %292 = arith.subf %277, %291 : vector<64x48xf32>
    %cst_75 = arith.constant 9.99999974E-6 : f32
    %293 = vector.broadcast %cst_75 : f32 to vector<64x1xf32>
    %294 = arith.addf %290, %293 : vector<64x1xf32>
    %295 = math.rsqrt %294 : vector<64x1xf32>
    %296 = vector.broadcast %295 : vector<64x1xf32> to vector<64x48xf32>
    %297 = arith.mulf %292, %296 : vector<64x48xf32>
    %298 = vector.broadcast %278 : vector<1x48xf32> to vector<64x48xf32>
    %299 = arith.mulf %297, %298 : vector<64x48xf32>
    %300 = vector.broadcast %279 : vector<1x48xf32> to vector<64x48xf32>
    %301 = arith.addf %299, %300 : vector<64x48xf32>
    %302 = arith.negf %301 : vector<64x48xf32>
    %303 = math.exp %302 : vector<64x48xf32>
    %cst_76 = arith.constant 1.000000e+00 : f32
    %304 = vector.broadcast %cst_76 : f32 to vector<64x48xf32>
    %305 = arith.addf %304, %303 : vector<64x48xf32>
    %306 = arith.divf %304, %305 : vector<64x48xf32>
    %307 = arith.mulf %301, %306 : vector<64x48xf32>
    %c248 = arith.constant 248 : index
    %c0_77 = arith.constant 0 : index
    %308 = vector.load %arg4[%c248, %c0_77] : memref<376x128xbf16, #tpu.memory_space<vmem>>, vector<48x24xbf16>
    %309 = arith.truncf %307 : vector<64x48xf32> to vector<64x48xbf16>
    %cst_78 = arith.constant dense<0.000000e+00> : vector<64x24xf32>
    %310 = tpu.matmul %309, %308, %cst_78 {dimension_numbers = #tpu.dot_dimension_numbers<[1], [0], [0], [1], [0, 0, 1, 1], [], []>} : vector<64x48xbf16>, vector<48x24xbf16>, vector<64x24xf32> -> vector<64x24xf32>
    %311 = vector.extract_strided_slice %6 {offsets = [20, 0], sizes = [1, 24], strides = [1, 1]} : vector<24x128xf32> to vector<1x24xf32>
    %312 = vector.broadcast %311 : vector<1x24xf32> to vector<64x24xf32>
    %313 = arith.addf %310, %312 : vector<64x24xf32>
    %314 = vector.extract_strided_slice %6 {offsets = [21, 0], sizes = [1, 24], strides = [1, 1]} : vector<24x128xf32> to vector<1x24xf32>
    %315 = vector.extract_strided_slice %6 {offsets = [22, 0], sizes = [1, 24], strides = [1, 1]} : vector<24x128xf32> to vector<1x24xf32>
    %cst_79 = arith.constant dense<0.000000e+00> : vector<64xf32>
    %316 = vector.multi_reduction <add>, %313, %cst_79 [1] : vector<64x24xf32> to vector<64xf32>
    %317 = vector.shape_cast %316 : vector<64xf32> to vector<64x1xf32>
    %cst_80 = arith.constant 2.400000e+01 : f32
    %318 = vector.broadcast %cst_80 : f32 to vector<64x1xf32>
    %319 = arith.divf %317, %318 : vector<64x1xf32>
    %320 = vector.broadcast %319 : vector<64x1xf32> to vector<64x24xf32>
    %321 = arith.subf %313, %320 : vector<64x24xf32>
    %322 = arith.mulf %321, %321 : vector<64x24xf32>
    %cst_81 = arith.constant dense<0.000000e+00> : vector<64xf32>
    %323 = vector.multi_reduction <add>, %322, %cst_81 [1] : vector<64x24xf32> to vector<64xf32>
    %324 = vector.shape_cast %323 : vector<64xf32> to vector<64x1xf32>
    %cst_82 = arith.constant 2.400000e+01 : f32
    %325 = vector.broadcast %cst_82 : f32 to vector<64x1xf32>
    %326 = arith.divf %324, %325 : vector<64x1xf32>
    %327 = vector.broadcast %319 : vector<64x1xf32> to vector<64x24xf32>
    %328 = arith.subf %313, %327 : vector<64x24xf32>
    %cst_83 = arith.constant 9.99999974E-6 : f32
    %329 = vector.broadcast %cst_83 : f32 to vector<64x1xf32>
    %330 = arith.addf %326, %329 : vector<64x1xf32>
    %331 = math.rsqrt %330 : vector<64x1xf32>
    %332 = vector.broadcast %331 : vector<64x1xf32> to vector<64x24xf32>
    %333 = arith.mulf %328, %332 : vector<64x24xf32>
    %334 = vector.broadcast %314 : vector<1x24xf32> to vector<64x24xf32>
    %335 = arith.mulf %333, %334 : vector<64x24xf32>
    %336 = vector.broadcast %315 : vector<1x24xf32> to vector<64x24xf32>
    %337 = arith.addf %335, %336 : vector<64x24xf32>
    %338 = arith.negf %337 : vector<64x24xf32>
    %339 = math.exp %338 : vector<64x24xf32>
    %cst_84 = arith.constant 1.000000e+00 : f32
    %340 = vector.broadcast %cst_84 : f32 to vector<64x24xf32>
    %341 = arith.addf %340, %339 : vector<64x24xf32>
    %342 = arith.divf %340, %341 : vector<64x24xf32>
    %343 = arith.mulf %337, %342 : vector<64x24xf32>
    %c296 = arith.constant 296 : index
    %c0_85 = arith.constant 0 : index
    %344 = vector.load %arg4[%c296, %c0_85] : memref<376x128xbf16, #tpu.memory_space<vmem>>, vector<24x128xbf16>
    %345 = arith.truncf %343 : vector<64x24xf32> to vector<64x24xbf16>
    %cst_86 = arith.constant dense<0.000000e+00> : vector<64x128xf32>
    %346 = tpu.matmul %345, %344, %cst_86 {dimension_numbers = #tpu.dot_dimension_numbers<[1], [0], [0], [1], [0, 0, 1, 1], [], []>} : vector<64x24xbf16>, vector<24x128xbf16>, vector<64x128xf32> -> vector<64x128xf32>
    %347 = vector.extract_strided_slice %6 {offsets = [23, 0], sizes = [1, 128], strides = [1, 1]} : vector<24x128xf32> to vector<1x128xf32>
    %348 = vector.broadcast %347 : vector<1x128xf32> to vector<64x128xf32>
    %349 = arith.addf %346, %348 : vector<64x128xf32>
    %c0_87 = arith.constant 0 : index
    %c0_88 = arith.constant 0 : index
    %c0_89 = arith.constant 0 : index
    %350 = vector.load %arg5[%c0_87, %c0_88, %c0_89] : memref<1x64x128xf32, #tpu.memory_space<vmem>>, vector<1x64x128xf32>
    %351 = vector.shape_cast %350 : vector<1x64x128xf32> to vector<64x128xf32>
    %352 = vector.shape_cast %349 : vector<64x128xf32> to vector<1x64x128xf32>
    tpu.vector_store %arg5[%c0_87, %c0_88, %c0_89], %352 {strides = array<i32>} : memref<1x64x128xf32, #tpu.memory_space<vmem>>, vector<1x64x128xf32>,
    return
  }
  func.func @transform_0(%arg0: i32) -> (i32, i32, i32) {
    %c0_i32 = arith.constant 0 : i32
    %c0_i32_0 = arith.constant 0 : i32
    %c0_i32_1 = arith.constant 0 : i32
    return %arg0, %c0_i32, %c0_i32_0 : i32, i32, i32
  }
  func.func @transform_1(%arg0: i32) -> (i32, i32, i32) {
    %c0_i32 = arith.constant 0 : i32
    %c0_i32_0 = arith.constant 0 : i32
    %c0_i32_1 = arith.constant 0 : i32
    return %arg0, %c0_i32, %c0_i32_0 : i32, i32, i32
  }
  func.func @transform_2(%arg0: i32) -> (i32, i32) {
    %c0_i32 = arith.constant 0 : i32
    %c0_i32_0 = arith.constant 0 : i32
    %c0_i32_1 = arith.constant 0 : i32
    return %c0_i32, %c0_i32_0 : i32, i32
  }
  func.func @transform_3(%arg0: i32) -> (i32, i32) {
    %c0_i32 = arith.constant 0 : i32
    %c0_i32_0 = arith.constant 0 : i32
    %c0_i32_1 = arith.constant 0 : i32
    return %c0_i32, %c0_i32_0 : i32, i32
  }
  func.func @transform_4(%arg0: i32) -> (i32, i32, i32) {
    %c0_i32 = arith.constant 0 : i32
    %c0_i32_0 = arith.constant 0 : i32
    %c0_i32_1 = arith.constant 0 : i32
    return %arg0, %c0_i32, %c0_i32_0 : i32, i32, i32
  }
}

</mosaic_0001>

<llo_original>
// kernel: improved_gnn_forward.1
$region0: #{improved_gnn_forward.1}
  #allocation0 [shape = 'u32[]', space=smem, size = 0x4, offset = 0x4, fixed_abs, tag = 'smem constant byte address 0x4 - core index']
  #allocation1 [shape = 'u32[144,128]{1,0:T(1,128)}', space=vmem, size = 0x12000, scoped, tag = 'internal scratch']
  %s0 = inlined_call_operand.vmem [shape: f32[8,64,16], index: 0, kind: input, shape index: {}]
  %s1 = inlined_call_operand.vmem [shape: bf16[8,64,64], index: 1, kind: input, shape index: {}]
  %s2 = inlined_call_operand.vmem [shape: f32[24,128], index: 2, kind: input, shape index: {}]
  %s3 = inlined_call_operand.vmem [shape: bf16[376,128], index: 3, kind: input, shape index: {}]
  %s4 = inlined_call_operand.vmem [shape: f32[8,64,128], index: 4, kind: output, shape index: {}]
  %s5 = sld [smem:[#allocation0]]
  $region49: #{improved_gnn_forward.1} parent=0
    _
  %s7 = ssub.s32 1, %s5
  %s8 = scalar_select 0, %s7, %s5
  loop: start=0, step=1, limit=10
  $region2: #{improved_gnn_forward.1} parent=0 // loop_pre_header
    _
  $region3: #{improved_gnn_forward.1} parent=0 // loop_header
    %s10 = sphi 0, %s14
    %p11 = scmp.ge.s32.totalorder %s10, 10
    %s20 = sphi 0, %s22
    %s23 = sphi 0, %s20
    %s24 = sphi 0, %s23
    %s40 = sphi 0, %s24
    %s46 = sphi 0, %s48
    %s49 = sphi 0, %s46
    %s50 = sphi 0, %s49
    %s66 = sphi 0, %s50
    %s70 = sphi 0, %s70
    %s72 = sphi 0, %s70
    %s73 = sphi 0, %s72
    %s87 = sphi 0, %s73
    %s91 = sphi 0, %s91
    %s93 = sphi 0, %s91
    %s94 = sphi 0, %s93
    %s108 = sphi 0, %s94
    %s114 = sphi 0, %s116
    %s117 = sphi 0, %s114
    %s118 = sphi 0, %s117
    %s134 = sphi 0, %s118
  $region4: #{improved_gnn_forward.1} parent=0 // loop_header_branch
    %13 = sbr.rel (%p11) target = $region8
  $region5: #{improved_gnn_forward.1} parent=0 // loop_body
    %s15 = ssub.s32 %s10, 1
    %s16 = ssub.s32 %s10, 2
    %s17 = sadd.s32 %s10, 1
    %s18 = ssub.s32 %s10, %s17
    %p19 = scmp.eq.s32.totalorder %s18, 0
    %s21 = sadd.s32 %s20, 1
    %s22 = scalar_select %p19, %s20, %s21
    %p25 = pneg %p19
    %p26 = scmp.eq.s32.totalorder %s10, 7
    %p27 = por %p25, %p26
    %p28 = scmp.ne.s32.totalorder %s20, %s23
    %p29 = scmp.eq.s32.totalorder %s10, 0
    %p30 = por %p28, %p29
    %p31 = scmp.ne.s32.totalorder %s20, %s23
    %p32 = scmp.eq.s32.totalorder %s15, 7
    %p33 = por %p31, %p32
    %p34 = scmp.ne.s32.totalorder %s23, %s24
    %p35 = scmp.eq.s32.totalorder %s15, 0
    %p36 = por %p34, %p35
    %p37 = scmp.ne.s32.totalorder %s23, %s24
    %p38 = scmp.eq.s32.totalorder %s16, 7
    %p39 = por %p37, %p38
    %p41 = scmp.ne.s32.totalorder %s24, %s40
    %p42 = scmp.eq.s32.totalorder %s16, 0
    %p43 = por %p41, %p42
    %s44 = ssub.s32 %s10, %s17
    %p45 = scmp.eq.s32.totalorder %s44, 0
    %s47 = sadd.s32 %s46, 1
    %s48 = scalar_select %p45, %s46, %s47
    %p51 = pneg %p45
    %p52 = scmp.eq.s32.totalorder %s10, 7
    %p53 = por %p51, %p52
    %p54 = scmp.ne.s32.totalorder %s46, %s49
    %p55 = scmp.eq.s32.totalorder %s10, 0
    %p56 = por %p54, %p55
    %p57 = scmp.ne.s32.totalorder %s46, %s49
    %p58 = scmp.eq.s32.totalorder %s15, 7
    %p59 = por %p57, %p58
    %p60 = scmp.ne.s32.totalorder %s49, %s50
    %p61 = scmp.eq.s32.totalorder %s15, 0
    %p62 = por %p60, %p61
    %p63 = scmp.ne.s32.totalorder %s49, %s50
    %p64 = scmp.eq.s32.totalorder %s16, 7
    %p65 = por %p63, %p64
    %p67 = scmp.ne.s32.totalorder %s50, %s66
    %p68 = scmp.eq.s32.totalorder %s16, 0
    %p69 = por %p67, %p68
    %s71 = sadd.s32 %s70, 1
    %p74 = scmp.eq.s32.totalorder %s10, 7
    %p75 = scmp.ne.s32.totalorder %s70, %s72
    %p76 = scmp.eq.s32.totalorder %s10, 0
    %p77 = por %p75, %p76
    %p78 = scmp.ne.s32.totalorder %s70, %s72
    %p79 = scmp.eq.s32.totalorder %s15, 7
    %p80 = por %p78, %p79
    %p81 = scmp.ne.s32.totalorder %s72, %s73
    %p82 = scmp.eq.s32.totalorder %s15, 0
    %p83 = por %p81, %p82
    %p84 = scmp.ne.s32.totalorder %s72, %s73
    %p85 = scmp.eq.s32.totalorder %s16, 7
    %p86 = por %p84, %p85
    %p88 = scmp.ne.s32.totalorder %s73, %s87
    %p89 = scmp.eq.s32.totalorder %s16, 0
    %p90 = por %p88, %p89
    %s92 = sadd.s32 %s91, 1
    %p95 = scmp.eq.s32.totalorder %s10, 7
    %p96 = scmp.ne.s32.totalorder %s91, %s93
    %p97 = scmp.eq.s32.totalorder %s10, 0
    %p98 = por %p96, %p97
    %p99 = scmp.ne.s32.totalorder %s91, %s93
    %p100 = scmp.eq.s32.totalorder %s15, 7
    %p101 = por %p99, %p100
    %p102 = scmp.ne.s32.totalorder %s93, %s94
    %p103 = scmp.eq.s32.totalorder %s15, 0
    %p104 = por %p102, %p103
    %p105 = scmp.ne.s32.totalorder %s93, %s94
    %p106 = scmp.eq.s32.totalorder %s16, 7
    %p107 = por %p105, %p106
    %p109 = scmp.ne.s32.totalorder %s94, %s108
    %p110 = scmp.eq.s32.totalorder %s16, 0
    %p111 = por %p109, %p110
    %s112 = ssub.s32 %s10, %s17
    %p113 = scmp.eq.s32.totalorder %s112, 0
    %s115 = sadd.s32 %s114, 1
    %s116 = scalar_select %p113, %s114, %s115
    %p119 = pneg %p113
    %p120 = scmp.eq.s32.totalorder %s10, 7
    %p121 = por %p119, %p120
    %p122 = scmp.ne.s32.totalorder %s114, %s117
    %p123 = scmp.eq.s32.totalorder %s10, 0
    %p124 = por %p122, %p123
    %p125 = scmp.ne.s32.totalorder %s114, %s117
    %p126 = scmp.eq.s32.totalorder %s15, 7
    %p127 = por %p125, %p126
    %p128 = scmp.ne.s32.totalorder %s117, %s118
    %p129 = scmp.eq.s32.totalorder %s15, 0
    %p130 = por %p128, %p129
    %p131 = scmp.ne.s32.totalorder %s117, %s118
    %p132 = scmp.eq.s32.totalorder %s16, 7
    %p133 = por %p131, %p132
    %p135 = scmp.ne.s32.totalorder %s118, %s134
    %p136 = scmp.eq.s32.totalorder %s16, 0
    %p137 = por %p135, %p136
    %p138 = scmp.le.s32.totalorder 1, %s10
    %p139 = scmp.lt.s32.totalorder %s10, 9
    %p140 = pnand %p138, %p139
    %p141 = pneg %p140
    // Predicated region
    $region9: #{improved_gnn_forward.1} parent=5 // pred_check
      _
    $region10: #{improved_gnn_forward.1} parent=5 // pred_check_branch
      %143 = sbr.rel (%p140) target = $region12
    $region11: #{improved_gnn_forward.1} parent=5 // pred_region
      %s144 = ssub.s32 %s10, 1
      // Predicated region
      $region13: #{improved_gnn_forward.1} parent=11 // pred_check
        %p145 = pneg %p83
      $region14: #{improved_gnn_forward.1} parent=11 // pred_check_branch
        %147 = sbr.rel (%p145) target = $region16
      $region15: #{improved_gnn_forward.1} parent=11 // pred_region
        _
      $region16: #{improved_gnn_forward.1} parent=11 // pred_fallthru
        _
      // Predicated region
      $region17: #{improved_gnn_forward.1} parent=11 // pred_check
        %p148 = pneg %p104
      $region18: #{improved_gnn_forward.1} parent=11 // pred_check_branch
        %150 = sbr.rel (%p148) target = $region20
      $region19: #{improved_gnn_forward.1} parent=11 // pred_region
        _
      $region20: #{improved_gnn_forward.1} parent=11 // pred_fallthru
        _
    $region12: #{improved_gnn_forward.1} parent=5 // pred_fallthru
      _
    %p151 = scmp.lt.s32.totalorder %s10, 8
    // Predicated region
    $region21: #{improved_gnn_forward.1} parent=5 // pred_check
      %p152 = pneg %p151
    $region22: #{improved_gnn_forward.1} parent=5 // pred_check_branch
      %154 = sbr.rel (%p152) target = $region24
    $region23: #{improved_gnn_forward.1} parent=5 // pred_region
      // Predicated region
      $region25: #{improved_gnn_forward.1} parent=23 // pred_check
        %p155 = pneg %p30
      $region26: #{improved_gnn_forward.1} parent=23 // pred_check_branch
        %157 = sbr.rel (%p155) target = $region28
      $region27: #{improved_gnn_forward.1} parent=23 // pred_region
        %p158 = scmp.lt.s32.totalorder %s10, 7
        %s159 = scalar_select %p158, %s10, 7
        %s160 = smul.addr %s159, 8
        %s161 = smul.addr %s160, 8
        %s162 = scalar_lea.vmem %s0, %s161
      $region28: #{improved_gnn_forward.1} parent=23 // pred_fallthru
        _
      // Predicated region
      $region29: #{improved_gnn_forward.1} parent=23 // pred_check
        %p163 = pneg %p56
      $region30: #{improved_gnn_forward.1} parent=23 // pred_check_branch
        %165 = sbr.rel (%p163) target = $region32
      $region31: #{improved_gnn_forward.1} parent=23 // pred_region
        %p166 = scmp.lt.s32.totalorder %s10, 7
        %s167 = scalar_select %p166, %s10, 7
        %s168 = smul.addr %s167, 8
        %s169 = smul.addr %s168, 4
        %s170 = scalar_lea.vmem %s1, %s169
      $region32: #{improved_gnn_forward.1} parent=23 // pred_fallthru
        _
    $region24: #{improved_gnn_forward.1} parent=5 // pred_fallthru
      _
    %p171 = scmp.le.s32.totalorder 1, %s10
    %p172 = scmp.lt.s32.totalorder %s10, 9
    %p173 = pnand %p171, %p172
    %p174 = pneg %p173
    // Predicated region
    $region33: #{improved_gnn_forward.1} parent=5 // pred_check
      _
    $region34: #{improved_gnn_forward.1} parent=5 // pred_check_branch
      %176 = sbr.rel (%p173) target = $region36
    $region35: #{improved_gnn_forward.1} parent=5 // pred_region
      %s177 = ssub.s32 %s10, 1
      %p178 = scmp.lt.s32.totalorder %s15, 7
      %s179 = scalar_select %p178, %s15, 7
      %s180 = smul.addr %s179, 8
      %s181 = smul.addr %s180, 8
      %s182 = scalar_lea.vmem %s0, %s181
      %p183 = pneg %p36
      %p184 = pneg %p33
      %p185 = scmp.lt.s32.totalorder %s15, 7
      %s186 = scalar_select %p185, %s15, 7
      %s187 = smul.addr %s186, 8
      %s188 = smul.addr %s187, 4
      %s189 = scalar_lea.vmem %s1, %s188
      %p190 = pneg %p62
      %p191 = pneg %p59
      %p192 = pneg %p83
      %p193 = pneg %p80
      %p194 = pneg %p104
      %p195 = pneg %p101
      %p196 = pneg %p130
      %p197 = pneg %p127
      %p198 = scmp.lt.s32.totalorder %s15, 7
      %s199 = scalar_select %p198, %s15, 7
      %s200 = smul.addr %s199, 8
      %s201 = smul.addr %s200, 8
      %s202 = scalar_lea.vmem %s4, %s201
      %p203 = scmp.lt.s32.totalorder %s15, 7
      %s204 = scalar_select %p203, %s15, 7
      %s205 = smul.addr %s204, 8
      %s206 = smul.addr %s205, 8
      %s207 = scalar_lea.vmem %s0, %s206
      %p208 = scmp.lt.s32.totalorder %s15, 7
      %s209 = scalar_select %p208, %s15, 7
      %s210 = smul.addr %s209, 8
      %s211 = smul.addr %s210, 4
      %s212 = scalar_lea.vmem %s1, %s211
      %p213 = scmp.lt.s32.totalorder %s15, 7
      %s214 = scalar_select %p213, %s15, 7
      %s215 = smul.addr %s214, 8
      %s216 = smul.addr %s215, 8
      %s217 = scalar_lea.vmem %s4, %s216
      %v221 = vld [vmem:[%s207] sm:$0xff]
      %v222 = vld [vmem:[%s207 + $0x8] sm:$0xff]
      %v223 = vld [vmem:[%s207 + $0x10] sm:$0xff]
      %v224 = vld [vmem:[%s207 + $0x18] sm:$0xff]
      %v225 = vld [vmem:[%s207 + $0x20] sm:$0xff]
      %v226 = vld [vmem:[%s207 + $0x28] sm:$0xff]
      %v227 = vld [vmem:[%s207 + $0x30] sm:$0xff]
      %v228 = vld [vmem:[%s207 + $0x38] sm:$0xff]
      %v229 = vld [vmem:[%s212] sm:$0xf]
      %v230 = vld [vmem:[%s212 + $0x4] sm:$0xf]
      %v231 = vld [vmem:[%s212 + $0x8] sm:$0xf]
      %v232 = vld [vmem:[%s212 + $0xc] sm:$0xf]
      %v233 = vld [vmem:[%s212 + $0x10] sm:$0xf]
      %v234 = vld [vmem:[%s212 + $0x14] sm:$0xf]
      %v235 = vld [vmem:[%s212 + $0x18] sm:$0xf]
      %v236 = vld [vmem:[%s212 + $0x1c] sm:$0xf]
      %vm237 = vcmp.gt.bf16.partialorder %v229, 0
      %vm238 = vcmp.gt.bf16.partialorder %v230, 0
      %vm239 = vcmp.gt.bf16.partialorder %v231, 0
      %vm240 = vcmp.gt.bf16.partialorder %v232, 0
      %vm241 = vcmp.gt.bf16.partialorder %v233, 0
      %vm242 = vcmp.gt.bf16.partialorder %v234, 0
      %vm243 = vcmp.gt.bf16.partialorder %v235, 0
      %vm244 = vcmp.gt.bf16.partialorder %v236, 0
      %v245 = vld [vmem:[%s2] sm:$0xff]
      %v246 = vld [vmem:[%s2 + $0x8] sm:$0xff]
      %v247 = vld [vmem:[%s2 + $0x10] sm:$0xff]
      %vm248 = vcmask 130048
      %v249 = vsel %vm248, %v221, 0.0
      %250 = vadd.xlane.f32.xlu0 %v249
      %v251 = vpop.xlane.xlu0 %250
      %v252 = vsel %vm248, %v222, 0.0
      %253 = vadd.xlane.f32.xlu0 %v252
      %v254 = vpop.xlane.xlu0 %253
      %v255 = vsel %vm248, %v223, 0.0
      %256 = vadd.xlane.f32.xlu0 %v255
      %v257 = vpop.xlane.xlu0 %256
      %v258 = vsel %vm248, %v224, 0.0
      %259 = vadd.xlane.f32.xlu0 %v258
      %v260 = vpop.xlane.xlu0 %259
      %v261 = vsel %vm248, %v225, 0.0
      %262 = vadd.xlane.f32.xlu0 %v261
      %v263 = vpop.xlane.xlu0 %262
      %v264 = vsel %vm248, %v226, 0.0
      %265 = vadd.xlane.f32.xlu0 %v264
      %v266 = vpop.xlane.xlu0 %265
      %v267 = vsel %vm248, %v227, 0.0
      %268 = vadd.xlane.f32.xlu0 %v267
      %v269 = vpop.xlane.xlu0 %268
      %v270 = vsel %vm248, %v228, 0.0
      %271 = vadd.xlane.f32.xlu0 %v270
      %v272 = vpop.xlane.xlu0 %271
      %v273 = vrcp.pop 16.0
      %v274 = vmul.f32 %v251, %v273
      %v275 = vmul.f32 %v254, %v273
      %v276 = vmul.f32 %v257, %v273
      %v277 = vmul.f32 %v260, %v273
      %v278 = vmul.f32 %v263, %v273
      %v279 = vmul.f32 %v266, %v273
      %v280 = vmul.f32 %v269, %v273
      %v281 = vmul.f32 %v272, %v273
      %v282 = vsub.f32 %v221, %v274
      %v283 = vsub.f32 %v222, %v275
      %v284 = vsub.f32 %v223, %v276
      %v285 = vsub.f32 %v224, %v277
      %v286 = vsub.f32 %v225, %v278
      %v287 = vsub.f32 %v226, %v279
      %v288 = vsub.f32 %v227, %v280
      %v289 = vsub.f32 %v228, %v281
      %v290 = vmul.f32 %v282, %v282
      %v291 = vmul.f32 %v283, %v283
      %v292 = vmul.f32 %v284, %v284
      %v293 = vmul.f32 %v285, %v285
      %v294 = vmul.f32 %v286, %v286
      %v295 = vmul.f32 %v287, %v287
      %v296 = vmul.f32 %v288, %v288
      %v297 = vmul.f32 %v289, %v289
      %v298 = vsel %vm248, %v290, 0.0
      %299 = vadd.xlane.f32.xlu0 %v298
      %v300 = vpop.xlane.xlu0 %299
      %v301 = vsel %vm248, %v291, 0.0
      %302 = vadd.xlane.f32.xlu0 %v301
      %v303 = vpop.xlane.xlu0 %302
      %v304 = vsel %vm248, %v292, 0.0
      %305 = vadd.xlane.f32.xlu0 %v304
      %v306 = vpop.xlane.xlu0 %305
      %v307 = vsel %vm248, %v293, 0.0
      %308 = vadd.xlane.f32.xlu0 %v307
      %v309 = vpop.xlane.xlu0 %308
      %v310 = vsel %vm248, %v294, 0.0
      %311 = vadd.xlane.f32.xlu0 %v310
      %v312 = vpop.xlane.xlu0 %311
      %v313 = vsel %vm248, %v295, 0.0
      %314 = vadd.xlane.f32.xlu0 %v313
      %v315 = vpop.xlane.xlu0 %314
      %v316 = vsel %vm248, %v296, 0.0
      %317 = vadd.xlane.f32.xlu0 %v316
      %v318 = vpop.xlane.xlu0 %317
      %v319 = vsel %vm248, %v297, 0.0
      %320 = vadd.xlane.f32.xlu0 %v319
      %v321 = vpop.xlane.xlu0 %320
      %v322 = vmul.f32 %v300, %v273
      %v323 = vmul.f32 %v303, %v273
      %v324 = vmul.f32 %v306, %v273
      %v325 = vmul.f32 %v309, %v273
      %v326 = vmul.f32 %v312, %v273
      %v327 = vmul.f32 %v315, %v273
      %v328 = vmul.f32 %v318, %v273
      %v329 = vmul.f32 %v321, %v273
      %v330 = vadd.f32 %v322, 1e-05
      %v331 = vadd.f32 %v323, 1e-05
      %v332 = vadd.f32 %v324, 1e-05
      %v333 = vadd.f32 %v325, 1e-05
      %v334 = vadd.f32 %v326, 1e-05
      %v335 = vadd.f32 %v327, 1e-05
      %v336 = vadd.f32 %v328, 1e-05
      %v337 = vadd.f32 %v329, 1e-05
      %v338 = vrsqrt.pop %v330
      %v339 = vrsqrt.pop %v331
      %v340 = vrsqrt.pop %v332
      %v341 = vrsqrt.pop %v333
      %v342 = vrsqrt.pop %v334
      %v343 = vrsqrt.pop %v335
      %v344 = vrsqrt.pop %v336
      %v345 = vrsqrt.pop %v337
      %v346 = vmul.f32 %v282, %v338
      %v347 = vmul.f32 %v283, %v339
      %v348 = vmul.f32 %v284, %v340
      %v349 = vmul.f32 %v285, %v341
      %v350 = vmul.f32 %v286, %v342
      %v351 = vmul.f32 %v287, %v343
      %v352 = vmul.f32 %v288, %v344
      %v353 = vmul.f32 %v289, %v345
      %v354 = vlaneseq
      %v355 = vshrl.u32 %v354, 7
      %v356 = vsub.s32 0, %v355
      %v357 = vrot.slane %v245, %v356
      %v358 = vmul.f32 %v346, %v357
      %v359 = vmul.f32 %v347, %v357
      %v360 = vmul.f32 %v348, %v357
      %v361 = vmul.f32 %v349, %v357
      %v362 = vmul.f32 %v350, %v357
      %v363 = vmul.f32 %v351, %v357
      %v364 = vmul.f32 %v352, %v357
      %v365 = vmul.f32 %v353, %v357
      %v366 = vlaneseq
      %v367 = vshrl.u32 %v366, 7
      %v368 = vsub.s32 1, %v367
      %v369 = vrot.slane %v245, %v368
      %v370 = vadd.f32 %v358, %v369
      %v371 = vadd.f32 %v359, %v369
      %v372 = vadd.f32 %v360, %v369
      %v373 = vadd.f32 %v361, %v369
      %v374 = vadd.f32 %v362, %v369
      %v375 = vadd.f32 %v363, %v369
      %v376 = vadd.f32 %v364, %v369
      %v377 = vadd.f32 %v365, %v369
      %v378 = vld [vmem:[%s3] sm:$0xf]
      %v379 = vld [vmem:[%s3 + $0x4] sm:$0xf]
      %v380 = vpack.c.bf16 %v371, %v370
      %v381 = vpack.c.bf16 %v373, %v372
      %v382 = vpack.c.bf16 %v375, %v374
      %v383 = vpack.c.bf16 %v377, %v376
      %v386 = vunpack.c.l.b16 %v378
      %v387 = vunpack.c.l.b16 %v379
      %v388 = vpack.c.b16 %v387, %v386
      %v391 = vsel %vm248, %v380, 0
      %v394 = vsel %vm248, %v381, 0
      %v397 = vsel %vm248, %v382, 0
      %v400 = vsel %vm248, %v383, 0
      %402 = vmatprep.subr.bf16.mxu0 0
      %403 = vmatpush1.bf16.msra.mxu0 0
      %404 = vmatprep.subr.bf16.mxu0 0
      %405 = vmatpush1.bf16.msra.mxu0 0
      %406 = vmatprep.subr.bf16.mxu0 0
      %407 = vmatpush1.bf16.msra.mxu0 0
      %408 = vmatprep.subr.bf16.mxu0 0
      %409 = vmatpush1.bf16.msra.mxu0 0
      %410 = vmatprep.subr.bf16.mxu0 0
      %411 = vmatpush1.bf16.msra.mxu0 0
      %412 = vmatprep.subr.bf16.mxu0 0
      %413 = vmatpush1.bf16.msra.mxu0 0
      %414 = vmatprep.subr.bf16.mxu0 0
      %415 = vmatpush1.bf16.msra.mxu0 0
      %416 = vmatprep.subr.bf16.mxu0 0
      %417 = vmatpush1.bf16.msra.mxu0 %v388
      %418 = vmatprep.subr.bf16.mxu0 0
      %419 = vmatpush2.bf16.msra.mxu0 0
      %420 = vmatprep.subr.bf16.mxu0 0
      %421 = vmatpush2.bf16.msra.mxu0 0
      %422 = vmatprep.subr.bf16.mxu0 0
      %423 = vmatpush2.bf16.msra.mxu0 0
      %424 = vmatprep.subr.bf16.mxu0 0
      %425 = vmatpush2.bf16.msra.mxu0 0
      %426 = vmatprep.subr.bf16.mxu0 0
      %427 = vmatpush2.bf16.msra.mxu0 0
      %428 = vmatprep.subr.bf16.mxu0 0
      %429 = vmatpush2.bf16.msra.mxu0 0
      %430 = vmatprep.subr.bf16.mxu0 0
      %431 = vmatpush2.bf16.msra.mxu0 0
      %432 = vmatprep.subr.bf16.mxu0 0
      %433 = vmatpush2.bf16.msra.mxu0 0
      %434 = vmatprep.mubr.bf16.mxu0 0
      %435 = vmatmul.mubr.bf16.gmra.mxu0 %v391
      %v436 = vpop.f32.mrf.mxu0
      %v437 = vadd.f32 0.0, %v436
      %v438 = vpop.f32.mrf.mxu0
      %v439 = vpop.f32.mrf.mxu0
      %v440 = vadd.f32 0.0, %v439
      %v441 = vpop.f32.mrf.mxu0
      %442 = vmatprep.mubr.bf16.mxu0 0
      %443 = vmatmul.mubr.bf16.gmra.mxu0 %v394
      %v444 = vpop.f32.mrf.mxu0
      %v445 = vadd.f32 0.0, %v444
      %v446 = vpop.f32.mrf.mxu0
      %v447 = vpop.f32.mrf.mxu0
      %v448 = vadd.f32 0.0, %v447
      %v449 = vpop.f32.mrf.mxu0
      %450 = vmatprep.mubr.bf16.mxu0 0
      %451 = vmatmul.mubr.bf16.gmra.mxu0 %v397
      %v452 = vpop.f32.mrf.mxu0
      %v453 = vadd.f32 0.0, %v452
      %v454 = vpop.f32.mrf.mxu0
      %v455 = vpop.f32.mrf.mxu0
      %v456 = vadd.f32 0.0, %v455
      %v457 = vpop.f32.mrf.mxu0
      %458 = vmatprep.mubr.bf16.mxu0 0
      %459 = vmatmul.mubr.bf16.gmra.mxu0 %v400
      %v460 = vpop.f32.mrf.mxu0
      %v461 = vadd.f32 0.0, %v460
      %v462 = vpop.f32.mrf.mxu0
      %v463 = vpop.f32.mrf.mxu0
      %v464 = vadd.f32 0.0, %v463
      %v465 = vpop.f32.mrf.mxu0
      %466 = vdwg.mxu0
      %v467 = vlaneseq
      %v468 = vshrl.u32 %v467, 7
      %v469 = vsub.s32 2, %v468
      %v470 = vrot.slane %v245, %v469
      %v479 = vunpack.c.l.b16 %v229
      %v480 = vunpack.c.l.b16 %v230
      %v481 = vunpack.c.l.b16 %v231
      %v482 = vunpack.c.l.b16 %v232
      %v483 = vunpack.c.l.b16 %v233
      %v484 = vunpack.c.l.b16 %v234
      %v485 = vunpack.c.l.b16 %v235
      %v486 = vunpack.c.l.b16 %v236
      %v487 = vpack.c.b16 %v480, %v479
      %v488 = vpack.c.b16 %v482, %v481
      %v489 = vpack.c.b16 %v484, %v483
      %v490 = vpack.c.b16 %v486, %v485
      %vm491 = vcmask 523264
      %v493 = vsel %vm491, %v487, 0
      %v496 = vsel %vm491, %v488, 0
      %v499 = vsel %vm491, %v489, 0
      %v502 = vsel %vm491, %v490, 0
      %504 = vmatprep.subr.mxu0 0.0
      %505 = vmatpush1.msra.mxu0 0.0
      %506 = vmatprep.subr.mxu0 0.0
      %507 = vmatpush1.msra.mxu0 0.0
      %508 = vmatprep.subr.mxu0 0.0
      %509 = vmatpush1.msra.mxu0 0.0
      %510 = vmatprep.subr.mxu0 0.0
      %511 = vmatpush1.msra.mxu0 0.0
      %512 = vmatprep.subr.mxu0 0.0
      %513 = vmatpush1.msra.mxu0 0.0
      %514 = vmatprep.subr.mxu0 0.0
      %515 = vmatpush1.msra.mxu0 0.0
      %516 = vmatprep.subr.mxu0 0.0
      %517 = vmatpush1.msra.mxu0 0.0
      %518 = vmatprep.subr.mxu0 0.0
      %519 = vmatpush1.msra.mxu0 0.0
      %520 = vmatprep.subr.mxu0 0.0
      %521 = vmatpush1.msra.mxu0 %v464
      %522 = vmatprep.subr.mxu0 0.0
      %523 = vmatpush1.msra.mxu0 %v461
      %524 = vmatprep.subr.mxu0 0.0
      %525 = vmatpush1.msra.mxu0 %v456
      %526 = vmatprep.subr.mxu0 0.0
      %527 = vmatpush1.msra.mxu0 %v453
      %528 = vmatprep.subr.mxu0 0.0
      %529 = vmatpush1.msra.mxu0 %v448
      %530 = vmatprep.subr.mxu0 0.0
      %531 = vmatpush1.msra.mxu0 %v445
      %532 = vmatprep.subr.mxu0 0.0
      %533 = vmatpush1.msra.mxu0 %v440
      %534 = vmatprep.subr.mxu0 0.0
      %535 = vmatpush1.msra.mxu0 %v437
      %536 = vmatprep.subr.mxu0 0.0
      %537 = vmatpush2.msra.mxu0 0.0
      %538 = vmatprep.subr.mxu0 0.0
      %539 = vmatpush2.msra.mxu0 0.0
      %540 = vmatprep.subr.mxu0 0.0
      %541 = vmatpush2.msra.mxu0 0.0
      %542 = vmatprep.subr.mxu0 0.0
      %543 = vmatpush2.msra.mxu0 0.0
      %544 = vmatprep.subr.mxu0 0.0
      %545 = vmatpush2.msra.mxu0 0.0
      %546 = vmatprep.subr.mxu0 0.0
      %547 = vmatpush2.msra.mxu0 0.0
      %548 = vmatprep.subr.mxu0 0.0
      %549 = vmatpush2.msra.mxu0 0.0
      %550 = vmatprep.subr.mxu0 0.0
      %551 = vmatpush2.msra.mxu0 0.0
      %552 = vmatprep.subr.mxu0 0.0
      %553 = vmatpush2.msra.mxu0 0.0
      %554 = vmatprep.subr.mxu0 0.0
      %555 = vmatpush2.msra.mxu0 0.0
      %556 = vmatprep.subr.mxu0 0.0
      %557 = vmatpush2.msra.mxu0 0.0
      %558 = vmatprep.subr.mxu0 0.0
      %559 = vmatpush2.msra.mxu0 0.0
      %560 = vmatprep.subr.mxu0 0.0
      %561 = vmatpush2.msra.mxu0 0.0
      %562 = vmatprep.subr.mxu0 0.0
      %563 = vmatpush2.msra.mxu0 0.0
      %564 = vmatprep.subr.mxu0 0.0
      %565 = vmatpush2.msra.mxu0 0.0
      %566 = vmatprep.subr.mxu0 0.0
      %567 = vmatpush2.msra.mxu0 0.0
      %568 = vmatprep.mubr.bf16.mxu0 0
      %569 = vmatmul.mubr.bf16.gmra.mxu0 %v493
      %v570 = vpop.f32.mrf.mxu0
      %v571 = vadd.f32 %v470, %v570
      %v572 = vpop.f32.mrf.mxu0
      %v573 = vpop.f32.mrf.mxu0
      %v574 = vadd.f32 %v470, %v573
      %v575 = vpop.f32.mrf.mxu0
      %576 = vmatprep.mubr.bf16.mxu0 0
      %577 = vmatmul.mubr.bf16.gmra.mxu0 %v496
      %v578 = vpop.f32.mrf.mxu0
      %v579 = vadd.f32 %v470, %v578
      %v580 = vpop.f32.mrf.mxu0
      %v581 = vpop.f32.mrf.mxu0
      %v582 = vadd.f32 %v470, %v581
      %v583 = vpop.f32.mrf.mxu0
      %584 = vmatprep.mubr.bf16.mxu0 0
      %585 = vmatmul.mubr.bf16.gmra.mxu0 %v499
      %v586 = vpop.f32.mrf.mxu0
      %v587 = vadd.f32 %v470, %v586
      %v588 = vpop.f32.mrf.mxu0
      %v589 = vpop.f32.mrf.mxu0
      %v590 = vadd.f32 %v470, %v589
      %v591 = vpop.f32.mrf.mxu0
      %592 = vmatprep.mubr.bf16.mxu0 0
      %593 = vmatmul.mubr.bf16.gmra.mxu0 %v502
      %v594 = vpop.f32.mrf.mxu0
      %v595 = vadd.f32 %v470, %v594
      %v596 = vpop.f32.mrf.mxu0
      %v597 = vpop.f32.mrf.mxu0
      %v598 = vadd.f32 %v470, %v597
      %v599 = vpop.f32.mrf.mxu0
      %600 = vdwg.mxu0
      %vm601 = vcmask 195584
      %v602 = vsel %vm601, %v571, 0.0
      %603 = vadd.xlane.f32.xlu0 %v602
      %v604 = vpop.xlane.xlu0 %603
      %v605 = vsel %vm601, %v574, 0.0
      %606 = vadd.xlane.f32.xlu0 %v605
      %v607 = vpop.xlane.xlu0 %606
      %v608 = vsel %vm601, %v579, 0.0
      %609 = vadd.xlane.f32.xlu0 %v608
      %v610 = vpop.xlane.xlu0 %609
      %v611 = vsel %vm601, %v582, 0.0
      %612 = vadd.xlane.f32.xlu0 %v611
      %v613 = vpop.xlane.xlu0 %612
      %v614 = vsel %vm601, %v587, 0.0
      %615 = vadd.xlane.f32.xlu0 %v614
      %v616 = vpop.xlane.xlu0 %615
      %v617 = vsel %vm601, %v590, 0.0
      %618 = vadd.xlane.f32.xlu0 %v617
      %v619 = vpop.xlane.xlu0 %618
      %v620 = vsel %vm601, %v595, 0.0
      %621 = vadd.xlane.f32.xlu0 %v620
      %v622 = vpop.xlane.xlu0 %621
      %v623 = vsel %vm601, %v598, 0.0
      %624 = vadd.xlane.f32.xlu0 %v623
      %v625 = vpop.xlane.xlu0 %624
      %v626 = vrcp.pop 24.0
      %v627 = vmul.f32 %v604, %v626
      %v628 = vmul.f32 %v607, %v626
      %v629 = vmul.f32 %v610, %v626
      %v630 = vmul.f32 %v613, %v626
      %v631 = vmul.f32 %v616, %v626
      %v632 = vmul.f32 %v619, %v626
      %v633 = vmul.f32 %v622, %v626
      %v634 = vmul.f32 %v625, %v626
      %v635 = vsub.f32 %v571, %v627
      %v636 = vsub.f32 %v574, %v628
      %v637 = vsub.f32 %v579, %v629
      %v638 = vsub.f32 %v582, %v630
      %v639 = vsub.f32 %v587, %v631
      %v640 = vsub.f32 %v590, %v632
      %v641 = vsub.f32 %v595, %v633
      %v642 = vsub.f32 %v598, %v634
      %v643 = vmul.f32 %v635, %v635
      %v644 = vmul.f32 %v636, %v636
      %v645 = vmul.f32 %v637, %v637
      %v646 = vmul.f32 %v638, %v638
      %v647 = vmul.f32 %v639, %v639
      %v648 = vmul.f32 %v640, %v640
      %v649 = vmul.f32 %v641, %v641
      %v650 = vmul.f32 %v642, %v642
      %v651 = vsel %vm601, %v643, 0.0
      %652 = vadd.xlane.f32.xlu0 %v651
      %v653 = vpop.xlane.xlu0 %652
      %v654 = vsel %vm601, %v644, 0.0
      %655 = vadd.xlane.f32.xlu0 %v654
      %v656 = vpop.xlane.xlu0 %655
      %v657 = vsel %vm601, %v645, 0.0
      %658 = vadd.xlane.f32.xlu0 %v657
      %v659 = vpop.xlane.xlu0 %658
      %v660 = vsel %vm601, %v646, 0.0
      %661 = vadd.xlane.f32.xlu0 %v660
      %v662 = vpop.xlane.xlu0 %661
      %v663 = vsel %vm601, %v647, 0.0
      %664 = vadd.xlane.f32.xlu0 %v663
      %v665 = vpop.xlane.xlu0 %664
      %v666 = vsel %vm601, %v648, 0.0
      %667 = vadd.xlane.f32.xlu0 %v666
      %v668 = vpop.xlane.xlu0 %667
      %v669 = vsel %vm601, %v649, 0.0
      %670 = vadd.xlane.f32.xlu0 %v669
      %v671 = vpop.xlane.xlu0 %670
      %v672 = vsel %vm601, %v650, 0.0
      %673 = vadd.xlane.f32.xlu0 %v672
      %v674 = vpop.xlane.xlu0 %673
      %v675 = vmul.f32 %v653, %v626
      %v676 = vmul.f32 %v656, %v626
      %v677 = vmul.f32 %v659, %v626
      %v678 = vmul.f32 %v662, %v626
      %v679 = vmul.f32 %v665, %v626
      %v680 = vmul.f32 %v668, %v626
      %v681 = vmul.f32 %v671, %v626
      %v682 = vmul.f32 %v674, %v626
      %v683 = vadd.f32 %v675, 1e-05
      %v684 = vadd.f32 %v676, 1e-05
      %v685 = vadd.f32 %v677, 1e-05
      %v686 = vadd.f32 %v678, 1e-05
      %v687 = vadd.f32 %v679, 1e-05
      %v688 = vadd.f32 %v680, 1e-05
      %v689 = vadd.f32 %v681, 1e-05
      %v690 = vadd.f32 %v682, 1e-05
      %v691 = vrsqrt.pop %v683
      %v692 = vrsqrt.pop %v684
      %v693 = vrsqrt.pop %v685
      %v694 = vrsqrt.pop %v686
      %v695 = vrsqrt.pop %v687
      %v696 = vrsqrt.pop %v688
      %v697 = vrsqrt.pop %v689
      %v698 = vrsqrt.pop %v690
      %v699 = vmul.f32 %v635, %v691
      %v700 = vmul.f32 %v636, %v692
      %v701 = vmul.f32 %v637, %v693
      %v702 = vmul.f32 %v638, %v694
      %v703 = vmul.f32 %v639, %v695
      %v704 = vmul.f32 %v640, %v696
      %v705 = vmul.f32 %v641, %v697
      %v706 = vmul.f32 %v642, %v698
      %v707 = vlaneseq
      %v708 = vshrl.u32 %v707, 7
      %v709 = vsub.s32 3, %v708
      %v710 = vrot.slane %v245, %v709
      %v711 = vmul.f32 %v699, %v710
      %v712 = vmul.f32 %v700, %v710
      %v713 = vmul.f32 %v701, %v710
      %v714 = vmul.f32 %v702, %v710
      %v715 = vmul.f32 %v703, %v710
      %v716 = vmul.f32 %v704, %v710
      %v717 = vmul.f32 %v705, %v710
      %v718 = vmul.f32 %v706, %v710
      %v719 = vlaneseq
      %v720 = vshrl.u32 %v719, 7
      %v721 = vsub.s32 4, %v720
      %v722 = vrot.slane %v245, %v721
      %v723 = vadd.f32 %v711, %v722
      %v724 = vadd.f32 %v712, %v722
      %v725 = vadd.f32 %v713, %v722
      %v726 = vadd.f32 %v714, %v722
      %v727 = vadd.f32 %v715, %v722
      %v728 = vadd.f32 %v716, %v722
      %v729 = vadd.f32 %v717, %v722
      %v730 = vadd.f32 %v718, %v722
      %v731 = vxor.u32 %v723, 2147483648
      %v732 = vxor.u32 %v724, 2147483648
      %v733 = vxor.u32 %v725, 2147483648
      %v734 = vxor.u32 %v726, 2147483648
      %v735 = vxor.u32 %v727, 2147483648
      %v736 = vxor.u32 %v728, 2147483648
      %v737 = vxor.u32 %v729, 2147483648
      %v738 = vxor.u32 %v730, 2147483648
      %v739 = vmul.f32 %v731, 1.442695
      %v740 = vpow.pop %v739
      %v741 = vmul.f32 %v732, 1.442695
      %v742 = vpow.pop %v741
      %v743 = vmul.f32 %v733, 1.442695
      %v744 = vpow.pop %v743
      %v745 = vmul.f32 %v734, 1.442695
      %v746 = vpow.pop %v745
      %v747 = vmul.f32 %v735, 1.442695
      %v748 = vpow.pop %v747
      %v749 = vmul.f32 %v736, 1.442695
      %v750 = vpow.pop %v749
      %v751 = vmul.f32 %v737, 1.442695
      %v752 = vpow.pop %v751
      %v753 = vmul.f32 %v738, 1.442695
      %v754 = vpow.pop %v753
      %v755 = vadd.f32 %v740, 1.0
      %v756 = vadd.f32 %v742, 1.0
      %v757 = vadd.f32 %v744, 1.0
      %v758 = vadd.f32 %v746, 1.0
      %v759 = vadd.f32 %v748, 1.0
      %v760 = vadd.f32 %v750, 1.0
      %v761 = vadd.f32 %v752, 1.0
      %v762 = vadd.f32 %v754, 1.0
      %v763 = vrcp.pop %v755
      %v764 = vmul.f32 1.0, %v763
      %v765 = vrcp.pop %v756
      %v766 = vmul.f32 1.0, %v765
      %v767 = vrcp.pop %v757
      %v768 = vmul.f32 1.0, %v767
      %v769 = vrcp.pop %v758
      %v770 = vmul.f32 1.0, %v769
      %v771 = vrcp.pop %v759
      %v772 = vmul.f32 1.0, %v771
      %v773 = vrcp.pop %v760
      %v774 = vmul.f32 1.0, %v773
      %v775 = vrcp.pop %v761
      %v776 = vmul.f32 1.0, %v775
      %v777 = vrcp.pop %v762
      %v778 = vmul.f32 1.0, %v777
      %v779 = vmul.f32 %v723, %v764
      %v780 = vmul.f32 %v724, %v766
      %v781 = vmul.f32 %v725, %v768
      %v782 = vmul.f32 %v726, %v770
      %v783 = vmul.f32 %v727, %v772
      %v784 = vmul.f32 %v728, %v774
      %v785 = vmul.f32 %v729, %v776
      %v786 = vmul.f32 %v730, %v778
      %v787 = vld [vmem:[%s3 + $0x8] sm:$0xf]
      %v788 = vld [vmem:[%s3 + $0xc] sm:$0xf]
      %v791 = vunpack.c.l.b16 %v787
      %v792 = vunpack.c.l.b16 %v788
      %v793 = vpack.c.b16 %v792, %v791
      %795 = vmatprep.subr.bf16.mxu0 0
      %796 = vmatpush1.bf16.msra.mxu0 0
      %797 = vmatprep.subr.bf16.mxu0 0
      %798 = vmatpush1.bf16.msra.mxu0 0
      %799 = vmatprep.subr.bf16.mxu0 0
      %800 = vmatpush1.bf16.msra.mxu0 0
      %801 = vmatprep.subr.bf16.mxu0 0
      %802 = vmatpush1.bf16.msra.mxu0 0
      %803 = vmatprep.subr.bf16.mxu0 0
      %804 = vmatpush1.bf16.msra.mxu0 0
      %805 = vmatprep.subr.bf16.mxu0 0
      %806 = vmatpush1.bf16.msra.mxu0 0
      %807 = vmatprep.subr.bf16.mxu0 0
      %808 = vmatpush1.bf16.msra.mxu0 0
      %809 = vmatprep.subr.bf16.mxu0 0
      %810 = vmatpush1.bf16.msra.mxu0 %v793
      %811 = vmatprep.subr.bf16.mxu0 0
      %812 = vmatpush2.bf16.msra.mxu0 0
      %813 = vmatprep.subr.bf16.mxu0 0
      %814 = vmatpush2.bf16.msra.mxu0 0
      %815 = vmatprep.subr.bf16.mxu0 0
      %816 = vmatpush2.bf16.msra.mxu0 0
      %817 = vmatprep.subr.bf16.mxu0 0
      %818 = vmatpush2.bf16.msra.mxu0 0
      %819 = vmatprep.subr.bf16.mxu0 0
      %820 = vmatpush2.bf16.msra.mxu0 0
      %821 = vmatprep.subr.bf16.mxu0 0
      %822 = vmatpush2.bf16.msra.mxu0 0
      %823 = vmatprep.subr.bf16.mxu0 0
      %824 = vmatpush2.bf16.msra.mxu0 0
      %825 = vmatprep.subr.bf16.mxu0 0
      %826 = vmatpush2.bf16.msra.mxu0 0
      %827 = vmatprep.mubr.bf16.mxu0 0
      %828 = vmatmul.mubr.bf16.gmra.mxu0 %v391
      %v829 = vpop.f32.mrf.mxu0
      %v830 = vadd.f32 0.0, %v829
      %v831 = vpop.f32.mrf.mxu0
      %v832 = vpop.f32.mrf.mxu0
      %v833 = vadd.f32 0.0, %v832
      %v834 = vpop.f32.mrf.mxu0
      %835 = vmatprep.mubr.bf16.mxu0 0
      %836 = vmatmul.mubr.bf16.gmra.mxu0 %v394
      %v837 = vpop.f32.mrf.mxu0
      %v838 = vadd.f32 0.0, %v837
      %v839 = vpop.f32.mrf.mxu0
      %v840 = vpop.f32.mrf.mxu0
      %v841 = vadd.f32 0.0, %v840
      %v842 = vpop.f32.mrf.mxu0
      %843 = vmatprep.mubr.bf16.mxu0 0
      %844 = vmatmul.mubr.bf16.gmra.mxu0 %v397
      %v845 = vpop.f32.mrf.mxu0
      %v846 = vadd.f32 0.0, %v845
      %v847 = vpop.f32.mrf.mxu0
      %v848 = vpop.f32.mrf.mxu0
      %v849 = vadd.f32 0.0, %v848
      %v850 = vpop.f32.mrf.mxu0
      %851 = vmatprep.mubr.bf16.mxu0 0
      %852 = vmatmul.mubr.bf16.gmra.mxu0 %v400
      %v853 = vpop.f32.mrf.mxu0
      %v854 = vadd.f32 0.0, %v853
      %v855 = vpop.f32.mrf.mxu0
      %v856 = vpop.f32.mrf.mxu0
      %v857 = vadd.f32 0.0, %v856
      %v858 = vpop.f32.mrf.mxu0
      %859 = vdwg.mxu0
      %v860 = vlaneseq
      %v861 = vshrl.u32 %v860, 7
      %v862 = vsub.s32 5, %v861
      %v863 = vrot.slane %v245, %v862
      %864 = vmatprep.subr.mxu0 0.0
      %865 = vmatpush1.msra.mxu0 0.0
      %866 = vmatprep.subr.mxu0 0.0
      %867 = vmatpush1.msra.mxu0 0.0
      %868 = vmatprep.subr.mxu0 0.0
      %869 = vmatpush1.msra.mxu0 0.0
      %870 = vmatprep.subr.mxu0 0.0
      %871 = vmatpush1.msra.mxu0 0.0
      %872 = vmatprep.subr.mxu0 0.0
      %873 = vmatpush1.msra.mxu0 0.0
      %874 = vmatprep.subr.mxu0 0.0
      %875 = vmatpush1.msra.mxu0 0.0
      %876 = vmatprep.subr.mxu0 0.0
      %877 = vmatpush1.msra.mxu0 0.0
      %878 = vmatprep.subr.mxu0 0.0
      %879 = vmatpush1.msra.mxu0 0.0
      %880 = vmatprep.subr.mxu0 0.0
      %881 = vmatpush1.msra.mxu0 %v857
      %882 = vmatprep.subr.mxu0 0.0
      %883 = vmatpush1.msra.mxu0 %v854
      %884 = vmatprep.subr.mxu0 0.0
      %885 = vmatpush1.msra.mxu0 %v849
      %886 = vmatprep.subr.mxu0 0.0
      %887 = vmatpush1.msra.mxu0 %v846
      %888 = vmatprep.subr.mxu0 0.0
      %889 = vmatpush1.msra.mxu0 %v841
      %890 = vmatprep.subr.mxu0 0.0
      %891 = vmatpush1.msra.mxu0 %v838
      %892 = vmatprep.subr.mxu0 0.0
      %893 = vmatpush1.msra.mxu0 %v833
      %894 = vmatprep.subr.mxu0 0.0
      %895 = vmatpush1.msra.mxu0 %v830
      %896 = vmatprep.subr.mxu0 0.0
      %897 = vmatpush2.msra.mxu0 0.0
      %898 = vmatprep.subr.mxu0 0.0
      %899 = vmatpush2.msra.mxu0 0.0
      %900 = vmatprep.subr.mxu0 0.0
      %901 = vmatpush2.msra.mxu0 0.0
      %902 = vmatprep.subr.mxu0 0.0
      %903 = vmatpush2.msra.mxu0 0.0
      %904 = vmatprep.subr.mxu0 0.0
      %905 = vmatpush2.msra.mxu0 0.0
      %906 = vmatprep.subr.mxu0 0.0
      %907 = vmatpush2.msra.mxu0 0.0
      %908 = vmatprep.subr.mxu0 0.0
      %909 = vmatpush2.msra.mxu0 0.0
      %910 = vmatprep.subr.mxu0 0.0
      %911 = vmatpush2.msra.mxu0 0.0
      %912 = vmatprep.subr.mxu0 0.0
      %913 = vmatpush2.msra.mxu0 0.0
      %914 = vmatprep.subr.mxu0 0.0
      %915 = vmatpush2.msra.mxu0 0.0
      %916 = vmatprep.subr.mxu0 0.0
      %917 = vmatpush2.msra.mxu0 0.0
      %918 = vmatprep.subr.mxu0 0.0
      %919 = vmatpush2.msra.mxu0 0.0
      %920 = vmatprep.subr.mxu0 0.0
      %921 = vmatpush2.msra.mxu0 0.0
      %922 = vmatprep.subr.mxu0 0.0
      %923 = vmatpush2.msra.mxu0 0.0
      %924 = vmatprep.subr.mxu0 0.0
      %925 = vmatpush2.msra.mxu0 0.0
      %926 = vmatprep.subr.mxu0 0.0
      %927 = vmatpush2.msra.mxu0 0.0
      %928 = vmatprep.mubr.bf16.mxu0 0
      %929 = vmatmul.mubr.bf16.gmra.mxu0 %v493
      %v930 = vpop.f32.mrf.mxu0
      %v931 = vadd.f32 %v863, %v930
      %v932 = vpop.f32.mrf.mxu0
      %v933 = vpop.f32.mrf.mxu0
      %v934 = vadd.f32 %v863, %v933
      %v935 = vpop.f32.mrf.mxu0
      %936 = vmatprep.mubr.bf16.mxu0 0
      %937 = vmatmul.mubr.bf16.gmra.mxu0 %v496
      %v938 = vpop.f32.mrf.mxu0
      %v939 = vadd.f32 %v863, %v938
      %v940 = vpop.f32.mrf.mxu0
      %v941 = vpop.f32.mrf.mxu0
      %v942 = vadd.f32 %v863, %v941
      %v943 = vpop.f32.mrf.mxu0
      %944 = vmatprep.mubr.bf16.mxu0 0
      %945 = vmatmul.mubr.bf16.gmra.mxu0 %v499
      %v946 = vpop.f32.mrf.mxu0
      %v947 = vadd.f32 %v863, %v946
      %v948 = vpop.f32.mrf.mxu0
      %v949 = vpop.f32.mrf.mxu0
      %v950 = vadd.f32 %v863, %v949
      %v951 = vpop.f32.mrf.mxu0
      %952 = vmatprep.mubr.bf16.mxu0 0
      %953 = vmatmul.mubr.bf16.gmra.mxu0 %v502
      %v954 = vpop.f32.mrf.mxu0
      %v955 = vadd.f32 %v863, %v954
      %v956 = vpop.f32.mrf.mxu0
      %v957 = vpop.f32.mrf.mxu0
      %v958 = vadd.f32 %v863, %v957
      %v959 = vpop.f32.mrf.mxu0
      %960 = vdwg.mxu0
      %vm961 = vcmask 392192
      %v962 = vsel %vm961, %v931, 0.0
      %963 = vadd.xlane.f32.xlu0 %v962
      %v964 = vpop.xlane.xlu0 %963
      %v965 = vsel %vm961, %v934, 0.0
      %966 = vadd.xlane.f32.xlu0 %v965
      %v967 = vpop.xlane.xlu0 %966
      %v968 = vsel %vm961, %v939, 0.0
      %969 = vadd.xlane.f32.xlu0 %v968
      %v970 = vpop.xlane.xlu0 %969
      %v971 = vsel %vm961, %v942, 0.0
      %972 = vadd.xlane.f32.xlu0 %v971
      %v973 = vpop.xlane.xlu0 %972
      %v974 = vsel %vm961, %v947, 0.0
      %975 = vadd.xlane.f32.xlu0 %v974
      %v976 = vpop.xlane.xlu0 %975
      %v977 = vsel %vm961, %v950, 0.0
      %978 = vadd.xlane.f32.xlu0 %v977
      %v979 = vpop.xlane.xlu0 %978
      %v980 = vsel %vm961, %v955, 0.0
      %981 = vadd.xlane.f32.xlu0 %v980
      %v982 = vpop.xlane.xlu0 %981
      %v983 = vsel %vm961, %v958, 0.0
      %984 = vadd.xlane.f32.xlu0 %v983
      %v985 = vpop.xlane.xlu0 %984
      %v986 = vrcp.pop 48.0
      %v987 = vmul.f32 %v964, %v986
      %v988 = vmul.f32 %v967, %v986
      %v989 = vmul.f32 %v970, %v986
      %v990 = vmul.f32 %v973, %v986
      %v991 = vmul.f32 %v976, %v986
      %v992 = vmul.f32 %v979, %v986
      %v993 = vmul.f32 %v982, %v986
      %v994 = vmul.f32 %v985, %v986
      %v995 = vsub.f32 %v931, %v987
      %v996 = vsub.f32 %v934, %v988
      %v997 = vsub.f32 %v939, %v989
      %v998 = vsub.f32 %v942, %v990
      %v999 = vsub.f32 %v947, %v991
      %v1000 = vsub.f32 %v950, %v992
      %v1001 = vsub.f32 %v955, %v993
      %v1002 = vsub.f32 %v958, %v994
      %v1003 = vmul.f32 %v995, %v995
      %v1004 = vmul.f32 %v996, %v996
      %v1005 = vmul.f32 %v997, %v997
      %v1006 = vmul.f32 %v998, %v998
      %v1007 = vmul.f32 %v999, %v999
      %v1008 = vmul.f32 %v1000, %v1000
      %v1009 = vmul.f32 %v1001, %v1001
      %v1010 = vmul.f32 %v1002, %v1002
      %v1011 = vsel %vm961, %v1003, 0.0
      %1012 = vadd.xlane.f32.xlu0 %v1011
      %v1013 = vpop.xlane.xlu0 %1012
      %v1014 = vsel %vm961, %v1004, 0.0
      %1015 = vadd.xlane.f32.xlu0 %v1014
      %v1016 = vpop.xlane.xlu0 %1015
      %v1017 = vsel %vm961, %v1005, 0.0
      %1018 = vadd.xlane.f32.xlu0 %v1017
      %v1019 = vpop.xlane.xlu0 %1018
      %v1020 = vsel %vm961, %v1006, 0.0
      %1021 = vadd.xlane.f32.xlu0 %v1020
      %v1022 = vpop.xlane.xlu0 %1021
      %v1023 = vsel %vm961, %v1007, 0.0
      %1024 = vadd.xlane.f32.xlu0 %v1023
      %v1025 = vpop.xlane.xlu0 %1024
      %v1026 = vsel %vm961, %v1008, 0.0
      %1027 = vadd.xlane.f32.xlu0 %v1026
      %v1028 = vpop.xlane.xlu0 %1027
      %v1029 = vsel %vm961, %v1009, 0.0
      %1030 = vadd.xlane.f32.xlu0 %v1029
      %v1031 = vpop.xlane.xlu0 %1030
      %v1032 = vsel %vm961, %v1010, 0.0
      %1033 = vadd.xlane.f32.xlu0 %v1032
      %v1034 = vpop.xlane.xlu0 %1033
      %v1035 = vmul.f32 %v1013, %v986
      %v1036 = vmul.f32 %v1016, %v986
      %v1037 = vmul.f32 %v1019, %v986
      %v1038 = vmul.f32 %v1022, %v986
      %v1039 = vmul.f32 %v1025, %v986
      %v1040 = vmul.f32 %v1028, %v986
      %v1041 = vmul.f32 %v1031, %v986
      %v1042 = vmul.f32 %v1034, %v986
      %v1043 = vadd.f32 %v1035, 1e-05
      %v1044 = vadd.f32 %v1036, 1e-05
      %v1045 = vadd.f32 %v1037, 1e-05
      %v1046 = vadd.f32 %v1038, 1e-05
      %v1047 = vadd.f32 %v1039, 1e-05
      %v1048 = vadd.f32 %v1040, 1e-05
      %v1049 = vadd.f32 %v1041, 1e-05
      %v1050 = vadd.f32 %v1042, 1e-05
      %v1051 = vrsqrt.pop %v1043
      %v1052 = vrsqrt.pop %v1044
      %v1053 = vrsqrt.pop %v1045
      %v1054 = vrsqrt.pop %v1046
      %v1055 = vrsqrt.pop %v1047
      %v1056 = vrsqrt.pop %v1048
      %v1057 = vrsqrt.pop %v1049
      %v1058 = vrsqrt.pop %v1050
      %v1059 = vmul.f32 %v995, %v1051
      %v1060 = vmul.f32 %v996, %v1052
      %v1061 = vmul.f32 %v997, %v1053
      %v1062 = vmul.f32 %v998, %v1054
      %v1063 = vmul.f32 %v999, %v1055
      %v1064 = vmul.f32 %v1000, %v1056
      %v1065 = vmul.f32 %v1001, %v1057
      %v1066 = vmul.f32 %v1002, %v1058
      %v1067 = vlaneseq
      %v1068 = vshrl.u32 %v1067, 7
      %v1069 = vsub.s32 1, %v1068
      %v1070 = vrot.slane %v246, %v1069
      %v1071 = vmul.f32 %v1059, %v1070
      %v1072 = vmul.f32 %v1060, %v1070
      %v1073 = vmul.f32 %v1061, %v1070
      %v1074 = vmul.f32 %v1062, %v1070
      %v1075 = vmul.f32 %v1063, %v1070
      %v1076 = vmul.f32 %v1064, %v1070
      %v1077 = vmul.f32 %v1065, %v1070
      %v1078 = vmul.f32 %v1066, %v1070
      %v1079 = vlaneseq
      %v1080 = vshrl.u32 %v1079, 7
      %v1081 = vsub.s32 2, %v1080
      %v1082 = vrot.slane %v246, %v1081
      %v1083 = vadd.f32 %v1071, %v1082
      %v1084 = vadd.f32 %v1072, %v1082
      %v1085 = vadd.f32 %v1073, %v1082
      %v1086 = vadd.f32 %v1074, %v1082
      %v1087 = vadd.f32 %v1075, %v1082
      %v1088 = vadd.f32 %v1076, %v1082
      %v1089 = vadd.f32 %v1077, %v1082
      %v1090 = vadd.f32 %v1078, %v1082
      %v1091 = vxor.u32 %v1083, 2147483648
      %v1092 = vxor.u32 %v1084, 2147483648
      %v1093 = vxor.u32 %v1085, 2147483648
      %v1094 = vxor.u32 %v1086, 2147483648
      %v1095 = vxor.u32 %v1087, 2147483648
      %v1096 = vxor.u32 %v1088, 2147483648
      %v1097 = vxor.u32 %v1089, 2147483648
      %v1098 = vxor.u32 %v1090, 2147483648
      %v1099 = vmul.f32 %v1091, 1.442695
      %v1100 = vpow.pop %v1099
      %v1101 = vmul.f32 %v1092, 1.442695
      %v1102 = vpow.pop %v1101
      %v1103 = vmul.f32 %v1093, 1.442695
      %v1104 = vpow.pop %v1103
      %v1105 = vmul.f32 %v1094, 1.442695
      %v1106 = vpow.pop %v1105
      %v1107 = vmul.f32 %v1095, 1.442695
      %v1108 = vpow.pop %v1107
      %v1109 = vmul.f32 %v1096, 1.442695
      %v1110 = vpow.pop %v1109
      %v1111 = vmul.f32 %v1097, 1.442695
      %v1112 = vpow.pop %v1111
      %v1113 = vmul.f32 %v1098, 1.442695
      %v1114 = vpow.pop %v1113
      %v1115 = vadd.f32 %v1100, 1.0
      %v1116 = vadd.f32 %v1102, 1.0
      %v1117 = vadd.f32 %v1104, 1.0
      %v1118 = vadd.f32 %v1106, 1.0
      %v1119 = vadd.f32 %v1108, 1.0
      %v1120 = vadd.f32 %v1110, 1.0
      %v1121 = vadd.f32 %v1112, 1.0
      %v1122 = vadd.f32 %v1114, 1.0
      %v1123 = vrcp.pop %v1115
      %v1124 = vmul.f32 1.0, %v1123
      %v1125 = vrcp.pop %v1116
      %v1126 = vmul.f32 1.0, %v1125
      %v1127 = vrcp.pop %v1117
      %v1128 = vmul.f32 1.0, %v1127
      %v1129 = vrcp.pop %v1118
      %v1130 = vmul.f32 1.0, %v1129
      %v1131 = vrcp.pop %v1119
      %v1132 = vmul.f32 1.0, %v1131
      %v1133 = vrcp.pop %v1120
      %v1134 = vmul.f32 1.0, %v1133
      %v1135 = vrcp.pop %v1121
      %v1136 = vmul.f32 1.0, %v1135
      %v1137 = vrcp.pop %v1122
      %v1138 = vmul.f32 1.0, %v1137
      %v1139 = vmul.f32 %v1083, %v1124
      %v1140 = vmul.f32 %v1084, %v1126
      %v1141 = vmul.f32 %v1085, %v1128
      %v1142 = vmul.f32 %v1086, %v1130
      %v1143 = vmul.f32 %v1087, %v1132
      %v1144 = vmul.f32 %v1088, %v1134
      %v1145 = vmul.f32 %v1089, %v1136
      %v1146 = vmul.f32 %v1090, %v1138
      %v1147 = vld [vmem:[%s3 + $0x10] sm:$0xf]
      %v1148 = vld [vmem:[%s3 + $0x14] sm:$0xf]
      %v1149 = vld [vmem:[%s3 + $0x18] sm:$0xf]
      %v1150 = vld [vmem:[%s3 + $0x1c] sm:$0xf]
      %v1151 = vld [vmem:[%s3 + $0x20] sm:$0xf]
      %v1152 = vld [vmem:[%s3 + $0x24] sm:$0xf]
      %v1153 = vpack.c.bf16 %v1140, %v1139
      %v1154 = vpack.c.bf16 %v1142, %v1141
      %v1155 = vpack.c.bf16 %v1144, %v1143
      %v1156 = vpack.c.bf16 %v1146, %v1145
      %v1163 = vunpack.c.l.b16 %v1147
      %v1164 = vunpack.c.l.b16 %v1148
      %v1165 = vunpack.c.l.b16 %v1149
      %v1166 = vunpack.c.l.b16 %v1150
      %v1167 = vunpack.c.l.b16 %v1151
      %v1168 = vunpack.c.l.b16 %v1152
      %v1169 = vpack.c.b16 %v1164, %v1163
      %v1170 = vpack.c.b16 %v1166, %v1165
      %v1171 = vpack.c.b16 %v1168, %v1167
      %v1176 = vsel %vm961, %v1153, 0
      %v1179 = vsel %vm961, %v1154, 0
      %v1182 = vsel %vm961, %v1155, 0
      %v1185 = vsel %vm961, %v1156, 0
      %1187 = vmatprep.subr.bf16.mxu0 0
      %1188 = vmatpush1.bf16.msra.mxu0 0
      %1189 = vmatprep.subr.bf16.mxu0 0
      %1190 = vmatpush1.bf16.msra.mxu0 0
      %1191 = vmatprep.subr.bf16.mxu0 0
      %1192 = vmatpush1.bf16.msra.mxu0 0
      %1193 = vmatprep.subr.bf16.mxu0 0
      %1194 = vmatpush1.bf16.msra.mxu0 0
      %1195 = vmatprep.subr.bf16.mxu0 0
      %1196 = vmatpush1.bf16.msra.mxu0 0
      %1197 = vmatprep.subr.bf16.mxu0 0
      %1198 = vmatpush1.bf16.msra.mxu0 %v1171
      %1199 = vmatprep.subr.bf16.mxu0 0
      %1200 = vmatpush1.bf16.msra.mxu0 %v1170
      %1201 = vmatprep.subr.bf16.mxu0 0
      %1202 = vmatpush1.bf16.msra.mxu0 %v1169
      %1203 = vmatprep.subr.bf16.mxu0 0
      %1204 = vmatpush2.bf16.msra.mxu0 0
      %1205 = vmatprep.subr.bf16.mxu0 0
      %1206 = vmatpush2.bf16.msra.mxu0 0
      %1207 = vmatprep.subr.bf16.mxu0 0
      %1208 = vmatpush2.bf16.msra.mxu0 0
      %1209 = vmatprep.subr.bf16.mxu0 0
      %1210 = vmatpush2.bf16.msra.mxu0 0
      %1211 = vmatprep.subr.bf16.mxu0 0
      %1212 = vmatpush2.bf16.msra.mxu0 0
      %1213 = vmatprep.subr.bf16.mxu0 0
      %1214 = vmatpush2.bf16.msra.mxu0 0
      %1215 = vmatprep.subr.bf16.mxu0 0
      %1216 = vmatpush2.bf16.msra.mxu0 0
      %1217 = vmatprep.subr.bf16.mxu0 0
      %1218 = vmatpush2.bf16.msra.mxu0 0
      %1219 = vmatprep.mubr.bf16.mxu0 0
      %1220 = vmatmul.mubr.bf16.gmra.mxu0 %v1176
      %v1221 = vpop.f32.mrf.mxu0
      %v1222 = vadd.f32 0.0, %v1221
      %v1223 = vpop.f32.mrf.mxu0
      %v1224 = vpop.f32.mrf.mxu0
      %v1225 = vadd.f32 0.0, %v1224
      %v1226 = vpop.f32.mrf.mxu0
      %1227 = vmatprep.mubr.bf16.mxu0 0
      %1228 = vmatmul.mubr.bf16.gmra.mxu0 %v1179
      %v1229 = vpop.f32.mrf.mxu0
      %v1230 = vadd.f32 0.0, %v1229
      %v1231 = vpop.f32.mrf.mxu0
      %v1232 = vpop.f32.mrf.mxu0
      %v1233 = vadd.f32 0.0, %v1232
      %v1234 = vpop.f32.mrf.mxu0
      %1235 = vmatprep.mubr.bf16.mxu0 0
      %1236 = vmatmul.mubr.bf16.gmra.mxu0 %v1182
      %v1237 = vpop.f32.mrf.mxu0
      %v1238 = vadd.f32 0.0, %v1237
      %v1239 = vpop.f32.mrf.mxu0
      %v1240 = vpop.f32.mrf.mxu0
      %v1241 = vadd.f32 0.0, %v1240
      %v1242 = vpop.f32.mrf.mxu0
      %1243 = vmatprep.mubr.bf16.mxu0 0
      %1244 = vmatmul.mubr.bf16.gmra.mxu0 %v1185
      %v1245 = vpop.f32.mrf.mxu0
      %v1246 = vadd.f32 0.0, %v1245
      %v1247 = vpop.f32.mrf.mxu0
      %v1248 = vpop.f32.mrf.mxu0
      %v1249 = vadd.f32 0.0, %v1248
      %v1250 = vpop.f32.mrf.mxu0
      %1251 = vdwg.mxu0
      %v1252 = vlaneseq
      %v1253 = vshrl.u32 %v1252, 7
      %v1254 = vsub.s32 6, %v1253
      %v1255 = vrot.slane %v245, %v1254
      %1256 = vmatprep.subr.mxu0 0.0
      %1257 = vmatpush1.msra.mxu0 0.0
      %1258 = vmatprep.subr.mxu0 0.0
      %1259 = vmatpush1.msra.mxu0 0.0
      %1260 = vmatprep.subr.mxu0 0.0
      %1261 = vmatpush1.msra.mxu0 0.0
      %1262 = vmatprep.subr.mxu0 0.0
      %1263 = vmatpush1.msra.mxu0 0.0
      %1264 = vmatprep.subr.mxu0 0.0
      %1265 = vmatpush1.msra.mxu0 0.0
      %1266 = vmatprep.subr.mxu0 0.0
      %1267 = vmatpush1.msra.mxu0 0.0
      %1268 = vmatprep.subr.mxu0 0.0
      %1269 = vmatpush1.msra.mxu0 0.0
      %1270 = vmatprep.subr.mxu0 0.0
      %1271 = vmatpush1.msra.mxu0 0.0
      %1272 = vmatprep.subr.mxu0 0.0
      %1273 = vmatpush1.msra.mxu0 %v1249
      %1274 = vmatprep.subr.mxu0 0.0
      %1275 = vmatpush1.msra.mxu0 %v1246
      %1276 = vmatprep.subr.mxu0 0.0
      %1277 = vmatpush1.msra.mxu0 %v1241
      %1278 = vmatprep.subr.mxu0 0.0
      %1279 = vmatpush1.msra.mxu0 %v1238
      %1280 = vmatprep.subr.mxu0 0.0
      %1281 = vmatpush1.msra.mxu0 %v1233
      %1282 = vmatprep.subr.mxu0 0.0
      %1283 = vmatpush1.msra.mxu0 %v1230
      %1284 = vmatprep.subr.mxu0 0.0
      %1285 = vmatpush1.msra.mxu0 %v1225
      %1286 = vmatprep.subr.mxu0 0.0
      %1287 = vmatpush1.msra.mxu0 %v1222
      %1288 = vmatprep.subr.mxu0 0.0
      %1289 = vmatpush2.msra.mxu0 0.0
      %1290 = vmatprep.subr.mxu0 0.0
      %1291 = vmatpush2.msra.mxu0 0.0
      %1292 = vmatprep.subr.mxu0 0.0
      %1293 = vmatpush2.msra.mxu0 0.0
      %1294 = vmatprep.subr.mxu0 0.0
      %1295 = vmatpush2.msra.mxu0 0.0
      %1296 = vmatprep.subr.mxu0 0.0
      %1297 = vmatpush2.msra.mxu0 0.0
      %1298 = vmatprep.subr.mxu0 0.0
      %1299 = vmatpush2.msra.mxu0 0.0
      %1300 = vmatprep.subr.mxu0 0.0
      %1301 = vmatpush2.msra.mxu0 0.0
      %1302 = vmatprep.subr.mxu0 0.0
      %1303 = vmatpush2.msra.mxu0 0.0
      %1304 = vmatprep.subr.mxu0 0.0
      %1305 = vmatpush2.msra.mxu0 0.0
      %1306 = vmatprep.subr.mxu0 0.0
      %1307 = vmatpush2.msra.mxu0 0.0
      %1308 = vmatprep.subr.mxu0 0.0
      %1309 = vmatpush2.msra.mxu0 0.0
      %1310 = vmatprep.subr.mxu0 0.0
      %1311 = vmatpush2.msra.mxu0 0.0
      %1312 = vmatprep.subr.mxu0 0.0
      %1313 = vmatpush2.msra.mxu0 0.0
      %1314 = vmatprep.subr.mxu0 0.0
      %1315 = vmatpush2.msra.mxu0 0.0
      %1316 = vmatprep.subr.mxu0 0.0
      %1317 = vmatpush2.msra.mxu0 0.0
      %1318 = vmatprep.subr.mxu0 0.0
      %1319 = vmatpush2.msra.mxu0 0.0
      %1320 = vmatprep.mubr.bf16.mxu0 0
      %1321 = vmatmul.mubr.bf16.gmra.mxu0 %v493
      %v1322 = vpop.f32.mrf.mxu0
      %v1323 = vadd.f32 %v1255, %v1322
      %v1324 = vpop.f32.mrf.mxu0
      %v1325 = vpop.f32.mrf.mxu0
      %v1326 = vadd.f32 %v1255, %v1325
      %v1327 = vpop.f32.mrf.mxu0
      %1328 = vmatprep.mubr.bf16.mxu0 0
      %1329 = vmatmul.mubr.bf16.gmra.mxu0 %v496
      %v1330 = vpop.f32.mrf.mxu0
      %v1331 = vadd.f32 %v1255, %v1330
      %v1332 = vpop.f32.mrf.mxu0
      %v1333 = vpop.f32.mrf.mxu0
      %v1334 = vadd.f32 %v1255, %v1333
      %v1335 = vpop.f32.mrf.mxu0
      %1336 = vmatprep.mubr.bf16.mxu0 0
      %1337 = vmatmul.mubr.bf16.gmra.mxu0 %v499
      %v1338 = vpop.f32.mrf.mxu0
      %v1339 = vadd.f32 %v1255, %v1338
      %v1340 = vpop.f32.mrf.mxu0
      %v1341 = vpop.f32.mrf.mxu0
      %v1342 = vadd.f32 %v1255, %v1341
      %v1343 = vpop.f32.mrf.mxu0
      %1344 = vmatprep.mubr.bf16.mxu0 0
      %1345 = vmatmul.mubr.bf16.gmra.mxu0 %v502
      %v1346 = vpop.f32.mrf.mxu0
      %v1347 = vadd.f32 %v1255, %v1346
      %v1348 = vpop.f32.mrf.mxu0
      %v1349 = vpop.f32.mrf.mxu0
      %v1350 = vadd.f32 %v1255, %v1349
      %v1351 = vpop.f32.mrf.mxu0
      %1352 = vdwg.mxu0
      %v1353 = vsel %vm961, %v1323, 0.0
      %1354 = vadd.xlane.f32.xlu0 %v1353
      %v1355 = vpop.xlane.xlu0 %1354
      %v1356 = vsel %vm961, %v1326, 0.0
      %1357 = vadd.xlane.f32.xlu0 %v1356
      %v1358 = vpop.xlane.xlu0 %1357
      %v1359 = vsel %vm961, %v1331, 0.0
      %1360 = vadd.xlane.f32.xlu0 %v1359
      %v1361 = vpop.xlane.xlu0 %1360
      %v1362 = vsel %vm961, %v1334, 0.0
      %1363 = vadd.xlane.f32.xlu0 %v1362
      %v1364 = vpop.xlane.xlu0 %1363
      %v1365 = vsel %vm961, %v1339, 0.0
      %1366 = vadd.xlane.f32.xlu0 %v1365
      %v1367 = vpop.xlane.xlu0 %1366
      %v1368 = vsel %vm961, %v1342, 0.0
      %1369 = vadd.xlane.f32.xlu0 %v1368
      %v1370 = vpop.xlane.xlu0 %1369
      %v1371 = vsel %vm961, %v1347, 0.0
      %1372 = vadd.xlane.f32.xlu0 %v1371
      %v1373 = vpop.xlane.xlu0 %1372
      %v1374 = vsel %vm961, %v1350, 0.0
      %1375 = vadd.xlane.f32.xlu0 %v1374
      %v1376 = vpop.xlane.xlu0 %1375
      %v1377 = vmul.f32 %v1355, %v986
      %v1378 = vmul.f32 %v1358, %v986
      %v1379 = vmul.f32 %v1361, %v986
      %v1380 = vmul.f32 %v1364, %v986
      %v1381 = vmul.f32 %v1367, %v986
      %v1382 = vmul.f32 %v1370, %v986
      %v1383 = vmul.f32 %v1373, %v986
      %v1384 = vmul.f32 %v1376, %v986
      %v1385 = vsub.f32 %v1323, %v1377
      %v1386 = vsub.f32 %v1326, %v1378
      %v1387 = vsub.f32 %v1331, %v1379
      %v1388 = vsub.f32 %v1334, %v1380
      %v1389 = vsub.f32 %v1339, %v1381
      %v1390 = vsub.f32 %v1342, %v1382
      %v1391 = vsub.f32 %v1347, %v1383
      %v1392 = vsub.f32 %v1350, %v1384
      %v1393 = vmul.f32 %v1385, %v1385
      %v1394 = vmul.f32 %v1386, %v1386
      %v1395 = vmul.f32 %v1387, %v1387
      %v1396 = vmul.f32 %v1388, %v1388
      %v1397 = vmul.f32 %v1389, %v1389
      %v1398 = vmul.f32 %v1390, %v1390
      %v1399 = vmul.f32 %v1391, %v1391
      %v1400 = vmul.f32 %v1392, %v1392
      %v1401 = vsel %vm961, %v1393, 0.0
      %1402 = vadd.xlane.f32.xlu0 %v1401
      %v1403 = vpop.xlane.xlu0 %1402
      %v1404 = vsel %vm961, %v1394, 0.0
      %1405 = vadd.xlane.f32.xlu0 %v1404
      %v1406 = vpop.xlane.xlu0 %1405
      %v1407 = vsel %vm961, %v1395, 0.0
      %1408 = vadd.xlane.f32.xlu0 %v1407
      %v1409 = vpop.xlane.xlu0 %1408
      %v1410 = vsel %vm961, %v1396, 0.0
      %1411 = vadd.xlane.f32.xlu0 %v1410
      %v1412 = vpop.xlane.xlu0 %1411
      %v1413 = vsel %vm961, %v1397, 0.0
      %1414 = vadd.xlane.f32.xlu0 %v1413
      %v1415 = vpop.xlane.xlu0 %1414
      %v1416 = vsel %vm961, %v1398, 0.0
      %1417 = vadd.xlane.f32.xlu0 %v1416
      %v1418 = vpop.xlane.xlu0 %1417
      %v1419 = vsel %vm961, %v1399, 0.0
      %1420 = vadd.xlane.f32.xlu0 %v1419
      %v1421 = vpop.xlane.xlu0 %1420
      %v1422 = vsel %vm961, %v1400, 0.0
      %1423 = vadd.xlane.f32.xlu0 %v1422
      %v1424 = vpop.xlane.xlu0 %1423
      %v1425 = vmul.f32 %v1403, %v986
      %v1426 = vmul.f32 %v1406, %v986
      %v1427 = vmul.f32 %v1409, %v986
      %v1428 = vmul.f32 %v1412, %v986
      %v1429 = vmul.f32 %v1415, %v986
      %v1430 = vmul.f32 %v1418, %v986
      %v1431 = vmul.f32 %v1421, %v986
      %v1432 = vmul.f32 %v1424, %v986
      %v1433 = vadd.f32 %v1425, 1e-05
      %v1434 = vadd.f32 %v1426, 1e-05
      %v1435 = vadd.f32 %v1427, 1e-05
      %v1436 = vadd.f32 %v1428, 1e-05
      %v1437 = vadd.f32 %v1429, 1e-05
      %v1438 = vadd.f32 %v1430, 1e-05
      %v1439 = vadd.f32 %v1431, 1e-05
      %v1440 = vadd.f32 %v1432, 1e-05
      %v1441 = vrsqrt.pop %v1433
      %v1442 = vrsqrt.pop %v1434
      %v1443 = vrsqrt.pop %v1435
      %v1444 = vrsqrt.pop %v1436
      %v1445 = vrsqrt.pop %v1437
      %v1446 = vrsqrt.pop %v1438
      %v1447 = vrsqrt.pop %v1439
      %v1448 = vrsqrt.pop %v1440
      %v1449 = vmul.f32 %v1385, %v1441
      %v1450 = vmul.f32 %v1386, %v1442
      %v1451 = vmul.f32 %v1387, %v1443
      %v1452 = vmul.f32 %v1388, %v1444
      %v1453 = vmul.f32 %v1389, %v1445
      %v1454 = vmul.f32 %v1390, %v1446
      %v1455 = vmul.f32 %v1391, %v1447
      %v1456 = vmul.f32 %v1392, %v1448
      %v1457 = vlaneseq
      %v1458 = vshrl.u32 %v1457, 7
      %v1459 = vsub.s32 3, %v1458
      %v1460 = vrot.slane %v246, %v1459
      %v1461 = vmul.f32 %v1449, %v1460
      %v1462 = vmul.f32 %v1450, %v1460
      %v1463 = vmul.f32 %v1451, %v1460
      %v1464 = vmul.f32 %v1452, %v1460
      %v1465 = vmul.f32 %v1453, %v1460
      %v1466 = vmul.f32 %v1454, %v1460
      %v1467 = vmul.f32 %v1455, %v1460
      %v1468 = vmul.f32 %v1456, %v1460
      %v1469 = vlaneseq
      %v1470 = vshrl.u32 %v1469, 7
      %v1471 = vsub.s32 4, %v1470
      %v1472 = vrot.slane %v246, %v1471
      %v1473 = vadd.f32 %v1461, %v1472
      %v1474 = vadd.f32 %v1462, %v1472
      %v1475 = vadd.f32 %v1463, %v1472
      %v1476 = vadd.f32 %v1464, %v1472
      %v1477 = vadd.f32 %v1465, %v1472
      %v1478 = vadd.f32 %v1466, %v1472
      %v1479 = vadd.f32 %v1467, %v1472
      %v1480 = vadd.f32 %v1468, %v1472
      %v1481 = vxor.u32 %v1473, 2147483648
      %v1482 = vxor.u32 %v1474, 2147483648
      %v1483 = vxor.u32 %v1475, 2147483648
      %v1484 = vxor.u32 %v1476, 2147483648
      %v1485 = vxor.u32 %v1477, 2147483648
      %v1486 = vxor.u32 %v1478, 2147483648
      %v1487 = vxor.u32 %v1479, 2147483648
      %v1488 = vxor.u32 %v1480, 2147483648
      %v1489 = vmul.f32 %v1481, 1.442695
      %v1490 = vpow.pop %v1489
      %v1491 = vmul.f32 %v1482, 1.442695
      %v1492 = vpow.pop %v1491
      %v1493 = vmul.f32 %v1483, 1.442695
      %v1494 = vpow.pop %v1493
      %v1495 = vmul.f32 %v1484, 1.442695
      %v1496 = vpow.pop %v1495
      %v1497 = vmul.f32 %v1485, 1.442695
      %v1498 = vpow.pop %v1497
      %v1499 = vmul.f32 %v1486, 1.442695
      %v1500 = vpow.pop %v1499
      %v1501 = vmul.f32 %v1487, 1.442695
      %v1502 = vpow.pop %v1501
      %v1503 = vmul.f32 %v1488, 1.442695
      %v1504 = vpow.pop %v1503
      %v1505 = vadd.f32 %v1490, 1.0
      %v1506 = vadd.f32 %v1492, 1.0
      %v1507 = vadd.f32 %v1494, 1.0
      %v1508 = vadd.f32 %v1496, 1.0
      %v1509 = vadd.f32 %v1498, 1.0
      %v1510 = vadd.f32 %v1500, 1.0
      %v1511 = vadd.f32 %v1502, 1.0
      %v1512 = vadd.f32 %v1504, 1.0
      %v1513 = vrcp.pop %v1505
      %v1514 = vmul.f32 1.0, %v1513
      %v1515 = vrcp.pop %v1506
      %v1516 = vmul.f32 1.0, %v1515
      %v1517 = vrcp.pop %v1507
      %v1518 = vmul.f32 1.0, %v1517
      %v1519 = vrcp.pop %v1508
      %v1520 = vmul.f32 1.0, %v1519
      %v1521 = vrcp.pop %v1509
      %v1522 = vmul.f32 1.0, %v1521
      %v1523 = vrcp.pop %v1510
      %v1524 = vmul.f32 1.0, %v1523
      %v1525 = vrcp.pop %v1511
      %v1526 = vmul.f32 1.0, %v1525
      %v1527 = vrcp.pop %v1512
      %v1528 = vmul.f32 1.0, %v1527
      %v1529 = vmul.f32 %v1473, %v1514
      %v1530 = vmul.f32 %v1474, %v1516
      %v1531 = vmul.f32 %v1475, %v1518
      %v1532 = vmul.f32 %v1476, %v1520
      %v1533 = vmul.f32 %v1477, %v1522
      %v1534 = vmul.f32 %v1478, %v1524
      %v1535 = vmul.f32 %v1479, %v1526
      %v1536 = vmul.f32 %v1480, %v1528
      %v1537 = vadd.f32 %v1529, %v1139
      %v1538 = vadd.f32 %v1530, %v1140
      %v1539 = vadd.f32 %v1531, %v1141
      %v1540 = vadd.f32 %v1532, %v1142
      %v1541 = vadd.f32 %v1533, %v1143
      %v1542 = vadd.f32 %v1534, %v1144
      %v1543 = vadd.f32 %v1535, %v1145
      %v1544 = vadd.f32 %v1536, %v1146
      %v1545 = vld [vmem:[%s3 + $0x28] sm:$0xf]
      %v1546 = vld [vmem:[%s3 + $0x2c] sm:$0xf]
      %v1547 = vld [vmem:[%s3 + $0x30] sm:$0xf]
      %v1548 = vld [vmem:[%s3 + $0x34] sm:$0xf]
      %v1549 = vld [vmem:[%s3 + $0x38] sm:$0xf]
      %v1550 = vld [vmem:[%s3 + $0x3c] sm:$0xf]
      %v1551 = vpack.c.bf16 %v1538, %v1537
      %v1552 = vpack.c.bf16 %v1540, %v1539
      %v1553 = vpack.c.bf16 %v1542, %v1541
      %v1554 = vpack.c.bf16 %v1544, %v1543
      %v1561 = vunpack.c.l.b16 %v1545
      %v1562 = vunpack.c.l.b16 %v1546
      %v1563 = vunpack.c.l.b16 %v1547
      %v1564 = vunpack.c.l.b16 %v1548
      %v1565 = vunpack.c.l.b16 %v1549
      %v1566 = vunpack.c.l.b16 %v1550
      %v1567 = vpack.c.b16 %v1562, %v1561
      %v1568 = vpack.c.b16 %v1564, %v1563
      %v1569 = vpack.c.b16 %v1566, %v1565
      %v1574 = vsel %vm961, %v1551, 0
      %v1577 = vsel %vm961, %v1552, 0
      %v1580 = vsel %vm961, %v1553, 0
      %v1583 = vsel %vm961, %v1554, 0
      %1585 = vmatprep.subr.bf16.mxu0 0
      %1586 = vmatpush1.bf16.msra.mxu0 0
      %1587 = vmatprep.subr.bf16.mxu0 0
      %1588 = vmatpush1.bf16.msra.mxu0 0
      %1589 = vmatprep.subr.bf16.mxu0 0
      %1590 = vmatpush1.bf16.msra.mxu0 0
      %1591 = vmatprep.subr.bf16.mxu0 0
      %1592 = vmatpush1.bf16.msra.mxu0 0
      %1593 = vmatprep.subr.bf16.mxu0 0
      %1594 = vmatpush1.bf16.msra.mxu0 0
      %1595 = vmatprep.subr.bf16.mxu0 0
      %1596 = vmatpush1.bf16.msra.mxu0 %v1569
      %1597 = vmatprep.subr.bf16.mxu0 0
      %1598 = vmatpush1.bf16.msra.mxu0 %v1568
      %1599 = vmatprep.subr.bf16.mxu0 0
      %1600 = vmatpush1.bf16.msra.mxu0 %v1567
      %1601 = vmatprep.subr.bf16.mxu0 0
      %1602 = vmatpush2.bf16.msra.mxu0 0
      %1603 = vmatprep.subr.bf16.mxu0 0
      %1604 = vmatpush2.bf16.msra.mxu0 0
      %1605 = vmatprep.subr.bf16.mxu0 0
      %1606 = vmatpush2.bf16.msra.mxu0 0
      %1607 = vmatprep.subr.bf16.mxu0 0
      %1608 = vmatpush2.bf16.msra.mxu0 0
      %1609 = vmatprep.subr.bf16.mxu0 0
      %1610 = vmatpush2.bf16.msra.mxu0 0
      %1611 = vmatprep.subr.bf16.mxu0 0
      %1612 = vmatpush2.bf16.msra.mxu0 0
      %1613 = vmatprep.subr.bf16.mxu0 0
      %1614 = vmatpush2.bf16.msra.mxu0 0
      %1615 = vmatprep.subr.bf16.mxu0 0
      %1616 = vmatpush2.bf16.msra.mxu0 0
      %1617 = vmatprep.mubr.bf16.mxu0 0
      %1618 = vmatmul.mubr.bf16.gmra.mxu0 %v1574
      %v1619 = vpop.f32.mrf.mxu0
      %v1620 = vadd.f32 0.0, %v1619
      %v1621 = vpop.f32.mrf.mxu0
      %v1622 = vpop.f32.mrf.mxu0
      %v1623 = vadd.f32 0.0, %v1622
      %v1624 = vpop.f32.mrf.mxu0
      %1625 = vmatprep.mubr.bf16.mxu0 0
      %1626 = vmatmul.mubr.bf16.gmra.mxu0 %v1577
      %v1627 = vpop.f32.mrf.mxu0
      %v1628 = vadd.f32 0.0, %v1627
      %v1629 = vpop.f32.mrf.mxu0
      %v1630 = vpop.f32.mrf.mxu0
      %v1631 = vadd.f32 0.0, %v1630
      %v1632 = vpop.f32.mrf.mxu0
      %1633 = vmatprep.mubr.bf16.mxu0 0
      %1634 = vmatmul.mubr.bf16.gmra.mxu0 %v1580
      %v1635 = vpop.f32.mrf.mxu0
      %v1636 = vadd.f32 0.0, %v1635
      %v1637 = vpop.f32.mrf.mxu0
      %v1638 = vpop.f32.mrf.mxu0
      %v1639 = vadd.f32 0.0, %v1638
      %v1640 = vpop.f32.mrf.mxu0
      %1641 = vmatprep.mubr.bf16.mxu0 0
      %1642 = vmatmul.mubr.bf16.gmra.mxu0 %v1583
      %v1643 = vpop.f32.mrf.mxu0
      %v1644 = vadd.f32 0.0, %v1643
      %v1645 = vpop.f32.mrf.mxu0
      %v1646 = vpop.f32.mrf.mxu0
      %v1647 = vadd.f32 0.0, %v1646
      %v1648 = vpop.f32.mrf.mxu0
      %1649 = vdwg.mxu0
      %v1650 = vlaneseq
      %v1651 = vshrl.u32 %v1650, 7
      %v1652 = vsub.s32 7, %v1651
      %v1653 = vrot.slane %v245, %v1652
      %1654 = vmatprep.subr.mxu0 0.0
      %1655 = vmatpush1.msra.mxu0 0.0
      %1656 = vmatprep.subr.mxu0 0.0
      %1657 = vmatpush1.msra.mxu0 0.0
      %1658 = vmatprep.subr.mxu0 0.0
      %1659 = vmatpush1.msra.mxu0 0.0
      %1660 = vmatprep.subr.mxu0 0.0
      %1661 = vmatpush1.msra.mxu0 0.0
      %1662 = vmatprep.subr.mxu0 0.0
      %1663 = vmatpush1.msra.mxu0 0.0
      %1664 = vmatprep.subr.mxu0 0.0
      %1665 = vmatpush1.msra.mxu0 0.0
      %1666 = vmatprep.subr.mxu0 0.0
      %1667 = vmatpush1.msra.mxu0 0.0
      %1668 = vmatprep.subr.mxu0 0.0
      %1669 = vmatpush1.msra.mxu0 0.0
      %1670 = vmatprep.subr.mxu0 0.0
      %1671 = vmatpush1.msra.mxu0 %v1647
      %1672 = vmatprep.subr.mxu0 0.0
      %1673 = vmatpush1.msra.mxu0 %v1644
      %1674 = vmatprep.subr.mxu0 0.0
      %1675 = vmatpush1.msra.mxu0 %v1639
      %1676 = vmatprep.subr.mxu0 0.0
      %1677 = vmatpush1.msra.mxu0 %v1636
      %1678 = vmatprep.subr.mxu0 0.0
      %1679 = vmatpush1.msra.mxu0 %v1631
      %1680 = vmatprep.subr.mxu0 0.0
      %1681 = vmatpush1.msra.mxu0 %v1628
      %1682 = vmatprep.subr.mxu0 0.0
      %1683 = vmatpush1.msra.mxu0 %v1623
      %1684 = vmatprep.subr.mxu0 0.0
      %1685 = vmatpush1.msra.mxu0 %v1620
      %1686 = vmatprep.subr.mxu0 0.0
      %1687 = vmatpush2.msra.mxu0 0.0
      %1688 = vmatprep.subr.mxu0 0.0
      %1689 = vmatpush2.msra.mxu0 0.0
      %1690 = vmatprep.subr.mxu0 0.0
      %1691 = vmatpush2.msra.mxu0 0.0
      %1692 = vmatprep.subr.mxu0 0.0
      %1693 = vmatpush2.msra.mxu0 0.0
      %1694 = vmatprep.subr.mxu0 0.0
      %1695 = vmatpush2.msra.mxu0 0.0
      %1696 = vmatprep.subr.mxu0 0.0
      %1697 = vmatpush2.msra.mxu0 0.0
      %1698 = vmatprep.subr.mxu0 0.0
      %1699 = vmatpush2.msra.mxu0 0.0
      %1700 = vmatprep.subr.mxu0 0.0
      %1701 = vmatpush2.msra.mxu0 0.0
      %1702 = vmatprep.subr.mxu0 0.0
      %1703 = vmatpush2.msra.mxu0 0.0
      %1704 = vmatprep.subr.mxu0 0.0
      %1705 = vmatpush2.msra.mxu0 0.0
      %1706 = vmatprep.subr.mxu0 0.0
      %1707 = vmatpush2.msra.mxu0 0.0
      %1708 = vmatprep.subr.mxu0 0.0
      %1709 = vmatpush2.msra.mxu0 0.0
      %1710 = vmatprep.subr.mxu0 0.0
      %1711 = vmatpush2.msra.mxu0 0.0
      %1712 = vmatprep.subr.mxu0 0.0
      %1713 = vmatpush2.msra.mxu0 0.0
      %1714 = vmatprep.subr.mxu0 0.0
      %1715 = vmatpush2.msra.mxu0 0.0
      %1716 = vmatprep.subr.mxu0 0.0
      %1717 = vmatpush2.msra.mxu0 0.0
      %1718 = vmatprep.mubr.bf16.mxu0 0
      %1719 = vmatmul.mubr.bf16.gmra.mxu0 %v493
      %v1720 = vpop.f32.mrf.mxu0
      %v1721 = vadd.f32 %v1653, %v1720
      %v1722 = vpop.f32.mrf.mxu0
      %v1723 = vpop.f32.mrf.mxu0
      %v1724 = vadd.f32 %v1653, %v1723
      %v1725 = vpop.f32.mrf.mxu0
      %1726 = vmatprep.mubr.bf16.mxu0 0
      %1727 = vmatmul.mubr.bf16.gmra.mxu0 %v496
      %v1728 = vpop.f32.mrf.mxu0
      %v1729 = vadd.f32 %v1653, %v1728
      %v1730 = vpop.f32.mrf.mxu0
      %v1731 = vpop.f32.mrf.mxu0
      %v1732 = vadd.f32 %v1653, %v1731
      %v1733 = vpop.f32.mrf.mxu0
      %1734 = vmatprep.mubr.bf16.mxu0 0
      %1735 = vmatmul.mubr.bf16.gmra.mxu0 %v499
      %v1736 = vpop.f32.mrf.mxu0
      %v1737 = vadd.f32 %v1653, %v1736
      %v1738 = vpop.f32.mrf.mxu0
      %v1739 = vpop.f32.mrf.mxu0
      %v1740 = vadd.f32 %v1653, %v1739
      %v1741 = vpop.f32.mrf.mxu0
      %1742 = vmatprep.mubr.bf16.mxu0 0
      %1743 = vmatmul.mubr.bf16.gmra.mxu0 %v502
      %v1744 = vpop.f32.mrf.mxu0
      %v1745 = vadd.f32 %v1653, %v1744
      %v1746 = vpop.f32.mrf.mxu0
      %v1747 = vpop.f32.mrf.mxu0
      %v1748 = vadd.f32 %v1653, %v1747
      %v1749 = vpop.f32.mrf.mxu0
      %1750 = vdwg.mxu0
      %v1751 = vsel %vm961, %v1721, 0.0
      %1752 = vadd.xlane.f32.xlu0 %v1751
      %v1753 = vpop.xlane.xlu0 %1752
      %v1754 = vsel %vm961, %v1724, 0.0
      %1755 = vadd.xlane.f32.xlu0 %v1754
      %v1756 = vpop.xlane.xlu0 %1755
      %v1757 = vsel %vm961, %v1729, 0.0
      %1758 = vadd.xlane.f32.xlu0 %v1757
      %v1759 = vpop.xlane.xlu0 %1758
      %v1760 = vsel %vm961, %v1732, 0.0
      %1761 = vadd.xlane.f32.xlu0 %v1760
      %v1762 = vpop.xlane.xlu0 %1761
      %v1763 = vsel %vm961, %v1737, 0.0
      %1764 = vadd.xlane.f32.xlu0 %v1763
      %v1765 = vpop.xlane.xlu0 %1764
      %v1766 = vsel %vm961, %v1740, 0.0
      %1767 = vadd.xlane.f32.xlu0 %v1766
      %v1768 = vpop.xlane.xlu0 %1767
      %v1769 = vsel %vm961, %v1745, 0.0
      %1770 = vadd.xlane.f32.xlu0 %v1769
      %v1771 = vpop.xlane.xlu0 %1770
      %v1772 = vsel %vm961, %v1748, 0.0
      %1773 = vadd.xlane.f32.xlu0 %v1772
      %v1774 = vpop.xlane.xlu0 %1773
      %v1775 = vmul.f32 %v1753, %v986
      %v1776 = vmul.f32 %v1756, %v986
      %v1777 = vmul.f32 %v1759, %v986
      %v1778 = vmul.f32 %v1762, %v986
      %v1779 = vmul.f32 %v1765, %v986
      %v1780 = vmul.f32 %v1768, %v986
      %v1781 = vmul.f32 %v1771, %v986
      %v1782 = vmul.f32 %v1774, %v986
      %v1783 = vsub.f32 %v1721, %v1775
      %v1784 = vsub.f32 %v1724, %v1776
      %v1785 = vsub.f32 %v1729, %v1777
      %v1786 = vsub.f32 %v1732, %v1778
      %v1787 = vsub.f32 %v1737, %v1779
      %v1788 = vsub.f32 %v1740, %v1780
      %v1789 = vsub.f32 %v1745, %v1781
      %v1790 = vsub.f32 %v1748, %v1782
      %v1791 = vmul.f32 %v1783, %v1783
      %v1792 = vmul.f32 %v1784, %v1784
      %v1793 = vmul.f32 %v1785, %v1785
      %v1794 = vmul.f32 %v1786, %v1786
      %v1795 = vmul.f32 %v1787, %v1787
      %v1796 = vmul.f32 %v1788, %v1788
      %v1797 = vmul.f32 %v1789, %v1789
      %v1798 = vmul.f32 %v1790, %v1790
      %v1799 = vsel %vm961, %v1791, 0.0
      %1800 = vadd.xlane.f32.xlu0 %v1799
      %v1801 = vpop.xlane.xlu0 %1800
      %v1802 = vsel %vm961, %v1792, 0.0
      %1803 = vadd.xlane.f32.xlu0 %v1802
      %v1804 = vpop.xlane.xlu0 %1803
      %v1805 = vsel %vm961, %v1793, 0.0
      %1806 = vadd.xlane.f32.xlu0 %v1805
      %v1807 = vpop.xlane.xlu0 %1806
      %v1808 = vsel %vm961, %v1794, 0.0
      %1809 = vadd.xlane.f32.xlu0 %v1808
      %v1810 = vpop.xlane.xlu0 %1809
      %v1811 = vsel %vm961, %v1795, 0.0
      %1812 = vadd.xlane.f32.xlu0 %v1811
      %v1813 = vpop.xlane.xlu0 %1812
      %v1814 = vsel %vm961, %v1796, 0.0
      %1815 = vadd.xlane.f32.xlu0 %v1814
      %v1816 = vpop.xlane.xlu0 %1815
      %v1817 = vsel %vm961, %v1797, 0.0
      %1818 = vadd.xlane.f32.xlu0 %v1817
      %v1819 = vpop.xlane.xlu0 %1818
      %v1820 = vsel %vm961, %v1798, 0.0
      %1821 = vadd.xlane.f32.xlu0 %v1820
      %v1822 = vpop.xlane.xlu0 %1821
      %v1823 = vmul.f32 %v1801, %v986
      %v1824 = vmul.f32 %v1804, %v986
      %v1825 = vmul.f32 %v1807, %v986
      %v1826 = vmul.f32 %v1810, %v986
      %v1827 = vmul.f32 %v1813, %v986
      %v1828 = vmul.f32 %v1816, %v986
      %v1829 = vmul.f32 %v1819, %v986
      %v1830 = vmul.f32 %v1822, %v986
      %v1831 = vadd.f32 %v1823, 1e-05
      %v1832 = vadd.f32 %v1824, 1e-05
      %v1833 = vadd.f32 %v1825, 1e-05
      %v1834 = vadd.f32 %v1826, 1e-05
      %v1835 = vadd.f32 %v1827, 1e-05
      %v1836 = vadd.f32 %v1828, 1e-05
      %v1837 = vadd.f32 %v1829, 1e-05
      %v1838 = vadd.f32 %v1830, 1e-05
      %v1839 = vrsqrt.pop %v1831
      %v1840 = vrsqrt.pop %v1832
      %v1841 = vrsqrt.pop %v1833
      %v1842 = vrsqrt.pop %v1834
      %v1843 = vrsqrt.pop %v1835
      %v1844 = vrsqrt.pop %v1836
      %v1845 = vrsqrt.pop %v1837
      %v1846 = vrsqrt.pop %v1838
      %v1847 = vmul.f32 %v1783, %v1839
      %v1848 = vmul.f32 %v1784, %v1840
      %v1849 = vmul.f32 %v1785, %v1841
      %v1850 = vmul.f32 %v1786, %v1842
      %v1851 = vmul.f32 %v1787, %v1843
      %v1852 = vmul.f32 %v1788, %v1844
      %v1853 = vmul.f32 %v1789, %v1845
      %v1854 = vmul.f32 %v1790, %v1846
      %v1855 = vlaneseq
      %v1856 = vshrl.u32 %v1855, 7
      %v1857 = vsub.s32 5, %v1856
      %v1858 = vrot.slane %v246, %v1857
      %v1859 = vmul.f32 %v1847, %v1858
      %v1860 = vmul.f32 %v1848, %v1858
      %v1861 = vmul.f32 %v1849, %v1858
      %v1862 = vmul.f32 %v1850, %v1858
      %v1863 = vmul.f32 %v1851, %v1858
      %v1864 = vmul.f32 %v1852, %v1858
      %v1865 = vmul.f32 %v1853, %v1858
      %v1866 = vmul.f32 %v1854, %v1858
      %v1867 = vlaneseq
      %v1868 = vshrl.u32 %v1867, 7
      %v1869 = vsub.s32 6, %v1868
      %v1870 = vrot.slane %v246, %v1869
      %v1871 = vadd.f32 %v1859, %v1870
      %v1872 = vadd.f32 %v1860, %v1870
      %v1873 = vadd.f32 %v1861, %v1870
      %v1874 = vadd.f32 %v1862, %v1870
      %v1875 = vadd.f32 %v1863, %v1870
      %v1876 = vadd.f32 %v1864, %v1870
      %v1877 = vadd.f32 %v1865, %v1870
      %v1878 = vadd.f32 %v1866, %v1870
      %v1879 = vxor.u32 %v1871, 2147483648
      %v1880 = vxor.u32 %v1872, 2147483648
      %v1881 = vxor.u32 %v1873, 2147483648
      %v1882 = vxor.u32 %v1874, 2147483648
      %v1883 = vxor.u32 %v1875, 2147483648
      %v1884 = vxor.u32 %v1876, 2147483648
      %v1885 = vxor.u32 %v1877, 2147483648
      %v1886 = vxor.u32 %v1878, 2147483648
      %v1887 = vmul.f32 %v1879, 1.442695
      %v1888 = vpow.pop %v1887
      %v1889 = vmul.f32 %v1880, 1.442695
      %v1890 = vpow.pop %v1889
      %v1891 = vmul.f32 %v1881, 1.442695
      %v1892 = vpow.pop %v1891
      %v1893 = vmul.f32 %v1882, 1.442695
      %v1894 = vpow.pop %v1893
      %v1895 = vmul.f32 %v1883, 1.442695
      %v1896 = vpow.pop %v1895
      %v1897 = vmul.f32 %v1884, 1.442695
      %v1898 = vpow.pop %v1897
      %v1899 = vmul.f32 %v1885, 1.442695
      %v1900 = vpow.pop %v1899
      %v1901 = vmul.f32 %v1886, 1.442695
      %v1902 = vpow.pop %v1901
      %v1903 = vadd.f32 %v1888, 1.0
      %v1904 = vadd.f32 %v1890, 1.0
      %v1905 = vadd.f32 %v1892, 1.0
      %v1906 = vadd.f32 %v1894, 1.0
      %v1907 = vadd.f32 %v1896, 1.0
      %v1908 = vadd.f32 %v1898, 1.0
      %v1909 = vadd.f32 %v1900, 1.0
      %v1910 = vadd.f32 %v1902, 1.0
      %v1911 = vrcp.pop %v1903
      %v1912 = vmul.f32 1.0, %v1911
      %v1913 = vrcp.pop %v1904
      %v1914 = vmul.f32 1.0, %v1913
      %v1915 = vrcp.pop %v1905
      %v1916 = vmul.f32 1.0, %v1915
      %v1917 = vrcp.pop %v1906
      %v1918 = vmul.f32 1.0, %v1917
      %v1919 = vrcp.pop %v1907
      %v1920 = vmul.f32 1.0, %v1919
      %v1921 = vrcp.pop %v1908
      %v1922 = vmul.f32 1.0, %v1921
      %v1923 = vrcp.pop %v1909
      %v1924 = vmul.f32 1.0, %v1923
      %v1925 = vrcp.pop %v1910
      %v1926 = vmul.f32 1.0, %v1925
      %v1927 = vmul.f32 %v1871, %v1912
      %v1928 = vmul.f32 %v1872, %v1914
      %v1929 = vmul.f32 %v1873, %v1916
      %v1930 = vmul.f32 %v1874, %v1918
      %v1931 = vmul.f32 %v1875, %v1920
      %v1932 = vmul.f32 %v1876, %v1922
      %v1933 = vmul.f32 %v1877, %v1924
      %v1934 = vmul.f32 %v1878, %v1926
      %v1935 = vadd.f32 %v1927, %v1537
      %v1936 = vadd.f32 %v1928, %v1538
      %v1937 = vadd.f32 %v1929, %v1539
      %v1938 = vadd.f32 %v1930, %v1540
      %v1939 = vadd.f32 %v1931, %v1541
      %v1940 = vadd.f32 %v1932, %v1542
      %v1941 = vadd.f32 %v1933, %v1543
      %v1942 = vadd.f32 %v1934, %v1544
      %v1943 = vld [vmem:[%s3 + $0x40] sm:$0xf]
      %v1944 = vld [vmem:[%s3 + $0x44] sm:$0xf]
      %v1945 = vld [vmem:[%s3 + $0x48] sm:$0xf]
      %v1946 = vld [vmem:[%s3 + $0x4c] sm:$0xf]
      %v1947 = vld [vmem:[%s3 + $0x50] sm:$0xf]
      %v1948 = vld [vmem:[%s3 + $0x54] sm:$0xf]
      %v1949 = vpack.c.bf16 %v1936, %v1935
      %v1950 = vpack.c.bf16 %v1938, %v1937
      %v1951 = vpack.c.bf16 %v1940, %v1939
      %v1952 = vpack.c.bf16 %v1942, %v1941
      %v1959 = vunpack.c.l.b16 %v1943
      %v1960 = vunpack.c.l.b16 %v1944
      %v1961 = vunpack.c.l.b16 %v1945
      %v1962 = vunpack.c.l.b16 %v1946
      %v1963 = vunpack.c.l.b16 %v1947
      %v1964 = vunpack.c.l.b16 %v1948
      %v1965 = vpack.c.b16 %v1960, %v1959
      %v1966 = vpack.c.b16 %v1962, %v1961
      %v1967 = vpack.c.b16 %v1964, %v1963
      %v1972 = vsel %vm961, %v1949, 0
      %v1975 = vsel %vm961, %v1950, 0
      %v1978 = vsel %vm961, %v1951, 0
      %v1981 = vsel %vm961, %v1952, 0
      %1983 = vmatprep.subr.bf16.mxu0 0
      %1984 = vmatpush1.bf16.msra.mxu0 0
      %1985 = vmatprep.subr.bf16.mxu0 0
      %1986 = vmatpush1.bf16.msra.mxu0 0
      %1987 = vmatprep.subr.bf16.mxu0 0
      %1988 = vmatpush1.bf16.msra.mxu0 0
      %1989 = vmatprep.subr.bf16.mxu0 0
      %1990 = vmatpush1.bf16.msra.mxu0 0
      %1991 = vmatprep.subr.bf16.mxu0 0
      %1992 = vmatpush1.bf16.msra.mxu0 0
      %1993 = vmatprep.subr.bf16.mxu0 0
      %1994 = vmatpush1.bf16.msra.mxu0 %v1967
      %1995 = vmatprep.subr.bf16.mxu0 0
      %1996 = vmatpush1.bf16.msra.mxu0 %v1966
      %1997 = vmatprep.subr.bf16.mxu0 0
      %1998 = vmatpush1.bf16.msra.mxu0 %v1965
      %1999 = vmatprep.subr.bf16.mxu0 0
      %2000 = vmatpush2.bf16.msra.mxu0 0
      %2001 = vmatprep.subr.bf16.mxu0 0
      %2002 = vmatpush2.bf16.msra.mxu0 0
      %2003 = vmatprep.subr.bf16.mxu0 0
      %2004 = vmatpush2.bf16.msra.mxu0 0
      %2005 = vmatprep.subr.bf16.mxu0 0
      %2006 = vmatpush2.bf16.msra.mxu0 0
      %2007 = vmatprep.subr.bf16.mxu0 0
      %2008 = vmatpush2.bf16.msra.mxu0 0
      %2009 = vmatprep.subr.bf16.mxu0 0
      %2010 = vmatpush2.bf16.msra.mxu0 0
      %2011 = vmatprep.subr.bf16.mxu0 0
      %2012 = vmatpush2.bf16.msra.mxu0 0
      %2013 = vmatprep.subr.bf16.mxu0 0
      %2014 = vmatpush2.bf16.msra.mxu0 0
      %2015 = vmatprep.mubr.bf16.mxu0 0
      %2016 = vmatmul.mubr.bf16.gmra.mxu0 %v1972
      %v2017 = vpop.f32.mrf.mxu0
      %v2018 = vadd.f32 0.0, %v2017
      %v2019 = vpop.f32.mrf.mxu0
      %v2020 = vpop.f32.mrf.mxu0
      %v2021 = vadd.f32 0.0, %v2020
      %v2022 = vpop.f32.mrf.mxu0
      %2023 = vmatprep.mubr.bf16.mxu0 0
      %2024 = vmatmul.mubr.bf16.gmra.mxu0 %v1975
      %v2025 = vpop.f32.mrf.mxu0
      %v2026 = vadd.f32 0.0, %v2025
      %v2027 = vpop.f32.mrf.mxu0
      %v2028 = vpop.f32.mrf.mxu0
      %v2029 = vadd.f32 0.0, %v2028
      %v2030 = vpop.f32.mrf.mxu0
      %2031 = vmatprep.mubr.bf16.mxu0 0
      %2032 = vmatmul.mubr.bf16.gmra.mxu0 %v1978
      %v2033 = vpop.f32.mrf.mxu0
      %v2034 = vadd.f32 0.0, %v2033
      %v2035 = vpop.f32.mrf.mxu0
      %v2036 = vpop.f32.mrf.mxu0
      %v2037 = vadd.f32 0.0, %v2036
      %v2038 = vpop.f32.mrf.mxu0
      %2039 = vmatprep.mubr.bf16.mxu0 0
      %2040 = vmatmul.mubr.bf16.gmra.mxu0 %v1981
      %v2041 = vpop.f32.mrf.mxu0
      %v2042 = vadd.f32 0.0, %v2041
      %v2043 = vpop.f32.mrf.mxu0
      %v2044 = vpop.f32.mrf.mxu0
      %v2045 = vadd.f32 0.0, %v2044
      %v2046 = vpop.f32.mrf.mxu0
      %2047 = vdwg.mxu0
      %v2048 = vpack.c.bf16 %v2021, %v2018
      %v2049 = vpack.c.bf16 %v2029, %v2026
      %v2050 = vpack.c.bf16 %v2037, %v2034
      %v2051 = vpack.c.bf16 %v2045, %v2042
      %2052 = vxpose.xlu0.b32.start [1/16] %v2018, 128
      %2053 = vxpose.xlu0.b32.cont [2/16] %v2021, 128
      %2054 = vxpose.xlu0.b32.cont [3/16] %v2026, 128
      %2055 = vxpose.xlu0.b32.cont [4/16] %v2029, 128
      %2056 = vxpose.xlu0.b32.cont [5/16] %v2034, 128
      %2057 = vxpose.xlu0.b32.cont [6/16] %v2037, 128
      %2058 = vxpose.xlu0.b32.cont [7/16] %v2042, 128
      %2059 = vxpose.xlu0.b32.cont [8/16] %v2045, 128
      %2060 = vxpose.xlu0.b32.cont [9/16] 0.0, 128
      %2061 = vxpose.xlu0.b32.cont [10/16] 0.0, 128
      %2062 = vxpose.xlu0.b32.cont [11/16] 0.0, 128
      %2063 = vxpose.xlu0.b32.cont [12/16] 0.0, 128
      %2064 = vxpose.xlu0.b32.cont [13/16] 0.0, 128
      %2065 = vxpose.xlu0.b32.cont [14/16] 0.0, 128
      %2066 = vxpose.xlu0.b32.cont [15/16] 0.0, 128
      %2067 = vxpose.xlu0.b32.end [16/16] 0.0, 128
      %v2068 = vpop.trf.xlu0
      %v2069 = vpop.trf.xlu0
      %v2070 = vpop.trf.xlu0
      %v2071 = vpop.trf.xlu0
      %v2072 = vpop.trf.xlu0
      %v2073 = vpop.trf.xlu0
      %v2074 = vpop.trf.xlu0
      %v2075 = vpop.trf.xlu0
      %v2076 = vpop.trf.xlu0
      %v2077 = vpop.trf.xlu0
      %v2078 = vpop.trf.xlu0
      %v2079 = vpop.trf.xlu0
      %v2080 = vpop.trf.xlu0
      %v2081 = vpop.trf.xlu0
      %v2082 = vpop.trf.xlu0
      %v2083 = vpop.trf.xlu0
      %v2084 = vpack.c.bf16 %v2069, %v2068
      %v2085 = vpack.c.bf16 %v2071, %v2070
      %v2086 = vpack.c.bf16 %v2073, %v2072
      %v2087 = vld [vmem:[%s3 + $0xa4] sm:$0xf]
      %v2088 = vld [vmem:[%s3 + $0xa8] sm:$0xf]
      %v2089 = vld [vmem:[%s3 + $0xac] sm:$0xf]
      %v2090 = vld [vmem:[%s3 + $0xb0] sm:$0xf]
      %v2091 = vld [vmem:[%s3 + $0xb4] sm:$0xf]
      %v2092 = vld [vmem:[%s3 + $0xb8] sm:$0xf]
      %v2099 = vunpack.c.l.b16 %v2087
      %v2100 = vunpack.c.l.b16 %v2088
      %v2101 = vunpack.c.l.b16 %v2089
      %v2102 = vunpack.c.l.b16 %v2090
      %v2103 = vunpack.c.l.b16 %v2091
      %v2104 = vunpack.c.l.b16 %v2092
      %v2105 = vpack.c.b16 %v2100, %v2099
      %v2106 = vpack.c.b16 %v2102, %v2101
      %v2107 = vpack.c.b16 %v2104, %v2103
      %v2112 = vsel %vm961, %v2048, 0
      %v2115 = vsel %vm961, %v2049, 0
      %v2118 = vsel %vm961, %v2050, 0
      %v2121 = vsel %vm961, %v2051, 0
      %2123 = vmatprep.subr.bf16.mxu0 0
      %2124 = vmatpush1.bf16.msra.mxu0 0
      %2125 = vmatprep.subr.bf16.mxu0 0
      %2126 = vmatpush1.bf16.msra.mxu0 0
      %2127 = vmatprep.subr.bf16.mxu0 0
      %2128 = vmatpush1.bf16.msra.mxu0 0
      %2129 = vmatprep.subr.bf16.mxu0 0
      %2130 = vmatpush1.bf16.msra.mxu0 0
      %2131 = vmatprep.subr.bf16.mxu0 0
      %2132 = vmatpush1.bf16.msra.mxu0 0
      %2133 = vmatprep.subr.bf16.mxu0 0
      %2134 = vmatpush1.bf16.msra.mxu0 %v2107
      %2135 = vmatprep.subr.bf16.mxu0 0
      %2136 = vmatpush1.bf16.msra.mxu0 %v2106
      %2137 = vmatprep.subr.bf16.mxu0 0
      %2138 = vmatpush1.bf16.msra.mxu0 %v2105
      %2139 = vmatprep.subr.bf16.mxu0 0
      %2140 = vmatpush2.bf16.msra.mxu0 0
      %2141 = vmatprep.subr.bf16.mxu0 0
      %2142 = vmatpush2.bf16.msra.mxu0 0
      %2143 = vmatprep.subr.bf16.mxu0 0
      %2144 = vmatpush2.bf16.msra.mxu0 0
      %2145 = vmatprep.subr.bf16.mxu0 0
      %2146 = vmatpush2.bf16.msra.mxu0 0
      %2147 = vmatprep.subr.bf16.mxu0 0
      %2148 = vmatpush2.bf16.msra.mxu0 0
      %2149 = vmatprep.subr.bf16.mxu0 0
      %2150 = vmatpush2.bf16.msra.mxu0 0
      %2151 = vmatprep.subr.bf16.mxu0 0
      %2152 = vmatpush2.bf16.msra.mxu0 0
      %2153 = vmatprep.subr.bf16.mxu0 0
      %2154 = vmatpush2.bf16.msra.mxu0 0
      %2155 = vmatprep.mubr.bf16.mxu0 0
      %2156 = vmatmul.mubr.bf16.gmra.mxu0 %v2112
      %v2157 = vpop.f32.mrf.mxu0
      %v2158 = vadd.f32 0.0, %v2157
      %v2159 = vpop.f32.mrf.mxu0
      %v2160 = vpop.f32.mrf.mxu0
      %v2161 = vadd.f32 0.0, %v2160
      %v2162 = vpop.f32.mrf.mxu0
      %2163 = vmatprep.mubr.bf16.mxu0 0
      %2164 = vmatmul.mubr.bf16.gmra.mxu0 %v2115
      %v2165 = vpop.f32.mrf.mxu0
      %v2166 = vadd.f32 0.0, %v2165
      %v2167 = vpop.f32.mrf.mxu0
      %v2168 = vpop.f32.mrf.mxu0
      %v2169 = vadd.f32 0.0, %v2168
      %v2170 = vpop.f32.mrf.mxu0
      %2171 = vmatprep.mubr.bf16.mxu0 0
      %2172 = vmatmul.mubr.bf16.gmra.mxu0 %v2118
      %v2173 = vpop.f32.mrf.mxu0
      %v2174 = vadd.f32 0.0, %v2173
      %v2175 = vpop.f32.mrf.mxu0
      %v2176 = vpop.f32.mrf.mxu0
      %v2177 = vadd.f32 0.0, %v2176
      %v2178 = vpop.f32.mrf.mxu0
      %2179 = vmatprep.mubr.bf16.mxu0 0
      %2180 = vmatmul.mubr.bf16.gmra.mxu0 %v2121
      %v2181 = vpop.f32.mrf.mxu0
      %v2182 = vadd.f32 0.0, %v2181
      %v2183 = vpop.f32.mrf.mxu0
      %v2184 = vpop.f32.mrf.mxu0
      %v2185 = vadd.f32 0.0, %v2184
      %v2186 = vpop.f32.mrf.mxu0
      %2187 = vdwg.mxu0
      %v2188 = vld [vmem:[%s3 + $0xa0] sm:$0x7]
      %v2190 = vsel %vm961, %v2188, 0
      %2192 = vmatprep.subr.bf16.mxu0 0
      %2193 = vmatpush1.bf16.msra.mxu0 0
      %2194 = vmatprep.subr.bf16.mxu0 0
      %2195 = vmatpush1.bf16.msra.mxu0 0
      %2196 = vmatprep.subr.bf16.mxu0 0
      %2197 = vmatpush1.bf16.msra.mxu0 0
      %2198 = vmatprep.subr.bf16.mxu0 0
      %2199 = vmatpush1.bf16.msra.mxu0 0
      %2200 = vmatprep.subr.bf16.mxu0 0
      %2201 = vmatpush1.bf16.msra.mxu0 0
      %2202 = vmatprep.subr.bf16.mxu0 0
      %2203 = vmatpush1.bf16.msra.mxu0 %v2086
      %2204 = vmatprep.subr.bf16.mxu0 0
      %2205 = vmatpush1.bf16.msra.mxu0 %v2085
      %2206 = vmatprep.subr.bf16.mxu0 0
      %2207 = vmatpush1.bf16.msra.mxu0 %v2084
      %2208 = vmatprep.subr.bf16.mxu0 0
      %2209 = vmatpush2.bf16.msra.mxu0 0
      %2210 = vmatprep.subr.bf16.mxu0 0
      %2211 = vmatpush2.bf16.msra.mxu0 0
      %2212 = vmatprep.subr.bf16.mxu0 0
      %2213 = vmatpush2.bf16.msra.mxu0 0
      %2214 = vmatprep.subr.bf16.mxu0 0
      %2215 = vmatpush2.bf16.msra.mxu0 0
      %2216 = vmatprep.subr.bf16.mxu0 0
      %2217 = vmatpush2.bf16.msra.mxu0 0
      %2218 = vmatprep.subr.bf16.mxu0 0
      %2219 = vmatpush2.bf16.msra.mxu0 0
      %2220 = vmatprep.subr.bf16.mxu0 0
      %2221 = vmatpush2.bf16.msra.mxu0 0
      %2222 = vmatprep.subr.bf16.mxu0 0
      %2223 = vmatpush2.bf16.msra.mxu0 0
      %2224 = vmatprep.mubr.bf16.mxu0 0
      %2225 = vmatmul.mubr.bf16.gmra.mxu0 %v2190
      %v2226 = vpop.f32.mrf.mxu0
      %v2227 = vadd.f32 0.0, %v2226
      %v2228 = vpop.f32.mrf.mxu0
      %v2229 = vpop.f32.mrf.mxu0
      %v2230 = vpop.f32.mrf.mxu0
      %2231 = vdwg.mxu0
      %2240 = vrot.lane.b32.xlu0 %v2158, 127
      %v2241 = vpop.permute.xlu0 %2240
      %2242 = vrot.lane.b32.xlu0 %v2161, 127
      %v2243 = vpop.permute.xlu0 %2242
      %2244 = vrot.lane.b32.xlu0 %v2166, 127
      %v2245 = vpop.permute.xlu0 %2244
      %2246 = vrot.lane.b32.xlu0 %v2169, 127
      %v2247 = vpop.permute.xlu0 %2246
      %2248 = vrot.lane.b32.xlu0 %v2174, 127
      %v2249 = vpop.permute.xlu0 %2248
      %2250 = vrot.lane.b32.xlu0 %v2177, 127
      %v2251 = vpop.permute.xlu0 %2250
      %2252 = vrot.lane.b32.xlu0 %v2182, 127
      %v2253 = vpop.permute.xlu0 %2252
      %2254 = vrot.lane.b32.xlu0 %v2185, 127
      %v2255 = vpop.permute.xlu0 %2254
      %2256 = vrot.lane.b32.xlu0 %v2158, 126
      %v2257 = vpop.permute.xlu0 %2256
      %2258 = vrot.lane.b32.xlu0 %v2161, 126
      %v2259 = vpop.permute.xlu0 %2258
      %2260 = vrot.lane.b32.xlu0 %v2166, 126
      %v2261 = vpop.permute.xlu0 %2260
      %2262 = vrot.lane.b32.xlu0 %v2169, 126
      %v2263 = vpop.permute.xlu0 %2262
      %2264 = vrot.lane.b32.xlu0 %v2174, 126
      %v2265 = vpop.permute.xlu0 %2264
      %2266 = vrot.lane.b32.xlu0 %v2177, 126
      %v2267 = vpop.permute.xlu0 %2266
      %2268 = vrot.lane.b32.xlu0 %v2182, 126
      %v2269 = vpop.permute.xlu0 %2268
      %2270 = vrot.lane.b32.xlu0 %v2185, 126
      %v2271 = vpop.permute.xlu0 %2270
      %2272 = vrot.lane.b32.xlu0 %v2158, 125
      %v2273 = vpop.permute.xlu0 %2272
      %2274 = vrot.lane.b32.xlu0 %v2161, 125
      %v2275 = vpop.permute.xlu0 %2274
      %2276 = vrot.lane.b32.xlu0 %v2166, 125
      %v2277 = vpop.permute.xlu0 %2276
      %2278 = vrot.lane.b32.xlu0 %v2169, 125
      %v2279 = vpop.permute.xlu0 %2278
      %2280 = vrot.lane.b32.xlu0 %v2174, 125
      %v2281 = vpop.permute.xlu0 %2280
      %2282 = vrot.lane.b32.xlu0 %v2177, 125
      %v2283 = vpop.permute.xlu0 %2282
      %2284 = vrot.lane.b32.xlu0 %v2182, 125
      %v2285 = vpop.permute.xlu0 %2284
      %2286 = vrot.lane.b32.xlu0 %v2185, 125
      %v2287 = vpop.permute.xlu0 %2286
      %2288 = vrot.lane.b32.xlu0 %v2158, 124
      %v2289 = vpop.permute.xlu0 %2288
      %2290 = vrot.lane.b32.xlu0 %v2161, 124
      %v2291 = vpop.permute.xlu0 %2290
      %2292 = vrot.lane.b32.xlu0 %v2166, 124
      %v2293 = vpop.permute.xlu0 %2292
      %2294 = vrot.lane.b32.xlu0 %v2169, 124
      %v2295 = vpop.permute.xlu0 %2294
      %2296 = vrot.lane.b32.xlu0 %v2174, 124
      %v2297 = vpop.permute.xlu0 %2296
      %2298 = vrot.lane.b32.xlu0 %v2177, 124
      %v2299 = vpop.permute.xlu0 %2298
      %2300 = vrot.lane.b32.xlu0 %v2182, 124
      %v2301 = vpop.permute.xlu0 %2300
      %2302 = vrot.lane.b32.xlu0 %v2185, 124
      %v2303 = vpop.permute.xlu0 %2302
      %2304 = vrot.lane.b32.xlu0 %v2158, 123
      %v2305 = vpop.permute.xlu0 %2304
      %2306 = vrot.lane.b32.xlu0 %v2161, 123
      %v2307 = vpop.permute.xlu0 %2306
      %2308 = vrot.lane.b32.xlu0 %v2166, 123
      %v2309 = vpop.permute.xlu0 %2308
      %2310 = vrot.lane.b32.xlu0 %v2169, 123
      %v2311 = vpop.permute.xlu0 %2310
      %2312 = vrot.lane.b32.xlu0 %v2174, 123
      %v2313 = vpop.permute.xlu0 %2312
      %2314 = vrot.lane.b32.xlu0 %v2177, 123
      %v2315 = vpop.permute.xlu0 %2314
      %2316 = vrot.lane.b32.xlu0 %v2182, 123
      %v2317 = vpop.permute.xlu0 %2316
      %2318 = vrot.lane.b32.xlu0 %v2185, 123
      %v2319 = vpop.permute.xlu0 %2318
      %v2321 = vcombine.high %v2227, %v2227
      %v2323 = vunpack.c.l.s4 1966171168
      %v2324 = vunpack.c.0.s8 %v2323
      %v2325 = vlaneseq
      %v2326 = vshrl.u32 %v2325, 7
      %v2327 = vsub.s32 %v2324, %v2326
      %v2328 = vrot.slane %v2227, %v2327
      %v2330 = vunpack.c.l.s4 1966171168
      %v2331 = vunpack.c.0.s8 %v2330
      %v2332 = vlaneseq
      %v2333 = vshrl.u32 %v2332, 7
      %v2334 = vsub.s32 %v2331, %v2333
      %v2335 = vrot.slane %v2321, %v2334
      %v2336 = vcombine.high %v2328, %v2328
      %v2337 = vcombine.high %v2335, %v2335
      %v2339 = vunpack.c.l.s4 1966171168
      %v2340 = vunpack.c.0.s8 %v2339
      %v2341 = vlaneseq
      %v2342 = vshrl.u32 %v2341, 7
      %v2343 = vsub.s32 %v2340, %v2342
      %v2344 = vrot.slane %v2328, %v2343
      %v2346 = vunpack.c.l.s4 1966171168
      %v2347 = vunpack.c.0.s8 %v2346
      %v2348 = vlaneseq
      %v2349 = vshrl.u32 %v2348, 7
      %v2350 = vsub.s32 %v2347, %v2349
      %v2351 = vrot.slane %v2335, %v2350
      %v2353 = vunpack.c.l.s4 1966171168
      %v2354 = vunpack.c.0.s8 %v2353
      %v2355 = vlaneseq
      %v2356 = vshrl.u32 %v2355, 7
      %v2357 = vsub.s32 %v2354, %v2356
      %v2358 = vrot.slane %v2336, %v2357
      %v2360 = vunpack.c.l.s4 1966171168
      %v2361 = vunpack.c.0.s8 %v2360
      %v2362 = vlaneseq
      %v2363 = vshrl.u32 %v2362, 7
      %v2364 = vsub.s32 %v2361, %v2363
      %v2365 = vrot.slane %v2337, %v2364
      %v2366 = vcombine.high %v2344, %v2344
      %v2367 = vcombine.high %v2358, %v2358
      %2368 = vset.pattern.permute.xlu0 0
      %2369 = vperm.xlu0 %2368, %v2158
      %v2370 = vpop.permute.xlu0 %2369
      %2372 = vset.pattern.permute.xlu0 0
      %2373 = vperm.xlu0 %2372, %v2161
      %v2374 = vpop.permute.xlu0 %2373
      %2376 = vset.pattern.permute.xlu0 0
      %2377 = vperm.xlu0 %2376, %v2166
      %v2378 = vpop.permute.xlu0 %2377
      %2380 = vset.pattern.permute.xlu0 0
      %2381 = vperm.xlu0 %2380, %v2169
      %v2382 = vpop.permute.xlu0 %2381
      %2384 = vset.pattern.permute.xlu0 0
      %2385 = vperm.xlu0 %2384, %v2174
      %v2386 = vpop.permute.xlu0 %2385
      %2388 = vset.pattern.permute.xlu0 0
      %2389 = vperm.xlu0 %2388, %v2177
      %v2390 = vpop.permute.xlu0 %2389
      %2392 = vset.pattern.permute.xlu0 0
      %2393 = vperm.xlu0 %2392, %v2182
      %v2394 = vpop.permute.xlu0 %2393
      %2396 = vset.pattern.permute.xlu0 0
      %2397 = vperm.xlu0 %2396, %v2185
      %v2398 = vpop.permute.xlu0 %2397
      %2400 = vset.pattern.permute.xlu0 0
      %2401 = vperm.xlu0 %2400, %v2241
      %v2402 = vpop.permute.xlu0 %2401
      %2404 = vset.pattern.permute.xlu0 0
      %2405 = vperm.xlu0 %2404, %v2243
      %v2406 = vpop.permute.xlu0 %2405
      %2408 = vset.pattern.permute.xlu0 0
      %2409 = vperm.xlu0 %2408, %v2245
      %v2410 = vpop.permute.xlu0 %2409
      %2412 = vset.pattern.permute.xlu0 0
      %2413 = vperm.xlu0 %2412, %v2247
      %v2414 = vpop.permute.xlu0 %2413
      %2416 = vset.pattern.permute.xlu0 0
      %2417 = vperm.xlu0 %2416, %v2249
      %v2418 = vpop.permute.xlu0 %2417
      %2420 = vset.pattern.permute.xlu0 0
      %2421 = vperm.xlu0 %2420, %v2251
      %v2422 = vpop.permute.xlu0 %2421
      %2424 = vset.pattern.permute.xlu0 0
      %2425 = vperm.xlu0 %2424, %v2253
      %v2426 = vpop.permute.xlu0 %2425
      %2428 = vset.pattern.permute.xlu0 0
      %2429 = vperm.xlu0 %2428, %v2255
      %v2430 = vpop.permute.xlu0 %2429
      %2432 = vset.pattern.permute.xlu0 0
      %2433 = vperm.xlu0 %2432, %v2257
      %v2434 = vpop.permute.xlu0 %2433
      %2436 = vset.pattern.permute.xlu0 0
      %2437 = vperm.xlu0 %2436, %v2259
      %v2438 = vpop.permute.xlu0 %2437
      %2440 = vset.pattern.permute.xlu0 0
      %2441 = vperm.xlu0 %2440, %v2261
      %v2442 = vpop.permute.xlu0 %2441
      %2444 = vset.pattern.permute.xlu0 0
      %2445 = vperm.xlu0 %2444, %v2263
      %v2446 = vpop.permute.xlu0 %2445
      %2448 = vset.pattern.permute.xlu0 0
      %2449 = vperm.xlu0 %2448, %v2265
      %v2450 = vpop.permute.xlu0 %2449
      %2452 = vset.pattern.permute.xlu0 0
      %2453 = vperm.xlu0 %2452, %v2267
      %v2454 = vpop.permute.xlu0 %2453
      %2456 = vset.pattern.permute.xlu0 0
      %2457 = vperm.xlu0 %2456, %v2269
      %v2458 = vpop.permute.xlu0 %2457
      %2460 = vset.pattern.permute.xlu0 0
      %2461 = vperm.xlu0 %2460, %v2271
      %v2462 = vpop.permute.xlu0 %2461
      %2464 = vset.pattern.permute.xlu0 0
      %2465 = vperm.xlu0 %2464, %v2273
      %v2466 = vpop.permute.xlu0 %2465
      %2468 = vset.pattern.permute.xlu0 0
      %2469 = vperm.xlu0 %2468, %v2275
      %v2470 = vpop.permute.xlu0 %2469
      %2472 = vset.pattern.permute.xlu0 0
      %2473 = vperm.xlu0 %2472, %v2277
      %v2474 = vpop.permute.xlu0 %2473
      %2476 = vset.pattern.permute.xlu0 0
      %2477 = vperm.xlu0 %2476, %v2279
      %v2478 = vpop.permute.xlu0 %2477
      %2480 = vset.pattern.permute.xlu0 0
      %2481 = vperm.xlu0 %2480, %v2281
      %v2482 = vpop.permute.xlu0 %2481
      %2484 = vset.pattern.permute.xlu0 0
      %2485 = vperm.xlu0 %2484, %v2283
      %v2486 = vpop.permute.xlu0 %2485
      %2488 = vset.pattern.permute.xlu0 0
      %2489 = vperm.xlu0 %2488, %v2285
      %v2490 = vpop.permute.xlu0 %2489
      %2492 = vset.pattern.permute.xlu0 0
      %2493 = vperm.xlu0 %2492, %v2287
      %v2494 = vpop.permute.xlu0 %2493
      %2496 = vset.pattern.permute.xlu0 0
      %2497 = vperm.xlu0 %2496, %v2289
      %v2498 = vpop.permute.xlu0 %2497
      %2500 = vset.pattern.permute.xlu0 0
      %2501 = vperm.xlu0 %2500, %v2291
      %v2502 = vpop.permute.xlu0 %2501
      %2504 = vset.pattern.permute.xlu0 0
      %2505 = vperm.xlu0 %2504, %v2293
      %v2506 = vpop.permute.xlu0 %2505
      %2508 = vset.pattern.permute.xlu0 0
      %2509 = vperm.xlu0 %2508, %v2295
      %v2510 = vpop.permute.xlu0 %2509
      %2512 = vset.pattern.permute.xlu0 0
      %2513 = vperm.xlu0 %2512, %v2297
      %v2514 = vpop.permute.xlu0 %2513
      %2516 = vset.pattern.permute.xlu0 0
      %2517 = vperm.xlu0 %2516, %v2299
      %v2518 = vpop.permute.xlu0 %2517
      %2520 = vset.pattern.permute.xlu0 0
      %2521 = vperm.xlu0 %2520, %v2301
      %v2522 = vpop.permute.xlu0 %2521
      %2524 = vset.pattern.permute.xlu0 0
      %2525 = vperm.xlu0 %2524, %v2303
      %v2526 = vpop.permute.xlu0 %2525
      %2528 = vset.pattern.permute.xlu0 0
      %2529 = vperm.xlu0 %2528, %v2305
      %v2530 = vpop.permute.xlu0 %2529
      %2532 = vset.pattern.permute.xlu0 0
      %2533 = vperm.xlu0 %2532, %v2307
      %v2534 = vpop.permute.xlu0 %2533
      %2536 = vset.pattern.permute.xlu0 0
      %2537 = vperm.xlu0 %2536, %v2309
      %v2538 = vpop.permute.xlu0 %2537
      %2540 = vset.pattern.permute.xlu0 0
      %2541 = vperm.xlu0 %2540, %v2311
      %v2542 = vpop.permute.xlu0 %2541
      %2544 = vset.pattern.permute.xlu0 0
      %2545 = vperm.xlu0 %2544, %v2313
      %v2546 = vpop.permute.xlu0 %2545
      %2548 = vset.pattern.permute.xlu0 0
      %2549 = vperm.xlu0 %2548, %v2315
      %v2550 = vpop.permute.xlu0 %2549
      %2552 = vset.pattern.permute.xlu0 0
      %2553 = vperm.xlu0 %2552, %v2317
      %v2554 = vpop.permute.xlu0 %2553
      %2556 = vset.pattern.permute.xlu0 0
      %2557 = vperm.xlu0 %2556, %v2319
      %v2558 = vpop.permute.xlu0 %2557
      %v2560 = vlaneseq
      %v2561 = vshrl.u32 %v2560, 7
      %v2562 = vsub.s32 0, %v2561
      %v2563 = vrot.slane %v2344, %v2562
      %v2564 = vlaneseq
      %v2565 = vshrl.u32 %v2564, 7
      %v2566 = vsub.s32 0, %v2565
      %v2567 = vrot.slane %v2358, %v2566
      %v2568 = vlaneseq
      %v2569 = vshrl.u32 %v2568, 7
      %v2570 = vsub.s32 0, %v2569
      %v2571 = vrot.slane %v2366, %v2570
      %v2572 = vlaneseq
      %v2573 = vshrl.u32 %v2572, 7
      %v2574 = vsub.s32 0, %v2573
      %v2575 = vrot.slane %v2367, %v2574
      %v2576 = vlaneseq
      %v2577 = vshrl.u32 %v2576, 7
      %v2578 = vsub.s32 0, %v2577
      %v2579 = vrot.slane %v2351, %v2578
      %v2580 = vlaneseq
      %v2581 = vshrl.u32 %v2580, 7
      %v2582 = vsub.s32 0, %v2581
      %v2583 = vrot.slane %v2365, %v2582
      %v2590 = vadd.f32 %v2370, %v2563
      %v2591 = vadd.f32 %v2374, %v2563
      %v2592 = vadd.f32 %v2378, %v2563
      %v2593 = vadd.f32 %v2382, %v2563
      %v2594 = vadd.f32 %v2386, %v2563
      %v2595 = vadd.f32 %v2390, %v2563
      %v2596 = vadd.f32 %v2394, %v2563
      %v2597 = vadd.f32 %v2398, %v2563
      %v2598 = vadd.f32 %v2402, %v2567
      %v2599 = vadd.f32 %v2406, %v2567
      %v2600 = vadd.f32 %v2410, %v2567
      %v2601 = vadd.f32 %v2414, %v2567
      %v2602 = vadd.f32 %v2418, %v2567
      %v2603 = vadd.f32 %v2422, %v2567
      %v2604 = vadd.f32 %v2426, %v2567
      %v2605 = vadd.f32 %v2430, %v2567
      %v2606 = vadd.f32 %v2434, %v2571
      %v2607 = vadd.f32 %v2438, %v2571
      %v2608 = vadd.f32 %v2442, %v2571
      %v2609 = vadd.f32 %v2446, %v2571
      %v2610 = vadd.f32 %v2450, %v2571
      %v2611 = vadd.f32 %v2454, %v2571
      %v2612 = vadd.f32 %v2458, %v2571
      %v2613 = vadd.f32 %v2462, %v2571
      %v2614 = vadd.f32 %v2466, %v2575
      %v2615 = vadd.f32 %v2470, %v2575
      %v2616 = vadd.f32 %v2474, %v2575
      %v2617 = vadd.f32 %v2478, %v2575
      %v2618 = vadd.f32 %v2482, %v2575
      %v2619 = vadd.f32 %v2486, %v2575
      %v2620 = vadd.f32 %v2490, %v2575
      %v2621 = vadd.f32 %v2494, %v2575
      %v2622 = vadd.f32 %v2498, %v2579
      %v2623 = vadd.f32 %v2502, %v2579
      %v2624 = vadd.f32 %v2506, %v2579
      %v2625 = vadd.f32 %v2510, %v2579
      %v2626 = vadd.f32 %v2514, %v2579
      %v2627 = vadd.f32 %v2518, %v2579
      %v2628 = vadd.f32 %v2522, %v2579
      %v2629 = vadd.f32 %v2526, %v2579
      %v2630 = vadd.f32 %v2530, %v2583
      %v2631 = vadd.f32 %v2534, %v2583
      %v2632 = vadd.f32 %v2538, %v2583
      %v2633 = vadd.f32 %v2542, %v2583
      %v2634 = vadd.f32 %v2546, %v2583
      %v2635 = vadd.f32 %v2550, %v2583
      %v2636 = vadd.f32 %v2554, %v2583
      %v2637 = vadd.f32 %v2558, %v2583
      %vm2638 = vcmp.ge.f32.partialorder %v2590, 0.0
      %vm2639 = vcmp.ge.f32.partialorder %v2591, 0.0
      %vm2640 = vcmp.ge.f32.partialorder %v2592, 0.0
      %vm2641 = vcmp.ge.f32.partialorder %v2593, 0.0
      %vm2642 = vcmp.ge.f32.partialorder %v2594, 0.0
      %vm2643 = vcmp.ge.f32.partialorder %v2595, 0.0
      %vm2644 = vcmp.ge.f32.partialorder %v2596, 0.0
      %vm2645 = vcmp.ge.f32.partialorder %v2597, 0.0
      %vm2646 = vcmp.ge.f32.partialorder %v2598, 0.0
      %vm2647 = vcmp.ge.f32.partialorder %v2599, 0.0
      %vm2648 = vcmp.ge.f32.partialorder %v2600, 0.0
      %vm2649 = vcmp.ge.f32.partialorder %v2601, 0.0
      %vm2650 = vcmp.ge.f32.partialorder %v2602, 0.0
      %vm2651 = vcmp.ge.f32.partialorder %v2603, 0.0
      %vm2652 = vcmp.ge.f32.partialorder %v2604, 0.0
      %vm2653 = vcmp.ge.f32.partialorder %v2605, 0.0
      %vm2654 = vcmp.ge.f32.partialorder %v2606, 0.0
      %vm2655 = vcmp.ge.f32.partialorder %v2607, 0.0
      %vm2656 = vcmp.ge.f32.partialorder %v2608, 0.0
      %vm2657 = vcmp.ge.f32.partialorder %v2609, 0.0
      %vm2658 = vcmp.ge.f32.partialorder %v2610, 0.0
      %vm2659 = vcmp.ge.f32.partialorder %v2611, 0.0
      %vm2660 = vcmp.ge.f32.partialorder %v2612, 0.0
      %vm2661 = vcmp.ge.f32.partialorder %v2613, 0.0
      %vm2662 = vcmp.ge.f32.partialorder %v2614, 0.0
      %vm2663 = vcmp.ge.f32.partialorder %v2615, 0.0
      %vm2664 = vcmp.ge.f32.partialorder %v2616, 0.0
      %vm2665 = vcmp.ge.f32.partialorder %v2617, 0.0
      %vm2666 = vcmp.ge.f32.partialorder %v2618, 0.0
      %vm2667 = vcmp.ge.f32.partialorder %v2619, 0.0
      %vm2668 = vcmp.ge.f32.partialorder %v2620, 0.0
      %vm2669 = vcmp.ge.f32.partialorder %v2621, 0.0
      %vm2670 = vcmp.ge.f32.partialorder %v2622, 0.0
      %vm2671 = vcmp.ge.f32.partialorder %v2623, 0.0
      %vm2672 = vcmp.ge.f32.partialorder %v2624, 0.0
      %vm2673 = vcmp.ge.f32.partialorder %v2625, 0.0
      %vm2674 = vcmp.ge.f32.partialorder %v2626, 0.0
      %vm2675 = vcmp.ge.f32.partialorder %v2627, 0.0
      %vm2676 = vcmp.ge.f32.partialorder %v2628, 0.0
      %vm2677 = vcmp.ge.f32.partialorder %v2629, 0.0
      %vm2678 = vcmp.ge.f32.partialorder %v2630, 0.0
      %vm2679 = vcmp.ge.f32.partialorder %v2631, 0.0
      %vm2680 = vcmp.ge.f32.partialorder %v2632, 0.0
      %vm2681 = vcmp.ge.f32.partialorder %v2633, 0.0
      %vm2682 = vcmp.ge.f32.partialorder %v2634, 0.0
      %vm2683 = vcmp.ge.f32.partialorder %v2635, 0.0
      %vm2684 = vcmp.ge.f32.partialorder %v2636, 0.0
      %vm2685 = vcmp.ge.f32.partialorder %v2637, 0.0
      %v2686 = vmul.f32 %v2590, 0.2
      %v2687 = vmul.f32 %v2591, 0.2
      %v2688 = vmul.f32 %v2592, 0.2
      %v2689 = vmul.f32 %v2593, 0.2
      %v2690 = vmul.f32 %v2594, 0.2
      %v2691 = vmul.f32 %v2595, 0.2
      %v2692 = vmul.f32 %v2596, 0.2
      %v2693 = vmul.f32 %v2597, 0.2
      %v2694 = vmul.f32 %v2598, 0.2
      %v2695 = vmul.f32 %v2599, 0.2
      %v2696 = vmul.f32 %v2600, 0.2
      %v2697 = vmul.f32 %v2601, 0.2
      %v2698 = vmul.f32 %v2602, 0.2
      %v2699 = vmul.f32 %v2603, 0.2
      %v2700 = vmul.f32 %v2604, 0.2
      %v2701 = vmul.f32 %v2605, 0.2
      %v2702 = vmul.f32 %v2606, 0.2
      %v2703 = vmul.f32 %v2607, 0.2
      %v2704 = vmul.f32 %v2608, 0.2
      %v2705 = vmul.f32 %v2609, 0.2
      %v2706 = vmul.f32 %v2610, 0.2
      %v2707 = vmul.f32 %v2611, 0.2
      %v2708 = vmul.f32 %v2612, 0.2
      %v2709 = vmul.f32 %v2613, 0.2
      %v2710 = vmul.f32 %v2614, 0.2
      %v2711 = vmul.f32 %v2615, 0.2
      %v2712 = vmul.f32 %v2616, 0.2
      %v2713 = vmul.f32 %v2617, 0.2
      %v2714 = vmul.f32 %v2618, 0.2
      %v2715 = vmul.f32 %v2619, 0.2
      %v2716 = vmul.f32 %v2620, 0.2
      %v2717 = vmul.f32 %v2621, 0.2
      %v2718 = vmul.f32 %v2622, 0.2
      %v2719 = vmul.f32 %v2623, 0.2
      %v2720 = vmul.f32 %v2624, 0.2
      %v2721 = vmul.f32 %v2625, 0.2
      %v2722 = vmul.f32 %v2626, 0.2
      %v2723 = vmul.f32 %v2627, 0.2
      %v2724 = vmul.f32 %v2628, 0.2
      %v2725 = vmul.f32 %v2629, 0.2
      %v2726 = vmul.f32 %v2630, 0.2
      %v2727 = vmul.f32 %v2631, 0.2
      %v2728 = vmul.f32 %v2632, 0.2
      %v2729 = vmul.f32 %v2633, 0.2
      %v2730 = vmul.f32 %v2634, 0.2
      %v2731 = vmul.f32 %v2635, 0.2
      %v2732 = vmul.f32 %v2636, 0.2
      %v2733 = vmul.f32 %v2637, 0.2
      %v2734 = vsel %vm2638, %v2590, %v2686
      %v2735 = vsel %vm2639, %v2591, %v2687
      %v2736 = vsel %vm2640, %v2592, %v2688
      %v2737 = vsel %vm2641, %v2593, %v2689
      %v2738 = vsel %vm2642, %v2594, %v2690
      %v2739 = vsel %vm2643, %v2595, %v2691
      %v2740 = vsel %vm2644, %v2596, %v2692
      %v2741 = vsel %vm2645, %v2597, %v2693
      %v2742 = vsel %vm2646, %v2598, %v2694
      %v2743 = vsel %vm2647, %v2599, %v2695
      %v2744 = vsel %vm2648, %v2600, %v2696
      %v2745 = vsel %vm2649, %v2601, %v2697
      %v2746 = vsel %vm2650, %v2602, %v2698
      %v2747 = vsel %vm2651, %v2603, %v2699
      %v2748 = vsel %vm2652, %v2604, %v2700
      %v2749 = vsel %vm2653, %v2605, %v2701
      %v2750 = vsel %vm2654, %v2606, %v2702
      %v2751 = vsel %vm2655, %v2607, %v2703
      %v2752 = vsel %vm2656, %v2608, %v2704
      %v2753 = vsel %vm2657, %v2609, %v2705
      %v2754 = vsel %vm2658, %v2610, %v2706
      %v2755 = vsel %vm2659, %v2611, %v2707
      %v2756 = vsel %vm2660, %v2612, %v2708
      %v2757 = vsel %vm2661, %v2613, %v2709
      %v2758 = vsel %vm2662, %v2614, %v2710
      %v2759 = vsel %vm2663, %v2615, %v2711
      %v2760 = vsel %vm2664, %v2616, %v2712
      %v2761 = vsel %vm2665, %v2617, %v2713
      %v2762 = vsel %vm2666, %v2618, %v2714
      %v2763 = vsel %vm2667, %v2619, %v2715
      %v2764 = vsel %vm2668, %v2620, %v2716
      %v2765 = vsel %vm2669, %v2621, %v2717
      %v2766 = vsel %vm2670, %v2622, %v2718
      %v2767 = vsel %vm2671, %v2623, %v2719
      %v2768 = vsel %vm2672, %v2624, %v2720
      %v2769 = vsel %vm2673, %v2625, %v2721
      %v2770 = vsel %vm2674, %v2626, %v2722
      %v2771 = vsel %vm2675, %v2627, %v2723
      %v2772 = vsel %vm2676, %v2628, %v2724
      %v2773 = vsel %vm2677, %v2629, %v2725
      %v2774 = vsel %vm2678, %v2630, %v2726
      %v2775 = vsel %vm2679, %v2631, %v2727
      %v2776 = vsel %vm2680, %v2632, %v2728
      %v2777 = vsel %vm2681, %v2633, %v2729
      %v2778 = vsel %vm2682, %v2634, %v2730
      %v2779 = vsel %vm2683, %v2635, %v2731
      %v2780 = vsel %vm2684, %v2636, %v2732
      %v2781 = vsel %vm2685, %v2637, %v2733
      %v2782 = vsel %vm237, 65537, 0
      %v2783 = vsel %vm238, 65537, 0
      %v2784 = vsel %vm239, 65537, 0
      %v2785 = vsel %vm240, 65537, 0
      %v2786 = vsel %vm241, 65537, 0
      %v2787 = vsel %vm242, 65537, 0
      %v2788 = vsel %vm243, 65537, 0
      %v2789 = vsel %vm244, 65537, 0
      %v2790 = vunpack.c.l.b16 %v2782
      %v2791 = vunpack.c.l.b16 %v2783
      %v2792 = vunpack.c.l.b16 %v2784
      %v2793 = vunpack.c.l.b16 %v2785
      %v2794 = vunpack.c.l.b16 %v2786
      %v2795 = vunpack.c.l.b16 %v2787
      %v2796 = vunpack.c.l.b16 %v2788
      %v2797 = vunpack.c.l.b16 %v2789
      %vm2798 = vcmp.ne.s32.totalorder %v2790, 0
      %vm2799 = vcmp.ne.s32.totalorder %v2791, 0
      %vm2800 = vcmp.ne.s32.totalorder %v2792, 0
      %vm2801 = vcmp.ne.s32.totalorder %v2793, 0
      %vm2802 = vcmp.ne.s32.totalorder %v2794, 0
      %vm2803 = vcmp.ne.s32.totalorder %v2795, 0
      %vm2804 = vcmp.ne.s32.totalorder %v2796, 0
      %vm2805 = vcmp.ne.s32.totalorder %v2797, 0
      %v2806 = vsel %vm2798, 1, 0
      %v2807 = vsel %vm2799, 1, 0
      %v2808 = vsel %vm2800, 1, 0
      %v2809 = vsel %vm2801, 1, 0
      %v2810 = vsel %vm2802, 1, 0
      %v2811 = vsel %vm2803, 1, 0
      %v2812 = vsel %vm2804, 1, 0
      %v2813 = vsel %vm2805, 1, 0
      %vm2814 = vcmp.eq.s32.totalorder %v2806, 1
      %vm2815 = vcmp.eq.s32.totalorder %v2807, 1
      %vm2816 = vcmp.eq.s32.totalorder %v2808, 1
      %vm2817 = vcmp.eq.s32.totalorder %v2809, 1
      %vm2818 = vcmp.eq.s32.totalorder %v2810, 1
      %vm2819 = vcmp.eq.s32.totalorder %v2811, 1
      %vm2820 = vcmp.eq.s32.totalorder %v2812, 1
      %vm2821 = vcmp.eq.s32.totalorder %v2813, 1
      %v2822 = vsel %vm2814, %v2734, -1e+30
      %v2823 = vsel %vm2815, %v2735, -1e+30
      %v2824 = vsel %vm2816, %v2736, -1e+30
      %v2825 = vsel %vm2817, %v2737, -1e+30
      %v2826 = vsel %vm2818, %v2738, -1e+30
      %v2827 = vsel %vm2819, %v2739, -1e+30
      %v2828 = vsel %vm2820, %v2740, -1e+30
      %v2829 = vsel %vm2821, %v2741, -1e+30
      %v2830 = vsel %vm2814, %v2742, -1e+30
      %v2831 = vsel %vm2815, %v2743, -1e+30
      %v2832 = vsel %vm2816, %v2744, -1e+30
      %v2833 = vsel %vm2817, %v2745, -1e+30
      %v2834 = vsel %vm2818, %v2746, -1e+30
      %v2835 = vsel %vm2819, %v2747, -1e+30
      %v2836 = vsel %vm2820, %v2748, -1e+30
      %v2837 = vsel %vm2821, %v2749, -1e+30
      %v2838 = vsel %vm2814, %v2750, -1e+30
      %v2839 = vsel %vm2815, %v2751, -1e+30
      %v2840 = vsel %vm2816, %v2752, -1e+30
      %v2841 = vsel %vm2817, %v2753, -1e+30
      %v2842 = vsel %vm2818, %v2754, -1e+30
      %v2843 = vsel %vm2819, %v2755, -1e+30
      %v2844 = vsel %vm2820, %v2756, -1e+30
      %v2845 = vsel %vm2821, %v2757, -1e+30
      %v2846 = vsel %vm2814, %v2758, -1e+30
      %v2847 = vsel %vm2815, %v2759, -1e+30
      %v2848 = vsel %vm2816, %v2760, -1e+30
      %v2849 = vsel %vm2817, %v2761, -1e+30
      %v2850 = vsel %vm2818, %v2762, -1e+30
      %v2851 = vsel %vm2819, %v2763, -1e+30
      %v2852 = vsel %vm2820, %v2764, -1e+30
      %v2853 = vsel %vm2821, %v2765, -1e+30
      %v2854 = vsel %vm2814, %v2766, -1e+30
      %v2855 = vsel %vm2815, %v2767, -1e+30
      %v2856 = vsel %vm2816, %v2768, -1e+30
      %v2857 = vsel %vm2817, %v2769, -1e+30
      %v2858 = vsel %vm2818, %v2770, -1e+30
      %v2859 = vsel %vm2819, %v2771, -1e+30
      %v2860 = vsel %vm2820, %v2772, -1e+30
      %v2861 = vsel %vm2821, %v2773, -1e+30
      %v2862 = vsel %vm2814, %v2774, -1e+30
      %v2863 = vsel %vm2815, %v2775, -1e+30
      %v2864 = vsel %vm2816, %v2776, -1e+30
      %v2865 = vsel %vm2817, %v2777, -1e+30
      %v2866 = vsel %vm2818, %v2778, -1e+30
      %v2867 = vsel %vm2819, %v2779, -1e+30
      %v2868 = vsel %vm2820, %v2780, -1e+30
      %v2869 = vsel %vm2821, %v2781, -1e+30
      %v2870 = vsel %vm491, %v2822, -inf
      %2871 = vmax.xlane.f32.xlu0 %v2870
      %v2872 = vpop.xlane.xlu0 %2871
      %v2873 = vsel %vm491, %v2823, -inf
      %2874 = vmax.xlane.f32.xlu0 %v2873
      %v2875 = vpop.xlane.xlu0 %2874
      %v2876 = vsel %vm491, %v2824, -inf
      %2877 = vmax.xlane.f32.xlu0 %v2876
      %v2878 = vpop.xlane.xlu0 %2877
      %v2879 = vsel %vm491, %v2825, -inf
      %2880 = vmax.xlane.f32.xlu0 %v2879
      %v2881 = vpop.xlane.xlu0 %2880
      %v2882 = vsel %vm491, %v2826, -inf
      %2883 = vmax.xlane.f32.xlu0 %v2882
      %v2884 = vpop.xlane.xlu0 %2883
      %v2885 = vsel %vm491, %v2827, -inf
      %2886 = vmax.xlane.f32.xlu0 %v2885
      %v2887 = vpop.xlane.xlu0 %2886
      %v2888 = vsel %vm491, %v2828, -inf
      %2889 = vmax.xlane.f32.xlu0 %v2888
      %v2890 = vpop.xlane.xlu0 %2889
      %v2891 = vsel %vm491, %v2829, -inf
      %2892 = vmax.xlane.f32.xlu0 %v2891
      %v2893 = vpop.xlane.xlu0 %2892
      %v2894 = vsel %vm491, %v2830, -inf
      %2895 = vmax.xlane.f32.xlu0 %v2894
      %v2896 = vpop.xlane.xlu0 %2895
      %v2897 = vsel %vm491, %v2831, -inf
      %2898 = vmax.xlane.f32.xlu0 %v2897
      %v2899 = vpop.xlane.xlu0 %2898
      %v2900 = vsel %vm491, %v2832, -inf
      %2901 = vmax.xlane.f32.xlu0 %v2900
      %v2902 = vpop.xlane.xlu0 %2901
      %v2903 = vsel %vm491, %v2833, -inf
      %2904 = vmax.xlane.f32.xlu0 %v2903
      %v2905 = vpop.xlane.xlu0 %2904
      %v2906 = vsel %vm491, %v2834, -inf
      %2907 = vmax.xlane.f32.xlu0 %v2906
      %v2908 = vpop.xlane.xlu0 %2907
      %v2909 = vsel %vm491, %v2835, -inf
      %2910 = vmax.xlane.f32.xlu0 %v2909
      %v2911 = vpop.xlane.xlu0 %2910
      %v2912 = vsel %vm491, %v2836, -inf
      %2913 = vmax.xlane.f32.xlu0 %v2912
      %v2914 = vpop.xlane.xlu0 %2913
      %v2915 = vsel %vm491, %v2837, -inf
      %2916 = vmax.xlane.f32.xlu0 %v2915
      %v2917 = vpop.xlane.xlu0 %2916
      %v2918 = vsel %vm491, %v2838, -inf
      %2919 = vmax.xlane.f32.xlu0 %v2918
      %v2920 = vpop.xlane.xlu0 %2919
      %v2921 = vsel %vm491, %v2839, -inf
      %2922 = vmax.xlane.f32.xlu0 %v2921
      %v2923 = vpop.xlane.xlu0 %2922
      %v2924 = vsel %vm491, %v2840, -inf
      %2925 = vmax.xlane.f32.xlu0 %v2924
      %v2926 = vpop.xlane.xlu0 %2925
      %v2927 = vsel %vm491, %v2841, -inf
      %2928 = vmax.xlane.f32.xlu0 %v2927
      %v2929 = vpop.xlane.xlu0 %2928
      %v2930 = vsel %vm491, %v2842, -inf
      %2931 = vmax.xlane.f32.xlu0 %v2930
      %v2932 = vpop.xlane.xlu0 %2931
      %v2933 = vsel %vm491, %v2843, -inf
      %2934 = vmax.xlane.f32.xlu0 %v2933
      %v2935 = vpop.xlane.xlu0 %2934
      %v2936 = vsel %vm491, %v2844, -inf
      %2937 = vmax.xlane.f32.xlu0 %v2936
      %v2938 = vpop.xlane.xlu0 %2937
      %v2939 = vsel %vm491, %v2845, -inf
      %2940 = vmax.xlane.f32.xlu0 %v2939
      %v2941 = vpop.xlane.xlu0 %2940
      %v2942 = vsel %vm491, %v2846, -inf
      %2943 = vmax.xlane.f32.xlu0 %v2942
      %v2944 = vpop.xlane.xlu0 %2943
      %v2945 = vsel %vm491, %v2847, -inf
      %2946 = vmax.xlane.f32.xlu0 %v2945
      %v2947 = vpop.xlane.xlu0 %2946
      %v2948 = vsel %vm491, %v2848, -inf
      %2949 = vmax.xlane.f32.xlu0 %v2948
      %v2950 = vpop.xlane.xlu0 %2949
      %v2951 = vsel %vm491, %v2849, -inf
      %2952 = vmax.xlane.f32.xlu0 %v2951
      %v2953 = vpop.xlane.xlu0 %2952
      %v2954 = vsel %vm491, %v2850, -inf
      %2955 = vmax.xlane.f32.xlu0 %v2954
      %v2956 = vpop.xlane.xlu0 %2955
      %v2957 = vsel %vm491, %v2851, -inf
      %2958 = vmax.xlane.f32.xlu0 %v2957
      %v2959 = vpop.xlane.xlu0 %2958
      %v2960 = vsel %vm491, %v2852, -inf
      %2961 = vmax.xlane.f32.xlu0 %v2960
      %v2962 = vpop.xlane.xlu0 %2961
      %v2963 = vsel %vm491, %v2853, -inf
      %2964 = vmax.xlane.f32.xlu0 %v2963
      %v2965 = vpop.xlane.xlu0 %2964
      %v2966 = vsel %vm491, %v2854, -inf
      %2967 = vmax.xlane.f32.xlu0 %v2966
      %v2968 = vpop.xlane.xlu0 %2967
      %v2969 = vsel %vm491, %v2855, -inf
      %2970 = vmax.xlane.f32.xlu0 %v2969
      %v2971 = vpop.xlane.xlu0 %2970
      %v2972 = vsel %vm491, %v2856, -inf
      %2973 = vmax.xlane.f32.xlu0 %v2972
      %v2974 = vpop.xlane.xlu0 %2973
      %v2975 = vsel %vm491, %v2857, -inf
      %2976 = vmax.xlane.f32.xlu0 %v2975
      %v2977 = vpop.xlane.xlu0 %2976
      %v2978 = vsel %vm491, %v2858, -inf
      %2979 = vmax.xlane.f32.xlu0 %v2978
      %v2980 = vpop.xlane.xlu0 %2979
      %v2981 = vsel %vm491, %v2859, -inf
      %2982 = vmax.xlane.f32.xlu0 %v2981
      %v2983 = vpop.xlane.xlu0 %2982
      %v2984 = vsel %vm491, %v2860, -inf
      %2985 = vmax.xlane.f32.xlu0 %v2984
      %v2986 = vpop.xlane.xlu0 %2985
      %v2987 = vsel %vm491, %v2861, -inf
      %2988 = vmax.xlane.f32.xlu0 %v2987
      %v2989 = vpop.xlane.xlu0 %2988
      %v2990 = vsel %vm491, %v2862, -inf
      %2991 = vmax.xlane.f32.xlu0 %v2990
      %v2992 = vpop.xlane.xlu0 %2991
      %v2993 = vsel %vm491, %v2863, -inf
      %2994 = vmax.xlane.f32.xlu0 %v2993
      %v2995 = vpop.xlane.xlu0 %2994
      %v2996 = vsel %vm491, %v2864, -inf
      %2997 = vmax.xlane.f32.xlu0 %v2996
      %v2998 = vpop.xlane.xlu0 %2997
      %v2999 = vsel %vm491, %v2865, -inf
      %3000 = vmax.xlane.f32.xlu0 %v2999
      %v3001 = vpop.xlane.xlu0 %3000
      %v3002 = vsel %vm491, %v2866, -inf
      %3003 = vmax.xlane.f32.xlu0 %v3002
      %v3004 = vpop.xlane.xlu0 %3003
      %v3005 = vsel %vm491, %v2867, -inf
      %3006 = vmax.xlane.f32.xlu0 %v3005
      %v3007 = vpop.xlane.xlu0 %3006
      %v3008 = vsel %vm491, %v2868, -inf
      %3009 = vmax.xlane.f32.xlu0 %v3008
      %v3010 = vpop.xlane.xlu0 %3009
      %v3011 = vsel %vm491, %v2869, -inf
      %3012 = vmax.xlane.f32.xlu0 %v3011
      %v3013 = vpop.xlane.xlu0 %3012
      %v3014 = vsub.f32 %v2822, %v2872
      %v3015 = vsub.f32 %v2823, %v2875
      %v3016 = vsub.f32 %v2824, %v2878
      %v3017 = vsub.f32 %v2825, %v2881
      %v3018 = vsub.f32 %v2826, %v2884
      %v3019 = vsub.f32 %v2827, %v2887
      %v3020 = vsub.f32 %v2828, %v2890
      %v3021 = vsub.f32 %v2829, %v2893
      %v3022 = vsub.f32 %v2830, %v2896
      %v3023 = vsub.f32 %v2831, %v2899
      %v3024 = vsub.f32 %v2832, %v2902
      %v3025 = vsub.f32 %v2833, %v2905
      %v3026 = vsub.f32 %v2834, %v2908
      %v3027 = vsub.f32 %v2835, %v2911
      %v3028 = vsub.f32 %v2836, %v2914
      %v3029 = vsub.f32 %v2837, %v2917
      %v3030 = vsub.f32 %v2838, %v2920
      %v3031 = vsub.f32 %v2839, %v2923
      %v3032 = vsub.f32 %v2840, %v2926
      %v3033 = vsub.f32 %v2841, %v2929
      %v3034 = vsub.f32 %v2842, %v2932
      %v3035 = vsub.f32 %v2843, %v2935
      %v3036 = vsub.f32 %v2844, %v2938
      %v3037 = vsub.f32 %v2845, %v2941
      %v3038 = vsub.f32 %v2846, %v2944
      %v3039 = vsub.f32 %v2847, %v2947
      %v3040 = vsub.f32 %v2848, %v2950
      %v3041 = vsub.f32 %v2849, %v2953
      %v3042 = vsub.f32 %v2850, %v2956
      %v3043 = vsub.f32 %v2851, %v2959
      %v3044 = vsub.f32 %v2852, %v2962
      %v3045 = vsub.f32 %v2853, %v2965
      %v3046 = vsub.f32 %v2854, %v2968
      %v3047 = vsub.f32 %v2855, %v2971
      %v3048 = vsub.f32 %v2856, %v2974
      %v3049 = vsub.f32 %v2857, %v2977
      %v3050 = vsub.f32 %v2858, %v2980
      %v3051 = vsub.f32 %v2859, %v2983
      %v3052 = vsub.f32 %v2860, %v2986
      %v3053 = vsub.f32 %v2861, %v2989
      %v3054 = vsub.f32 %v2862, %v2992
      %v3055 = vsub.f32 %v2863, %v2995
      %v3056 = vsub.f32 %v2864, %v2998
      %v3057 = vsub.f32 %v2865, %v3001
      %v3058 = vsub.f32 %v2866, %v3004
      %v3059 = vsub.f32 %v2867, %v3007
      %v3060 = vsub.f32 %v2868, %v3010
      %v3061 = vsub.f32 %v2869, %v3013
      %v3062 = vmul.f32 %v3014, 1.442695
      %v3063 = vpow.pop %v3062
      %v3064 = vmul.f32 %v3015, 1.442695
      %v3065 = vpow.pop %v3064
      %v3066 = vmul.f32 %v3016, 1.442695
      %v3067 = vpow.pop %v3066
      %v3068 = vmul.f32 %v3017, 1.442695
      %v3069 = vpow.pop %v3068
      %v3070 = vmul.f32 %v3018, 1.442695
      %v3071 = vpow.pop %v3070
      %v3072 = vmul.f32 %v3019, 1.442695
      %v3073 = vpow.pop %v3072
      %v3074 = vmul.f32 %v3020, 1.442695
      %v3075 = vpow.pop %v3074
      %v3076 = vmul.f32 %v3021, 1.442695
      %v3077 = vpow.pop %v3076
      %v3078 = vmul.f32 %v3022, 1.442695
      %v3079 = vpow.pop %v3078
      %v3080 = vmul.f32 %v3023, 1.442695
      %v3081 = vpow.pop %v3080
      %v3082 = vmul.f32 %v3024, 1.442695
      %v3083 = vpow.pop %v3082
      %v3084 = vmul.f32 %v3025, 1.442695
      %v3085 = vpow.pop %v3084
      %v3086 = vmul.f32 %v3026, 1.442695
      %v3087 = vpow.pop %v3086
      %v3088 = vmul.f32 %v3027, 1.442695
      %v3089 = vpow.pop %v3088
      %v3090 = vmul.f32 %v3028, 1.442695
      %v3091 = vpow.pop %v3090
      %v3092 = vmul.f32 %v3029, 1.442695
      %v3093 = vpow.pop %v3092
      %v3094 = vmul.f32 %v3030, 1.442695
      %v3095 = vpow.pop %v3094
      %v3096 = vmul.f32 %v3031, 1.442695
      %v3097 = vpow.pop %v3096
      %v3098 = vmul.f32 %v3032, 1.442695
      %v3099 = vpow.pop %v3098
      %v3100 = vmul.f32 %v3033, 1.442695
      %v3101 = vpow.pop %v3100
      %v3102 = vmul.f32 %v3034, 1.442695
      %v3103 = vpow.pop %v3102
      %v3104 = vmul.f32 %v3035, 1.442695
      %v3105 = vpow.pop %v3104
      %v3106 = vmul.f32 %v3036, 1.442695
      %v3107 = vpow.pop %v3106
      %v3108 = vmul.f32 %v3037, 1.442695
      %v3109 = vpow.pop %v3108
      %v3110 = vmul.f32 %v3038, 1.442695
      %v3111 = vpow.pop %v3110
      %v3112 = vmul.f32 %v3039, 1.442695
      %v3113 = vpow.pop %v3112
      %v3114 = vmul.f32 %v3040, 1.442695
      %v3115 = vpow.pop %v3114
      %v3116 = vmul.f32 %v3041, 1.442695
      %v3117 = vpow.pop %v3116
      %v3118 = vmul.f32 %v3042, 1.442695
      %v3119 = vpow.pop %v3118
      %v3120 = vmul.f32 %v3043, 1.442695
      %v3121 = vpow.pop %v3120
      %v3122 = vmul.f32 %v3044, 1.442695
      %v3123 = vpow.pop %v3122
      %v3124 = vmul.f32 %v3045, 1.442695
      %v3125 = vpow.pop %v3124
      %v3126 = vmul.f32 %v3046, 1.442695
      %v3127 = vpow.pop %v3126
      %v3128 = vmul.f32 %v3047, 1.442695
      %v3129 = vpow.pop %v3128
      %v3130 = vmul.f32 %v3048, 1.442695
      %v3131 = vpow.pop %v3130
      %v3132 = vmul.f32 %v3049, 1.442695
      %v3133 = vpow.pop %v3132
      %v3134 = vmul.f32 %v3050, 1.442695
      %v3135 = vpow.pop %v3134
      %v3136 = vmul.f32 %v3051, 1.442695
      %v3137 = vpow.pop %v3136
      %v3138 = vmul.f32 %v3052, 1.442695
      %v3139 = vpow.pop %v3138
      %v3140 = vmul.f32 %v3053, 1.442695
      %v3141 = vpow.pop %v3140
      %v3142 = vmul.f32 %v3054, 1.442695
      %v3143 = vpow.pop %v3142
      %v3144 = vmul.f32 %v3055, 1.442695
      %v3145 = vpow.pop %v3144
      %v3146 = vmul.f32 %v3056, 1.442695
      %v3147 = vpow.pop %v3146
      %v3148 = vmul.f32 %v3057, 1.442695
      %v3149 = vpow.pop %v3148
      %v3150 = vmul.f32 %v3058, 1.442695
      %v3151 = vpow.pop %v3150
      %v3152 = vmul.f32 %v3059, 1.442695
      %v3153 = vpow.pop %v3152
      %v3154 = vmul.f32 %v3060, 1.442695
      %v3155 = vpow.pop %v3154
      %v3156 = vmul.f32 %v3061, 1.442695
      %v3157 = vpow.pop %v3156
      %v3158 = vsel %vm491, %v3063, 0.0
      %3159 = vadd.xlane.f32.xlu0 %v3158
      %v3160 = vpop.xlane.xlu0 %3159
      %v3161 = vsel %vm491, %v3065, 0.0
      %3162 = vadd.xlane.f32.xlu0 %v3161
      %v3163 = vpop.xlane.xlu0 %3162
      %v3164 = vsel %vm491, %v3067, 0.0
      %3165 = vadd.xlane.f32.xlu0 %v3164
      %v3166 = vpop.xlane.xlu0 %3165
      %v3167 = vsel %vm491, %v3069, 0.0
      %3168 = vadd.xlane.f32.xlu0 %v3167
      %v3169 = vpop.xlane.xlu0 %3168
      %v3170 = vsel %vm491, %v3071, 0.0
      %3171 = vadd.xlane.f32.xlu0 %v3170
      %v3172 = vpop.xlane.xlu0 %3171
      %v3173 = vsel %vm491, %v3073, 0.0
      %3174 = vadd.xlane.f32.xlu0 %v3173
      %v3175 = vpop.xlane.xlu0 %3174
      %v3176 = vsel %vm491, %v3075, 0.0
      %3177 = vadd.xlane.f32.xlu0 %v3176
      %v3178 = vpop.xlane.xlu0 %3177
      %v3179 = vsel %vm491, %v3077, 0.0
      %3180 = vadd.xlane.f32.xlu0 %v3179
      %v3181 = vpop.xlane.xlu0 %3180
      %v3182 = vsel %vm491, %v3079, 0.0
      %3183 = vadd.xlane.f32.xlu0 %v3182
      %v3184 = vpop.xlane.xlu0 %3183
      %v3185 = vsel %vm491, %v3081, 0.0
      %3186 = vadd.xlane.f32.xlu0 %v3185
      %v3187 = vpop.xlane.xlu0 %3186
      %v3188 = vsel %vm491, %v3083, 0.0
      %3189 = vadd.xlane.f32.xlu0 %v3188
      %v3190 = vpop.xlane.xlu0 %3189
      %v3191 = vsel %vm491, %v3085, 0.0
      %3192 = vadd.xlane.f32.xlu0 %v3191
      %v3193 = vpop.xlane.xlu0 %3192
      %v3194 = vsel %vm491, %v3087, 0.0
      %3195 = vadd.xlane.f32.xlu0 %v3194
      %v3196 = vpop.xlane.xlu0 %3195
      %v3197 = vsel %vm491, %v3089, 0.0
      %3198 = vadd.xlane.f32.xlu0 %v3197
      %v3199 = vpop.xlane.xlu0 %3198
      %v3200 = vsel %vm491, %v3091, 0.0
      %3201 = vadd.xlane.f32.xlu0 %v3200
      %v3202 = vpop.xlane.xlu0 %3201
      %v3203 = vsel %vm491, %v3093, 0.0
      %3204 = vadd.xlane.f32.xlu0 %v3203
      %v3205 = vpop.xlane.xlu0 %3204
      %v3206 = vsel %vm491, %v3095, 0.0
      %3207 = vadd.xlane.f32.xlu0 %v3206
      %v3208 = vpop.xlane.xlu0 %3207
      %v3209 = vsel %vm491, %v3097, 0.0
      %3210 = vadd.xlane.f32.xlu0 %v3209
      %v3211 = vpop.xlane.xlu0 %3210
      %v3212 = vsel %vm491, %v3099, 0.0
      %3213 = vadd.xlane.f32.xlu0 %v3212
      %v3214 = vpop.xlane.xlu0 %3213
      %v3215 = vsel %vm491, %v3101, 0.0
      %3216 = vadd.xlane.f32.xlu0 %v3215
      %v3217 = vpop.xlane.xlu0 %3216
      %v3218 = vsel %vm491, %v3103, 0.0
      %3219 = vadd.xlane.f32.xlu0 %v3218
      %v3220 = vpop.xlane.xlu0 %3219
      %v3221 = vsel %vm491, %v3105, 0.0
      %3222 = vadd.xlane.f32.xlu0 %v3221
      %v3223 = vpop.xlane.xlu0 %3222
      %v3224 = vsel %vm491, %v3107, 0.0
      %3225 = vadd.xlane.f32.xlu0 %v3224
      %v3226 = vpop.xlane.xlu0 %3225
      %v3227 = vsel %vm491, %v3109, 0.0
      %3228 = vadd.xlane.f32.xlu0 %v3227
      %v3229 = vpop.xlane.xlu0 %3228
      %v3230 = vsel %vm491, %v3111, 0.0
      %3231 = vadd.xlane.f32.xlu0 %v3230
      %v3232 = vpop.xlane.xlu0 %3231
      %v3233 = vsel %vm491, %v3113, 0.0
      %3234 = vadd.xlane.f32.xlu0 %v3233
      %v3235 = vpop.xlane.xlu0 %3234
      %v3236 = vsel %vm491, %v3115, 0.0
      %3237 = vadd.xlane.f32.xlu0 %v3236
      %v3238 = vpop.xlane.xlu0 %3237
      %v3239 = vsel %vm491, %v3117, 0.0
      %3240 = vadd.xlane.f32.xlu0 %v3239
      %v3241 = vpop.xlane.xlu0 %3240
      %v3242 = vsel %vm491, %v3119, 0.0
      %3243 = vadd.xlane.f32.xlu0 %v3242
      %v3244 = vpop.xlane.xlu0 %3243
      %v3245 = vsel %vm491, %v3121, 0.0
      %3246 = vadd.xlane.f32.xlu0 %v3245
      %v3247 = vpop.xlane.xlu0 %3246
      %v3248 = vsel %vm491, %v3123, 0.0
      %3249 = vadd.xlane.f32.xlu0 %v3248
      %v3250 = vpop.xlane.xlu0 %3249
      %v3251 = vsel %vm491, %v3125, 0.0
      %3252 = vadd.xlane.f32.xlu0 %v3251
      %v3253 = vpop.xlane.xlu0 %3252
      %v3254 = vsel %vm491, %v3127, 0.0
      %3255 = vadd.xlane.f32.xlu0 %v3254
      %v3256 = vpop.xlane.xlu0 %3255
      %v3257 = vsel %vm491, %v3129, 0.0
      %3258 = vadd.xlane.f32.xlu0 %v3257
      %v3259 = vpop.xlane.xlu0 %3258
      %v3260 = vsel %vm491, %v3131, 0.0
      %3261 = vadd.xlane.f32.xlu0 %v3260
      %v3262 = vpop.xlane.xlu0 %3261
      %v3263 = vsel %vm491, %v3133, 0.0
      %3264 = vadd.xlane.f32.xlu0 %v3263
      %v3265 = vpop.xlane.xlu0 %3264
      %v3266 = vsel %vm491, %v3135, 0.0
      %3267 = vadd.xlane.f32.xlu0 %v3266
      %v3268 = vpop.xlane.xlu0 %3267
      %v3269 = vsel %vm491, %v3137, 0.0
      %3270 = vadd.xlane.f32.xlu0 %v3269
      %v3271 = vpop.xlane.xlu0 %3270
      %v3272 = vsel %vm491, %v3139, 0.0
      %3273 = vadd.xlane.f32.xlu0 %v3272
      %v3274 = vpop.xlane.xlu0 %3273
      %v3275 = vsel %vm491, %v3141, 0.0
      %3276 = vadd.xlane.f32.xlu0 %v3275
      %v3277 = vpop.xlane.xlu0 %3276
      %v3278 = vsel %vm491, %v3143, 0.0
      %3279 = vadd.xlane.f32.xlu0 %v3278
      %v3280 = vpop.xlane.xlu0 %3279
      %v3281 = vsel %vm491, %v3145, 0.0
      %3282 = vadd.xlane.f32.xlu0 %v3281
      %v3283 = vpop.xlane.xlu0 %3282
      %v3284 = vsel %vm491, %v3147, 0.0
      %3285 = vadd.xlane.f32.xlu0 %v3284
      %v3286 = vpop.xlane.xlu0 %3285
      %v3287 = vsel %vm491, %v3149, 0.0
      %3288 = vadd.xlane.f32.xlu0 %v3287
      %v3289 = vpop.xlane.xlu0 %3288
      %v3290 = vsel %vm491, %v3151, 0.0
      %3291 = vadd.xlane.f32.xlu0 %v3290
      %v3292 = vpop.xlane.xlu0 %3291
      %v3293 = vsel %vm491, %v3153, 0.0
      %3294 = vadd.xlane.f32.xlu0 %v3293
      %v3295 = vpop.xlane.xlu0 %3294
      %v3296 = vsel %vm491, %v3155, 0.0
      %3297 = vadd.xlane.f32.xlu0 %v3296
      %v3298 = vpop.xlane.xlu0 %3297
      %v3299 = vsel %vm491, %v3157, 0.0
      %3300 = vadd.xlane.f32.xlu0 %v3299
      %v3301 = vpop.xlane.xlu0 %3300
      %v3302 = vrcp.pop %v3160
      %v3303 = vrcp.pop %v3163
      %v3304 = vrcp.pop %v3166
      %v3305 = vrcp.pop %v3169
      %v3306 = vrcp.pop %v3172
      %v3307 = vrcp.pop %v3175
      %v3308 = vrcp.pop %v3178
      %v3309 = vrcp.pop %v3181
      %v3310 = vrcp.pop %v3184
      %v3311 = vrcp.pop %v3187
      %v3312 = vrcp.pop %v3190
      %v3313 = vrcp.pop %v3193
      %v3314 = vrcp.pop %v3196
      %v3315 = vrcp.pop %v3199
      %v3316 = vrcp.pop %v3202
      %v3317 = vrcp.pop %v3205
      %v3318 = vrcp.pop %v3208
      %v3319 = vrcp.pop %v3211
      %v3320 = vrcp.pop %v3214
      %v3321 = vrcp.pop %v3217
      %v3322 = vrcp.pop %v3220
      %v3323 = vrcp.pop %v3223
      %v3324 = vrcp.pop %v3226
      %v3325 = vrcp.pop %v3229
      %v3326 = vrcp.pop %v3232
      %v3327 = vrcp.pop %v3235
      %v3328 = vrcp.pop %v3238
      %v3329 = vrcp.pop %v3241
      %v3330 = vrcp.pop %v3244
      %v3331 = vrcp.pop %v3247
      %v3332 = vrcp.pop %v3250
      %v3333 = vrcp.pop %v3253
      %v3334 = vrcp.pop %v3256
      %v3335 = vrcp.pop %v3259
      %v3336 = vrcp.pop %v3262
      %v3337 = vrcp.pop %v3265
      %v3338 = vrcp.pop %v3268
      %v3339 = vrcp.pop %v3271
      %v3340 = vrcp.pop %v3274
      %v3341 = vrcp.pop %v3277
      %v3342 = vrcp.pop %v3280
      %v3343 = vrcp.pop %v3283
      %v3344 = vrcp.pop %v3286
      %v3345 = vrcp.pop %v3289
      %v3346 = vrcp.pop %v3292
      %v3347 = vrcp.pop %v3295
      %v3348 = vrcp.pop %v3298
      %v3349 = vrcp.pop %v3301
      %v3350 = vmul.f32 %v3063, %v3302
      %v3351 = vmul.f32 %v3065, %v3303
      %v3352 = vmul.f32 %v3067, %v3304
      %v3353 = vmul.f32 %v3069, %v3305
      %v3354 = vmul.f32 %v3071, %v3306
      %v3355 = vmul.f32 %v3073, %v3307
      %v3356 = vmul.f32 %v3075, %v3308
      %v3357 = vmul.f32 %v3077, %v3309
      %v3358 = vmul.f32 %v3079, %v3310
      %v3359 = vmul.f32 %v3081, %v3311
      %v3360 = vmul.f32 %v3083, %v3312
      %v3361 = vmul.f32 %v3085, %v3313
      %v3362 = vmul.f32 %v3087, %v3314
      %v3363 = vmul.f32 %v3089, %v3315
      %v3364 = vmul.f32 %v3091, %v3316
      %v3365 = vmul.f32 %v3093, %v3317
      %v3366 = vmul.f32 %v3095, %v3318
      %v3367 = vmul.f32 %v3097, %v3319
      %v3368 = vmul.f32 %v3099, %v3320
      %v3369 = vmul.f32 %v3101, %v3321
      %v3370 = vmul.f32 %v3103, %v3322
      %v3371 = vmul.f32 %v3105, %v3323
      %v3372 = vmul.f32 %v3107, %v3324
      %v3373 = vmul.f32 %v3109, %v3325
      %v3374 = vmul.f32 %v3111, %v3326
      %v3375 = vmul.f32 %v3113, %v3327
      %v3376 = vmul.f32 %v3115, %v3328
      %v3377 = vmul.f32 %v3117, %v3329
      %v3378 = vmul.f32 %v3119, %v3330
      %v3379 = vmul.f32 %v3121, %v3331
      %v3380 = vmul.f32 %v3123, %v3332
      %v3381 = vmul.f32 %v3125, %v3333
      %v3382 = vmul.f32 %v3127, %v3334
      %v3383 = vmul.f32 %v3129, %v3335
      %v3384 = vmul.f32 %v3131, %v3336
      %v3385 = vmul.f32 %v3133, %v3337
      %v3386 = vmul.f32 %v3135, %v3338
      %v3387 = vmul.f32 %v3137, %v3339
      %v3388 = vmul.f32 %v3139, %v3340
      %v3389 = vmul.f32 %v3141, %v3341
      %v3390 = vmul.f32 %v3143, %v3342
      %v3391 = vmul.f32 %v3145, %v3343
      %v3392 = vmul.f32 %v3147, %v3344
      %v3393 = vmul.f32 %v3149, %v3345
      %v3394 = vmul.f32 %v3151, %v3346
      %v3395 = vmul.f32 %v3153, %v3347
      %v3396 = vmul.f32 %v3155, %v3348
      %v3397 = vmul.f32 %v3157, %v3349
      %v3398 = vpack.c.bf16 %v2068, %v2068
      %v3399 = vpack.c.bf16 %v2069, %v2069
      %v3400 = vpack.c.bf16 %v2070, %v2070
      %v3401 = vpack.c.bf16 %v2071, %v2071
      %v3402 = vpack.c.bf16 %v2072, %v2072
      %v3403 = vpack.c.bf16 %v2073, %v2073
      %v3404 = vpack.c.bf16 %v3351, %v3350
      %v3405 = vpack.c.bf16 %v3353, %v3352
      %v3406 = vpack.c.bf16 %v3355, %v3354
      %v3407 = vpack.c.bf16 %v3357, %v3356
      %v3408 = vpack.c.bf16 %v3359, %v3358
      %v3409 = vpack.c.bf16 %v3361, %v3360
      %v3410 = vpack.c.bf16 %v3363, %v3362
      %v3411 = vpack.c.bf16 %v3365, %v3364
      %v3412 = vpack.c.bf16 %v3367, %v3366
      %v3413 = vpack.c.bf16 %v3369, %v3368
      %v3414 = vpack.c.bf16 %v3371, %v3370
      %v3415 = vpack.c.bf16 %v3373, %v3372
      %v3416 = vpack.c.bf16 %v3375, %v3374
      %v3417 = vpack.c.bf16 %v3377, %v3376
      %v3418 = vpack.c.bf16 %v3379, %v3378
      %v3419 = vpack.c.bf16 %v3381, %v3380
      %v3420 = vpack.c.bf16 %v3383, %v3382
      %v3421 = vpack.c.bf16 %v3385, %v3384
      %v3422 = vpack.c.bf16 %v3387, %v3386
      %v3423 = vpack.c.bf16 %v3389, %v3388
      %v3424 = vpack.c.bf16 %v3391, %v3390
      %v3425 = vpack.c.bf16 %v3393, %v3392
      %v3426 = vpack.c.bf16 %v3395, %v3394
      %v3427 = vpack.c.bf16 %v3397, %v3396
      %v3429 = vsel %vm491, %v3398, 0
      %v3432 = vsel %vm491, %v3404, 0
      %v3435 = vsel %vm491, %v3405, 0
      %v3438 = vsel %vm491, %v3406, 0
      %v3441 = vsel %vm491, %v3407, 0
      %3443 = vmatprep.subr.bf16.mxu0 0
      %3444 = vmatpush1.bf16.xpose.msra.mxu0 0
      %3445 = vmatprep.subr.bf16.mxu0 0
      %3446 = vmatpush1.bf16.xpose.msra.mxu0 0
      %3447 = vmatprep.subr.bf16.mxu0 0
      %3448 = vmatpush1.bf16.xpose.msra.mxu0 0
      %3449 = vmatprep.subr.bf16.mxu0 0
      %3450 = vmatpush1.bf16.xpose.msra.mxu0 0
      %3451 = vmatprep.subr.bf16.mxu0 0
      %3452 = vmatpush1.bf16.xpose.msra.mxu0 %v3441
      %3453 = vmatprep.subr.bf16.mxu0 0
      %3454 = vmatpush1.bf16.xpose.msra.mxu0 %v3438
      %3455 = vmatprep.subr.bf16.mxu0 0
      %3456 = vmatpush1.bf16.xpose.msra.mxu0 %v3435
      %3457 = vmatprep.subr.bf16.mxu0 0
      %3458 = vmatpush1.bf16.xpose.msra.mxu0 %v3432
      %3459 = vmatprep.subr.bf16.mxu0 0
      %3460 = vmatpush2.bf16.xpose.msra.mxu0 0
      %3461 = vmatprep.subr.bf16.mxu0 0
      %3462 = vmatpush2.bf16.xpose.msra.mxu0 0
      %3463 = vmatprep.subr.bf16.mxu0 0
      %3464 = vmatpush2.bf16.xpose.msra.mxu0 0
      %3465 = vmatprep.subr.bf16.mxu0 0
      %3466 = vmatpush2.bf16.xpose.msra.mxu0 0
      %3467 = vmatprep.subr.bf16.mxu0 0
      %3468 = vmatpush2.bf16.xpose.msra.mxu0 0
      %3469 = vmatprep.subr.bf16.mxu0 0
      %3470 = vmatpush2.bf16.xpose.msra.mxu0 0
      %3471 = vmatprep.subr.bf16.mxu0 0
      %3472 = vmatpush2.bf16.xpose.msra.mxu0 0
      %3473 = vmatprep.subr.bf16.mxu0 0
      %3474 = vmatpush2.bf16.xpose.msra.mxu0 0
      %3475 = vmatprep.mubr.bf16.mxu0 0
      %3476 = vmatmul.mubr.bf16.gmra.mxu0 %v3429
      %v3477 = vpop.f32.mrf.mxu0
      %v3478 = vadd.f32 0.0, %v3477
      %v3479 = vpop.f32.mrf.mxu0
      %v3480 = vpop.f32.mrf.mxu0
      %v3481 = vpop.f32.mrf.mxu0
      %3482 = vdwg.mxu0
      %v3484 = vsel %vm491, %v3399, 0
      %v3487 = vsel %vm491, %v3408, 0
      %v3490 = vsel %vm491, %v3409, 0
      %v3493 = vsel %vm491, %v3410, 0
      %v3496 = vsel %vm491, %v3411, 0
      %3498 = vmatprep.subr.bf16.mxu0 0
      %3499 = vmatpush1.bf16.xpose.msra.mxu0 0
      %3500 = vmatprep.subr.bf16.mxu0 0
      %3501 = vmatpush1.bf16.xpose.msra.mxu0 0
      %3502 = vmatprep.subr.bf16.mxu0 0
      %3503 = vmatpush1.bf16.xpose.msra.mxu0 0
      %3504 = vmatprep.subr.bf16.mxu0 0
      %3505 = vmatpush1.bf16.xpose.msra.mxu0 0
      %3506 = vmatprep.subr.bf16.mxu0 0
      %3507 = vmatpush1.bf16.xpose.msra.mxu0 %v3496
      %3508 = vmatprep.subr.bf16.mxu0 0
      %3509 = vmatpush1.bf16.xpose.msra.mxu0 %v3493
      %3510 = vmatprep.subr.bf16.mxu0 0
      %3511 = vmatpush1.bf16.xpose.msra.mxu0 %v3490
      %3512 = vmatprep.subr.bf16.mxu0 0
      %3513 = vmatpush1.bf16.xpose.msra.mxu0 %v3487
      %3514 = vmatprep.subr.bf16.mxu0 0
      %3515 = vmatpush2.bf16.xpose.msra.mxu0 0
      %3516 = vmatprep.subr.bf16.mxu0 0
      %3517 = vmatpush2.bf16.xpose.msra.mxu0 0
      %3518 = vmatprep.subr.bf16.mxu0 0
      %3519 = vmatpush2.bf16.xpose.msra.mxu0 0
      %3520 = vmatprep.subr.bf16.mxu0 0
      %3521 = vmatpush2.bf16.xpose.msra.mxu0 0
      %3522 = vmatprep.subr.bf16.mxu0 0
      %3523 = vmatpush2.bf16.xpose.msra.mxu0 0
      %3524 = vmatprep.subr.bf16.mxu0 0
      %3525 = vmatpush2.bf16.xpose.msra.mxu0 0
      %3526 = vmatprep.subr.bf16.mxu0 0
      %3527 = vmatpush2.bf16.xpose.msra.mxu0 0
      %3528 = vmatprep.subr.bf16.mxu0 0
      %3529 = vmatpush2.bf16.xpose.msra.mxu0 0
      %3530 = vmatprep.mubr.bf16.mxu0 0
      %3531 = vmatmul.mubr.bf16.gmra.mxu0 %v3484
      %v3532 = vpop.f32.mrf.mxu0
      %v3533 = vadd.f32 0.0, %v3532
      %v3534 = vpop.f32.mrf.mxu0
      %v3535 = vpop.f32.mrf.mxu0
      %v3536 = vpop.f32.mrf.mxu0
      %3537 = vdwg.mxu0
      %v3539 = vsel %vm491, %v3400, 0
      %v3542 = vsel %vm491, %v3412, 0
      %v3545 = vsel %vm491, %v3413, 0
      %v3548 = vsel %vm491, %v3414, 0
      %v3551 = vsel %vm491, %v3415, 0
      %3553 = vmatprep.subr.bf16.mxu0 0
      %3554 = vmatpush1.bf16.xpose.msra.mxu0 0
      %3555 = vmatprep.subr.bf16.mxu0 0
      %3556 = vmatpush1.bf16.xpose.msra.mxu0 0
      %3557 = vmatprep.subr.bf16.mxu0 0
      %3558 = vmatpush1.bf16.xpose.msra.mxu0 0
      %3559 = vmatprep.subr.bf16.mxu0 0
      %3560 = vmatpush1.bf16.xpose.msra.mxu0 0
      %3561 = vmatprep.subr.bf16.mxu0 0
      %3562 = vmatpush1.bf16.xpose.msra.mxu0 %v3551
      %3563 = vmatprep.subr.bf16.mxu0 0
      %3564 = vmatpush1.bf16.xpose.msra.mxu0 %v3548
      %3565 = vmatprep.subr.bf16.mxu0 0
      %3566 = vmatpush1.bf16.xpose.msra.mxu0 %v3545
      %3567 = vmatprep.subr.bf16.mxu0 0
      %3568 = vmatpush1.bf16.xpose.msra.mxu0 %v3542
      %3569 = vmatprep.subr.bf16.mxu0 0
      %3570 = vmatpush2.bf16.xpose.msra.mxu0 0
      %3571 = vmatprep.subr.bf16.mxu0 0
      %3572 = vmatpush2.bf16.xpose.msra.mxu0 0
      %3573 = vmatprep.subr.bf16.mxu0 0
      %3574 = vmatpush2.bf16.xpose.msra.mxu0 0
      %3575 = vmatprep.subr.bf16.mxu0 0
      %3576 = vmatpush2.bf16.xpose.msra.mxu0 0
      %3577 = vmatprep.subr.bf16.mxu0 0
      %3578 = vmatpush2.bf16.xpose.msra.mxu0 0
      %3579 = vmatprep.subr.bf16.mxu0 0
      %3580 = vmatpush2.bf16.xpose.msra.mxu0 0
      %3581 = vmatprep.subr.bf16.mxu0 0
      %3582 = vmatpush2.bf16.xpose.msra.mxu0 0
      %3583 = vmatprep.subr.bf16.mxu0 0
      %3584 = vmatpush2.bf16.xpose.msra.mxu0 0
      %3585 = vmatprep.mubr.bf16.mxu0 0
      %3586 = vmatmul.mubr.bf16.gmra.mxu0 %v3539
      %v3587 = vpop.f32.mrf.mxu0
      %v3588 = vadd.f32 0.0, %v3587
      %v3589 = vpop.f32.mrf.mxu0
      %v3590 = vpop.f32.mrf.mxu0
      %v3591 = vpop.f32.mrf.mxu0
      %3592 = vdwg.mxu0
      %v3594 = vsel %vm491, %v3401, 0
      %v3597 = vsel %vm491, %v3416, 0
      %v3600 = vsel %vm491, %v3417, 0
      %v3603 = vsel %vm491, %v3418, 0
      %v3606 = vsel %vm491, %v3419, 0
      %3608 = vmatprep.subr.bf16.mxu0 0
      %3609 = vmatpush1.bf16.xpose.msra.mxu0 0
      %3610 = vmatprep.subr.bf16.mxu0 0
      %3611 = vmatpush1.bf16.xpose.msra.mxu0 0
      %3612 = vmatprep.subr.bf16.mxu0 0
      %3613 = vmatpush1.bf16.xpose.msra.mxu0 0
      %3614 = vmatprep.subr.bf16.mxu0 0
      %3615 = vmatpush1.bf16.xpose.msra.mxu0 0
      %3616 = vmatprep.subr.bf16.mxu0 0
      %3617 = vmatpush1.bf16.xpose.msra.mxu0 %v3606
      %3618 = vmatprep.subr.bf16.mxu0 0
      %3619 = vmatpush1.bf16.xpose.msra.mxu0 %v3603
      %3620 = vmatprep.subr.bf16.mxu0 0
      %3621 = vmatpush1.bf16.xpose.msra.mxu0 %v3600
      %3622 = vmatprep.subr.bf16.mxu0 0
      %3623 = vmatpush1.bf16.xpose.msra.mxu0 %v3597
      %3624 = vmatprep.subr.bf16.mxu0 0
      %3625 = vmatpush2.bf16.xpose.msra.mxu0 0
      %3626 = vmatprep.subr.bf16.mxu0 0
      %3627 = vmatpush2.bf16.xpose.msra.mxu0 0
      %3628 = vmatprep.subr.bf16.mxu0 0
      %3629 = vmatpush2.bf16.xpose.msra.mxu0 0
      %3630 = vmatprep.subr.bf16.mxu0 0
      %3631 = vmatpush2.bf16.xpose.msra.mxu0 0
      %3632 = vmatprep.subr.bf16.mxu0 0
      %3633 = vmatpush2.bf16.xpose.msra.mxu0 0
      %3634 = vmatprep.subr.bf16.mxu0 0
      %3635 = vmatpush2.bf16.xpose.msra.mxu0 0
      %3636 = vmatprep.subr.bf16.mxu0 0
      %3637 = vmatpush2.bf16.xpose.msra.mxu0 0
      %3638 = vmatprep.subr.bf16.mxu0 0
      %3639 = vmatpush2.bf16.xpose.msra.mxu0 0
      %3640 = vmatprep.mubr.bf16.mxu0 0
      %3641 = vmatmul.mubr.bf16.gmra.mxu0 %v3594
      %v3642 = vpop.f32.mrf.mxu0
      %v3643 = vadd.f32 0.0, %v3642
      %v3644 = vpop.f32.mrf.mxu0
      %v3645 = vpop.f32.mrf.mxu0
      %v3646 = vpop.f32.mrf.mxu0
      %3647 = vdwg.mxu0
      %v3649 = vsel %vm491, %v3402, 0
      %v3652 = vsel %vm491, %v3420, 0
      %v3655 = vsel %vm491, %v3421, 0
      %v3658 = vsel %vm491, %v3422, 0
      %v3661 = vsel %vm491, %v3423, 0
      %3663 = vmatprep.subr.bf16.mxu0 0
      %3664 = vmatpush1.bf16.xpose.msra.mxu0 0
      %3665 = vmatprep.subr.bf16.mxu0 0
      %3666 = vmatpush1.bf16.xpose.msra.mxu0 0
      %3667 = vmatprep.subr.bf16.mxu0 0
      %3668 = vmatpush1.bf16.xpose.msra.mxu0 0
      %3669 = vmatprep.subr.bf16.mxu0 0
      %3670 = vmatpush1.bf16.xpose.msra.mxu0 0
      %3671 = vmatprep.subr.bf16.mxu0 0
      %3672 = vmatpush1.bf16.xpose.msra.mxu0 %v3661
      %3673 = vmatprep.subr.bf16.mxu0 0
      %3674 = vmatpush1.bf16.xpose.msra.mxu0 %v3658
      %3675 = vmatprep.subr.bf16.mxu0 0
      %3676 = vmatpush1.bf16.xpose.msra.mxu0 %v3655
      %3677 = vmatprep.subr.bf16.mxu0 0
      %3678 = vmatpush1.bf16.xpose.msra.mxu0 %v3652
      %3679 = vmatprep.subr.bf16.mxu0 0
      %3680 = vmatpush2.bf16.xpose.msra.mxu0 0
      %3681 = vmatprep.subr.bf16.mxu0 0
      %3682 = vmatpush2.bf16.xpose.msra.mxu0 0
      %3683 = vmatprep.subr.bf16.mxu0 0
      %3684 = vmatpush2.bf16.xpose.msra.mxu0 0
      %3685 = vmatprep.subr.bf16.mxu0 0
      %3686 = vmatpush2.bf16.xpose.msra.mxu0 0
      %3687 = vmatprep.subr.bf16.mxu0 0
      %3688 = vmatpush2.bf16.xpose.msra.mxu0 0
      %3689 = vmatprep.subr.bf16.mxu0 0
      %3690 = vmatpush2.bf16.xpose.msra.mxu0 0
      %3691 = vmatprep.subr.bf16.mxu0 0
      %3692 = vmatpush2.bf16.xpose.msra.mxu0 0
      %3693 = vmatprep.subr.bf16.mxu0 0
      %3694 = vmatpush2.bf16.xpose.msra.mxu0 0
      %3695 = vmatprep.mubr.bf16.mxu0 0
      %3696 = vmatmul.mubr.bf16.gmra.mxu0 %v3649
      %v3697 = vpop.f32.mrf.mxu0
      %v3698 = vadd.f32 0.0, %v3697
      %v3699 = vpop.f32.mrf.mxu0
      %v3700 = vpop.f32.mrf.mxu0
      %v3701 = vpop.f32.mrf.mxu0
      %3702 = vdwg.mxu0
      %v3704 = vsel %vm491, %v3403, 0
      %v3707 = vsel %vm491, %v3424, 0
      %v3710 = vsel %vm491, %v3425, 0
      %v3713 = vsel %vm491, %v3426, 0
      %v3716 = vsel %vm491, %v3427, 0
      %3718 = vmatprep.subr.bf16.mxu0 0
      %3719 = vmatpush1.bf16.xpose.msra.mxu0 0
      %3720 = vmatprep.subr.bf16.mxu0 0
      %3721 = vmatpush1.bf16.xpose.msra.mxu0 0
      %3722 = vmatprep.subr.bf16.mxu0 0
      %3723 = vmatpush1.bf16.xpose.msra.mxu0 0
      %3724 = vmatprep.subr.bf16.mxu0 0
      %3725 = vmatpush1.bf16.xpose.msra.mxu0 0
      %3726 = vmatprep.subr.bf16.mxu0 0
      %3727 = vmatpush1.bf16.xpose.msra.mxu0 %v3716
      %3728 = vmatprep.subr.bf16.mxu0 0
      %3729 = vmatpush1.bf16.xpose.msra.mxu0 %v3713
      %3730 = vmatprep.subr.bf16.mxu0 0
      %3731 = vmatpush1.bf16.xpose.msra.mxu0 %v3710
      %3732 = vmatprep.subr.bf16.mxu0 0
      %3733 = vmatpush1.bf16.xpose.msra.mxu0 %v3707
      %3734 = vmatprep.subr.bf16.mxu0 0
      %3735 = vmatpush2.bf16.xpose.msra.mxu0 0
      %3736 = vmatprep.subr.bf16.mxu0 0
      %3737 = vmatpush2.bf16.xpose.msra.mxu0 0
      %3738 = vmatprep.subr.bf16.mxu0 0
      %3739 = vmatpush2.bf16.xpose.msra.mxu0 0
      %3740 = vmatprep.subr.bf16.mxu0 0
      %3741 = vmatpush2.bf16.xpose.msra.mxu0 0
      %3742 = vmatprep.subr.bf16.mxu0 0
      %3743 = vmatpush2.bf16.xpose.msra.mxu0 0
      %3744 = vmatprep.subr.bf16.mxu0 0
      %3745 = vmatpush2.bf16.xpose.msra.mxu0 0
      %3746 = vmatprep.subr.bf16.mxu0 0
      %3747 = vmatpush2.bf16.xpose.msra.mxu0 0
      %3748 = vmatprep.subr.bf16.mxu0 0
      %3749 = vmatpush2.bf16.xpose.msra.mxu0 0
      %3750 = vmatprep.mubr.bf16.mxu0 0
      %3751 = vmatmul.mubr.bf16.gmra.mxu0 %v3704
      %v3752 = vpop.f32.mrf.mxu0
      %v3753 = vadd.f32 0.0, %v3752
      %v3754 = vpop.f32.mrf.mxu0
      %v3755 = vpop.f32.mrf.mxu0
      %v3756 = vpop.f32.mrf.mxu0
      %3757 = vdwg.mxu0
      %3758 = vxpose.xlu0.b32.start [1/16] %v3478, 128
      %3759 = vxpose.xlu0.b32.cont [2/16] %v3533, 128
      %3760 = vxpose.xlu0.b32.cont [3/16] %v3588, 128
      %3761 = vxpose.xlu0.b32.cont [4/16] %v3643, 128
      %3762 = vxpose.xlu0.b32.cont [5/16] %v3698, 128
      %3763 = vxpose.xlu0.b32.cont [6/16] %v3753, 128
      %3764 = vxpose.xlu0.b32.cont [7/16] 0.0, 128
      %3765 = vxpose.xlu0.b32.cont [8/16] 0.0, 128
      %3766 = vxpose.xlu0.b32.cont [9/16] 0.0, 128
      %3767 = vxpose.xlu0.b32.cont [10/16] 0.0, 128
      %3768 = vxpose.xlu0.b32.cont [11/16] 0.0, 128
      %3769 = vxpose.xlu0.b32.cont [12/16] 0.0, 128
      %3770 = vxpose.xlu0.b32.cont [13/16] 0.0, 128
      %3771 = vxpose.xlu0.b32.cont [14/16] 0.0, 128
      %3772 = vxpose.xlu0.b32.cont [15/16] 0.0, 128
      %3773 = vxpose.xlu0.b32.end [16/16] 0.0, 128
      %v3774 = vpop.trf.xlu0
      %v3775 = vpop.trf.xlu0
      %v3776 = vpop.trf.xlu0
      %v3777 = vpop.trf.xlu0
      %v3778 = vpop.trf.xlu0
      %v3779 = vpop.trf.xlu0
      %v3780 = vpop.trf.xlu0
      %v3781 = vpop.trf.xlu0
      %v3782 = vpop.trf.xlu0
      %v3783 = vpop.trf.xlu0
      %v3784 = vpop.trf.xlu0
      %v3785 = vpop.trf.xlu0
      %v3786 = vpop.trf.xlu0
      %v3787 = vpop.trf.xlu0
      %v3788 = vpop.trf.xlu0
      %v3789 = vpop.trf.xlu0
      %v3790 = vlaneseq
      %v3791 = vshrl.u32 %v3790, 7
      %v3792 = vsub.s32 0, %v3791
      %v3793 = vrot.slane %v246, %v3792
      %v3794 = vadd.f32 %v3774, %v3793
      %v3795 = vadd.f32 %v3775, %v3793
      %v3796 = vadd.f32 %v3776, %v3793
      %v3797 = vadd.f32 %v3777, %v3793
      %v3798 = vadd.f32 %v3778, %v3793
      %v3799 = vadd.f32 %v3779, %v3793
      %v3800 = vadd.f32 %v3780, %v3793
      %v3801 = vadd.f32 %v3781, %v3793
      %v3802 = vsel %vm961, %v3794, 0.0
      %3803 = vadd.xlane.f32.xlu0 %v3802
      %v3804 = vpop.xlane.xlu0 %3803
      %v3805 = vsel %vm961, %v3795, 0.0
      %3806 = vadd.xlane.f32.xlu0 %v3805
      %v3807 = vpop.xlane.xlu0 %3806
      %v3808 = vsel %vm961, %v3796, 0.0
      %3809 = vadd.xlane.f32.xlu0 %v3808
      %v3810 = vpop.xlane.xlu0 %3809
      %v3811 = vsel %vm961, %v3797, 0.0
      %3812 = vadd.xlane.f32.xlu0 %v3811
      %v3813 = vpop.xlane.xlu0 %3812
      %v3814 = vsel %vm961, %v3798, 0.0
      %3815 = vadd.xlane.f32.xlu0 %v3814
      %v3816 = vpop.xlane.xlu0 %3815
      %v3817 = vsel %vm961, %v3799, 0.0
      %3818 = vadd.xlane.f32.xlu0 %v3817
      %v3819 = vpop.xlane.xlu0 %3818
      %v3820 = vsel %vm961, %v3800, 0.0
      %3821 = vadd.xlane.f32.xlu0 %v3820
      %v3822 = vpop.xlane.xlu0 %3821
      %v3823 = vsel %vm961, %v3801, 0.0
      %3824 = vadd.xlane.f32.xlu0 %v3823
      %v3825 = vpop.xlane.xlu0 %3824
      %v3826 = vmul.f32 %v3804, %v986
      %v3827 = vmul.f32 %v3807, %v986
      %v3828 = vmul.f32 %v3810, %v986
      %v3829 = vmul.f32 %v3813, %v986
      %v3830 = vmul.f32 %v3816, %v986
      %v3831 = vmul.f32 %v3819, %v986
      %v3832 = vmul.f32 %v3822, %v986
      %v3833 = vmul.f32 %v3825, %v986
      %v3834 = vsub.f32 %v3794, %v3826
      %v3835 = vsub.f32 %v3795, %v3827
      %v3836 = vsub.f32 %v3796, %v3828
      %v3837 = vsub.f32 %v3797, %v3829
      %v3838 = vsub.f32 %v3798, %v3830
      %v3839 = vsub.f32 %v3799, %v3831
      %v3840 = vsub.f32 %v3800, %v3832
      %v3841 = vsub.f32 %v3801, %v3833
      %v3842 = vmul.f32 %v3834, %v3834
      %v3843 = vmul.f32 %v3835, %v3835
      %v3844 = vmul.f32 %v3836, %v3836
      %v3845 = vmul.f32 %v3837, %v3837
      %v3846 = vmul.f32 %v3838, %v3838
      %v3847 = vmul.f32 %v3839, %v3839
      %v3848 = vmul.f32 %v3840, %v3840
      %v3849 = vmul.f32 %v3841, %v3841
      %v3850 = vsel %vm961, %v3842, 0.0
      %3851 = vadd.xlane.f32.xlu0 %v3850
      %v3852 = vpop.xlane.xlu0 %3851
      %v3853 = vsel %vm961, %v3843, 0.0
      %3854 = vadd.xlane.f32.xlu0 %v3853
      %v3855 = vpop.xlane.xlu0 %3854
      %v3856 = vsel %vm961, %v3844, 0.0
      %3857 = vadd.xlane.f32.xlu0 %v3856
      %v3858 = vpop.xlane.xlu0 %3857
      %v3859 = vsel %vm961, %v3845, 0.0
      %3860 = vadd.xlane.f32.xlu0 %v3859
      %v3861 = vpop.xlane.xlu0 %3860
      %v3862 = vsel %vm961, %v3846, 0.0
      %3863 = vadd.xlane.f32.xlu0 %v3862
      %v3864 = vpop.xlane.xlu0 %3863
      %v3865 = vsel %vm961, %v3847, 0.0
      %3866 = vadd.xlane.f32.xlu0 %v3865
      %v3867 = vpop.xlane.xlu0 %3866
      %v3868 = vsel %vm961, %v3848, 0.0
      %3869 = vadd.xlane.f32.xlu0 %v3868
      %v3870 = vpop.xlane.xlu0 %3869
      %v3871 = vsel %vm961, %v3849, 0.0
      %3872 = vadd.xlane.f32.xlu0 %v3871
      %v3873 = vpop.xlane.xlu0 %3872
      %v3874 = vmul.f32 %v3852, %v986
      %v3875 = vmul.f32 %v3855, %v986
      %v3876 = vmul.f32 %v3858, %v986
      %v3877 = vmul.f32 %v3861, %v986
      %v3878 = vmul.f32 %v3864, %v986
      %v3879 = vmul.f32 %v3867, %v986
      %v3880 = vmul.f32 %v3870, %v986
      %v3881 = vmul.f32 %v3873, %v986
      %v3882 = vadd.f32 %v3874, 1e-05
      %v3883 = vadd.f32 %v3875, 1e-05
      %v3884 = vadd.f32 %v3876, 1e-05
      %v3885 = vadd.f32 %v3877, 1e-05
      %v3886 = vadd.f32 %v3878, 1e-05
      %v3887 = vadd.f32 %v3879, 1e-05
      %v3888 = vadd.f32 %v3880, 1e-05
      %v3889 = vadd.f32 %v3881, 1e-05
      %v3890 = vrsqrt.pop %v3882
      %v3891 = vrsqrt.pop %v3883
      %v3892 = vrsqrt.pop %v3884
      %v3893 = vrsqrt.pop %v3885
      %v3894 = vrsqrt.pop %v3886
      %v3895 = vrsqrt.pop %v3887
      %v3896 = vrsqrt.pop %v3888
      %v3897 = vrsqrt.pop %v3889
      %v3898 = vmul.f32 %v3834, %v3890
      %v3899 = vmul.f32 %v3835, %v3891
      %v3900 = vmul.f32 %v3836, %v3892
      %v3901 = vmul.f32 %v3837, %v3893
      %v3902 = vmul.f32 %v3838, %v3894
      %v3903 = vmul.f32 %v3839, %v3895
      %v3904 = vmul.f32 %v3840, %v3896
      %v3905 = vmul.f32 %v3841, %v3897
      %v3906 = vlaneseq
      %v3907 = vshrl.u32 %v3906, 7
      %v3908 = vsub.s32 7, %v3907
      %v3909 = vrot.slane %v246, %v3908
      %v3910 = vmul.f32 %v3898, %v3909
      %v3911 = vmul.f32 %v3899, %v3909
      %v3912 = vmul.f32 %v3900, %v3909
      %v3913 = vmul.f32 %v3901, %v3909
      %v3914 = vmul.f32 %v3902, %v3909
      %v3915 = vmul.f32 %v3903, %v3909
      %v3916 = vmul.f32 %v3904, %v3909
      %v3917 = vmul.f32 %v3905, %v3909
      %v3918 = vlaneseq
      %v3919 = vshrl.u32 %v3918, 7
      %v3920 = vsub.s32 0, %v3919
      %v3921 = vrot.slane %v247, %v3920
      %v3922 = vadd.f32 %v3910, %v3921
      %v3923 = vadd.f32 %v3911, %v3921
      %v3924 = vadd.f32 %v3912, %v3921
      %v3925 = vadd.f32 %v3913, %v3921
      %v3926 = vadd.f32 %v3914, %v3921
      %v3927 = vadd.f32 %v3915, %v3921
      %v3928 = vadd.f32 %v3916, %v3921
      %v3929 = vadd.f32 %v3917, %v3921
      %v3930 = vxor.u32 %v3922, 2147483648
      %v3931 = vxor.u32 %v3923, 2147483648
      %v3932 = vxor.u32 %v3924, 2147483648
      %v3933 = vxor.u32 %v3925, 2147483648
      %v3934 = vxor.u32 %v3926, 2147483648
      %v3935 = vxor.u32 %v3927, 2147483648
      %v3936 = vxor.u32 %v3928, 2147483648
      %v3937 = vxor.u32 %v3929, 2147483648
      %v3938 = vmul.f32 %v3930, 1.442695
      %v3939 = vpow.pop %v3938
      %v3940 = vmul.f32 %v3931, 1.442695
      %v3941 = vpow.pop %v3940
      %v3942 = vmul.f32 %v3932, 1.442695
      %v3943 = vpow.pop %v3942
      %v3944 = vmul.f32 %v3933, 1.442695
      %v3945 = vpow.pop %v3944
      %v3946 = vmul.f32 %v3934, 1.442695
      %v3947 = vpow.pop %v3946
      %v3948 = vmul.f32 %v3935, 1.442695
      %v3949 = vpow.pop %v3948
      %v3950 = vmul.f32 %v3936, 1.442695
      %v3951 = vpow.pop %v3950
      %v3952 = vmul.f32 %v3937, 1.442695
      %v3953 = vpow.pop %v3952
      %v3954 = vadd.f32 %v3939, 1.0
      %v3955 = vadd.f32 %v3941, 1.0
      %v3956 = vadd.f32 %v3943, 1.0
      %v3957 = vadd.f32 %v3945, 1.0
      %v3958 = vadd.f32 %v3947, 1.0
      %v3959 = vadd.f32 %v3949, 1.0
      %v3960 = vadd.f32 %v3951, 1.0
      %v3961 = vadd.f32 %v3953, 1.0
      %v3962 = vrcp.pop %v3954
      %v3963 = vmul.f32 1.0, %v3962
      %v3964 = vrcp.pop %v3955
      %v3965 = vmul.f32 1.0, %v3964
      %v3966 = vrcp.pop %v3956
      %v3967 = vmul.f32 1.0, %v3966
      %v3968 = vrcp.pop %v3957
      %v3969 = vmul.f32 1.0, %v3968
      %v3970 = vrcp.pop %v3958
      %v3971 = vmul.f32 1.0, %v3970
      %v3972 = vrcp.pop %v3959
      %v3973 = vmul.f32 1.0, %v3972
      %v3974 = vrcp.pop %v3960
      %v3975 = vmul.f32 1.0, %v3974
      %v3976 = vrcp.pop %v3961
      %v3977 = vmul.f32 1.0, %v3976
      %v3978 = vmul.f32 %v3922, %v3963
      %v3979 = vmul.f32 %v3923, %v3965
      %v3980 = vmul.f32 %v3924, %v3967
      %v3981 = vmul.f32 %v3925, %v3969
      %v3982 = vmul.f32 %v3926, %v3971
      %v3983 = vmul.f32 %v3927, %v3973
      %v3984 = vmul.f32 %v3928, %v3975
      %v3985 = vmul.f32 %v3929, %v3977
      %v3986 = vadd.f32 %v3978, %v1935
      %v3987 = vadd.f32 %v3979, %v1936
      %v3988 = vadd.f32 %v3980, %v1937
      %v3989 = vadd.f32 %v3981, %v1938
      %v3990 = vadd.f32 %v3982, %v1939
      %v3991 = vadd.f32 %v3983, %v1940
      %v3992 = vadd.f32 %v3984, %v1941
      %v3993 = vadd.f32 %v3985, %v1942
      %v3994 = vld [vmem:[%s3 + $0x58] sm:$0xf]
      %v3995 = vld [vmem:[%s3 + $0x5c] sm:$0xf]
      %v3996 = vld [vmem:[%s3 + $0x60] sm:$0xf]
      %v3997 = vld [vmem:[%s3 + $0x64] sm:$0xf]
      %v3998 = vld [vmem:[%s3 + $0x68] sm:$0xf]
      %v3999 = vld [vmem:[%s3 + $0x6c] sm:$0xf]
      %v4000 = vpack.c.bf16 %v3987, %v3986
      %v4001 = vpack.c.bf16 %v3989, %v3988
      %v4002 = vpack.c.bf16 %v3991, %v3990
      %v4003 = vpack.c.bf16 %v3993, %v3992
      %v4004 = vld [vmem:[%s3 + $0x70] sm:$0xf]
      %v4005 = vld [vmem:[%s3 + $0x74] sm:$0xf]
      %v4006 = vld [vmem:[%s3 + $0x78] sm:$0xf]
      %v4007 = vpack.c.bf16 %v780, %v779
      %v4008 = vpack.c.bf16 %v782, %v781
      %v4009 = vpack.c.bf16 %v784, %v783
      %v4010 = vpack.c.bf16 %v786, %v785
      %v4014 = vunpack.c.l.b16 %v4004
      %v4015 = vunpack.c.l.b16 %v4005
      %v4016 = vunpack.c.l.b16 %v4006
      %v4017 = vpack.c.b16 %v4015, %v4014
      %v4018 = vpack.c.b16 %v4016, %v4016
      %v4021 = vsel %vm601, %v4007, 0
      %v4024 = vsel %vm601, %v4008, 0
      %v4027 = vsel %vm601, %v4009, 0
      %v4030 = vsel %vm601, %v4010, 0
      %vm4032 = vcmask 1043456
      %v4034 = vsel %vm4032, %v4018, 0
      %4036 = vmatprep.subr.bf16.mxu0 0
      %4037 = vmatpush1.bf16.msra.mxu0 0
      %4038 = vmatprep.subr.bf16.mxu0 0
      %4039 = vmatpush1.bf16.msra.mxu0 0
      %4040 = vmatprep.subr.bf16.mxu0 0
      %4041 = vmatpush1.bf16.msra.mxu0 0
      %4042 = vmatprep.subr.bf16.mxu0 0
      %4043 = vmatpush1.bf16.msra.mxu0 0
      %4044 = vmatprep.subr.bf16.mxu0 0
      %4045 = vmatpush1.bf16.msra.mxu0 0
      %4046 = vmatprep.subr.bf16.mxu0 0
      %4047 = vmatpush1.bf16.msra.mxu0 0
      %4048 = vmatprep.subr.bf16.mxu0 0
      %4049 = vmatpush1.bf16.msra.mxu0 %v4034
      %4050 = vmatprep.subr.bf16.mxu0 0
      %4051 = vmatpush1.bf16.msra.mxu0 %v4017
      %4052 = vmatprep.subr.bf16.mxu0 0
      %4053 = vmatpush2.bf16.msra.mxu0 0
      %4054 = vmatprep.subr.bf16.mxu0 0
      %4055 = vmatpush2.bf16.msra.mxu0 0
      %4056 = vmatprep.subr.bf16.mxu0 0
      %4057 = vmatpush2.bf16.msra.mxu0 0
      %4058 = vmatprep.subr.bf16.mxu0 0
      %4059 = vmatpush2.bf16.msra.mxu0 0
      %4060 = vmatprep.subr.bf16.mxu0 0
      %4061 = vmatpush2.bf16.msra.mxu0 0
      %4062 = vmatprep.subr.bf16.mxu0 0
      %4063 = vmatpush2.bf16.msra.mxu0 0
      %4064 = vmatprep.subr.bf16.mxu0 0
      %4065 = vmatpush2.bf16.msra.mxu0 0
      %4066 = vmatprep.subr.bf16.mxu0 0
      %4067 = vmatpush2.bf16.msra.mxu0 0
      %4068 = vmatprep.mubr.bf16.mxu0 0
      %4069 = vmatmul.mubr.bf16.gmra.mxu0 %v4021
      %v4070 = vpop.f32.mrf.mxu0
      %v4071 = vadd.f32 0.0, %v4070
      %v4072 = vpop.f32.mrf.mxu0
      %v4073 = vpop.f32.mrf.mxu0
      %v4074 = vadd.f32 0.0, %v4073
      %v4075 = vpop.f32.mrf.mxu0
      %4076 = vmatprep.mubr.bf16.mxu0 0
      %4077 = vmatmul.mubr.bf16.gmra.mxu0 %v4024
      %v4078 = vpop.f32.mrf.mxu0
      %v4079 = vadd.f32 0.0, %v4078
      %v4080 = vpop.f32.mrf.mxu0
      %v4081 = vpop.f32.mrf.mxu0
      %v4082 = vadd.f32 0.0, %v4081
      %v4083 = vpop.f32.mrf.mxu0
      %4084 = vmatprep.mubr.bf16.mxu0 0
      %4085 = vmatmul.mubr.bf16.gmra.mxu0 %v4027
      %v4086 = vpop.f32.mrf.mxu0
      %v4087 = vadd.f32 0.0, %v4086
      %v4088 = vpop.f32.mrf.mxu0
      %v4089 = vpop.f32.mrf.mxu0
      %v4090 = vadd.f32 0.0, %v4089
      %v4091 = vpop.f32.mrf.mxu0
      %4092 = vmatprep.mubr.bf16.mxu0 0
      %4093 = vmatmul.mubr.bf16.gmra.mxu0 %v4030
      %v4094 = vpop.f32.mrf.mxu0
      %v4095 = vadd.f32 0.0, %v4094
      %v4096 = vpop.f32.mrf.mxu0
      %v4097 = vpop.f32.mrf.mxu0
      %v4098 = vadd.f32 0.0, %v4097
      %v4099 = vpop.f32.mrf.mxu0
      %4100 = vdwg.mxu0
      %v4107 = vunpack.c.l.b16 %v3994
      %v4108 = vunpack.c.l.b16 %v3995
      %v4109 = vunpack.c.l.b16 %v3996
      %v4110 = vunpack.c.l.b16 %v3997
      %v4111 = vunpack.c.l.b16 %v3998
      %v4112 = vunpack.c.l.b16 %v3999
      %v4113 = vpack.c.b16 %v4108, %v4107
      %v4114 = vpack.c.b16 %v4110, %v4109
      %v4115 = vpack.c.b16 %v4112, %v4111
      %v4120 = vsel %vm961, %v4000, 0
      %v4123 = vsel %vm961, %v4001, 0
      %v4126 = vsel %vm961, %v4002, 0
      %v4129 = vsel %vm961, %v4003, 0
      %4131 = vmatprep.subr.bf16.mxu0 0
      %4132 = vmatpush1.bf16.msra.mxu0 0
      %4133 = vmatprep.subr.bf16.mxu0 0
      %4134 = vmatpush1.bf16.msra.mxu0 0
      %4135 = vmatprep.subr.bf16.mxu0 0
      %4136 = vmatpush1.bf16.msra.mxu0 0
      %4137 = vmatprep.subr.bf16.mxu0 0
      %4138 = vmatpush1.bf16.msra.mxu0 0
      %4139 = vmatprep.subr.bf16.mxu0 0
      %4140 = vmatpush1.bf16.msra.mxu0 0
      %4141 = vmatprep.subr.bf16.mxu0 0
      %4142 = vmatpush1.bf16.msra.mxu0 %v4115
      %4143 = vmatprep.subr.bf16.mxu0 0
      %4144 = vmatpush1.bf16.msra.mxu0 %v4114
      %4145 = vmatprep.subr.bf16.mxu0 0
      %4146 = vmatpush1.bf16.msra.mxu0 %v4113
      %4147 = vmatprep.subr.bf16.mxu0 0
      %4148 = vmatpush2.bf16.msra.mxu0 0
      %4149 = vmatprep.subr.bf16.mxu0 0
      %4150 = vmatpush2.bf16.msra.mxu0 0
      %4151 = vmatprep.subr.bf16.mxu0 0
      %4152 = vmatpush2.bf16.msra.mxu0 0
      %4153 = vmatprep.subr.bf16.mxu0 0
      %4154 = vmatpush2.bf16.msra.mxu0 0
      %4155 = vmatprep.subr.bf16.mxu0 0
      %4156 = vmatpush2.bf16.msra.mxu0 0
      %4157 = vmatprep.subr.bf16.mxu0 0
      %4158 = vmatpush2.bf16.msra.mxu0 0
      %4159 = vmatprep.subr.bf16.mxu0 0
      %4160 = vmatpush2.bf16.msra.mxu0 0
      %4161 = vmatprep.subr.bf16.mxu0 0
      %4162 = vmatpush2.bf16.msra.mxu0 0
      %4163 = vmatprep.mubr.bf16.mxu0 0
      %4164 = vmatmul.mubr.bf16.gmra.mxu0 %v4120
      %v4165 = vpop.f32.mrf.mxu0
      %v4166 = vadd.f32 %v4071, %v4165
      %v4167 = vpop.f32.mrf.mxu0
      %v4168 = vpop.f32.mrf.mxu0
      %v4169 = vadd.f32 %v4074, %v4168
      %v4170 = vpop.f32.mrf.mxu0
      %4171 = vmatprep.mubr.bf16.mxu0 0
      %4172 = vmatmul.mubr.bf16.gmra.mxu0 %v4123
      %v4173 = vpop.f32.mrf.mxu0
      %v4174 = vadd.f32 %v4079, %v4173
      %v4175 = vpop.f32.mrf.mxu0
      %v4176 = vpop.f32.mrf.mxu0
      %v4177 = vadd.f32 %v4082, %v4176
      %v4178 = vpop.f32.mrf.mxu0
      %4179 = vmatprep.mubr.bf16.mxu0 0
      %4180 = vmatmul.mubr.bf16.gmra.mxu0 %v4126
      %v4181 = vpop.f32.mrf.mxu0
      %v4182 = vadd.f32 %v4087, %v4181
      %v4183 = vpop.f32.mrf.mxu0
      %v4184 = vpop.f32.mrf.mxu0
      %v4185 = vadd.f32 %v4090, %v4184
      %v4186 = vpop.f32.mrf.mxu0
      %4187 = vmatprep.mubr.bf16.mxu0 0
      %4188 = vmatmul.mubr.bf16.gmra.mxu0 %v4129
      %v4189 = vpop.f32.mrf.mxu0
      %v4190 = vadd.f32 %v4095, %v4189
      %v4191 = vpop.f32.mrf.mxu0
      %v4192 = vpop.f32.mrf.mxu0
      %v4193 = vadd.f32 %v4098, %v4192
      %v4194 = vpop.f32.mrf.mxu0
      %4195 = vdwg.mxu0
      %v4196 = vlaneseq
      %v4197 = vshrl.u32 %v4196, 7
      %v4198 = vsub.s32 1, %v4197
      %v4199 = vrot.slane %v247, %v4198
      %v4200 = vadd.f32 %v4166, %v4199
      %v4201 = vadd.f32 %v4169, %v4199
      %v4202 = vadd.f32 %v4174, %v4199
      %v4203 = vadd.f32 %v4177, %v4199
      %v4204 = vadd.f32 %v4182, %v4199
      %v4205 = vadd.f32 %v4185, %v4199
      %v4206 = vadd.f32 %v4190, %v4199
      %v4207 = vadd.f32 %v4193, %v4199
      %v4208 = vsel %vm961, %v4200, 0.0
      %4209 = vadd.xlane.f32.xlu0 %v4208
      %v4210 = vpop.xlane.xlu0 %4209
      %v4211 = vsel %vm961, %v4201, 0.0
      %4212 = vadd.xlane.f32.xlu0 %v4211
      %v4213 = vpop.xlane.xlu0 %4212
      %v4214 = vsel %vm961, %v4202, 0.0
      %4215 = vadd.xlane.f32.xlu0 %v4214
      %v4216 = vpop.xlane.xlu0 %4215
      %v4217 = vsel %vm961, %v4203, 0.0
      %4218 = vadd.xlane.f32.xlu0 %v4217
      %v4219 = vpop.xlane.xlu0 %4218
      %v4220 = vsel %vm961, %v4204, 0.0
      %4221 = vadd.xlane.f32.xlu0 %v4220
      %v4222 = vpop.xlane.xlu0 %4221
      %v4223 = vsel %vm961, %v4205, 0.0
      %4224 = vadd.xlane.f32.xlu0 %v4223
      %v4225 = vpop.xlane.xlu0 %4224
      %v4226 = vsel %vm961, %v4206, 0.0
      %4227 = vadd.xlane.f32.xlu0 %v4226
      %v4228 = vpop.xlane.xlu0 %4227
      %v4229 = vsel %vm961, %v4207, 0.0
      %4230 = vadd.xlane.f32.xlu0 %v4229
      %v4231 = vpop.xlane.xlu0 %4230
      %v4232 = vmul.f32 %v4210, %v986
      %v4233 = vmul.f32 %v4213, %v986
      %v4234 = vmul.f32 %v4216, %v986
      %v4235 = vmul.f32 %v4219, %v986
      %v4236 = vmul.f32 %v4222, %v986
      %v4237 = vmul.f32 %v4225, %v986
      %v4238 = vmul.f32 %v4228, %v986
      %v4239 = vmul.f32 %v4231, %v986
      %v4240 = vsub.f32 %v4200, %v4232
      %v4241 = vsub.f32 %v4201, %v4233
      %v4242 = vsub.f32 %v4202, %v4234
      %v4243 = vsub.f32 %v4203, %v4235
      %v4244 = vsub.f32 %v4204, %v4236
      %v4245 = vsub.f32 %v4205, %v4237
      %v4246 = vsub.f32 %v4206, %v4238
      %v4247 = vsub.f32 %v4207, %v4239
      %v4248 = vmul.f32 %v4240, %v4240
      %v4249 = vmul.f32 %v4241, %v4241
      %v4250 = vmul.f32 %v4242, %v4242
      %v4251 = vmul.f32 %v4243, %v4243
      %v4252 = vmul.f32 %v4244, %v4244
      %v4253 = vmul.f32 %v4245, %v4245
      %v4254 = vmul.f32 %v4246, %v4246
      %v4255 = vmul.f32 %v4247, %v4247
      %v4256 = vsel %vm961, %v4248, 0.0
      %4257 = vadd.xlane.f32.xlu0 %v4256
      %v4258 = vpop.xlane.xlu0 %4257
      %v4259 = vsel %vm961, %v4249, 0.0
      %4260 = vadd.xlane.f32.xlu0 %v4259
      %v4261 = vpop.xlane.xlu0 %4260
      %v4262 = vsel %vm961, %v4250, 0.0
      %4263 = vadd.xlane.f32.xlu0 %v4262
      %v4264 = vpop.xlane.xlu0 %4263
      %v4265 = vsel %vm961, %v4251, 0.0
      %4266 = vadd.xlane.f32.xlu0 %v4265
      %v4267 = vpop.xlane.xlu0 %4266
      %v4268 = vsel %vm961, %v4252, 0.0
      %4269 = vadd.xlane.f32.xlu0 %v4268
      %v4270 = vpop.xlane.xlu0 %4269
      %v4271 = vsel %vm961, %v4253, 0.0
      %4272 = vadd.xlane.f32.xlu0 %v4271
      %v4273 = vpop.xlane.xlu0 %4272
      %v4274 = vsel %vm961, %v4254, 0.0
      %4275 = vadd.xlane.f32.xlu0 %v4274
      %v4276 = vpop.xlane.xlu0 %4275
      %v4277 = vsel %vm961, %v4255, 0.0
      %4278 = vadd.xlane.f32.xlu0 %v4277
      %v4279 = vpop.xlane.xlu0 %4278
      %v4280 = vmul.f32 %v4258, %v986
      %v4281 = vmul.f32 %v4261, %v986
      %v4282 = vmul.f32 %v4264, %v986
      %v4283 = vmul.f32 %v4267, %v986
      %v4284 = vmul.f32 %v4270, %v986
      %v4285 = vmul.f32 %v4273, %v986
      %v4286 = vmul.f32 %v4276, %v986
      %v4287 = vmul.f32 %v4279, %v986
      %v4288 = vadd.f32 %v4280, 1e-05
      %v4289 = vadd.f32 %v4281, 1e-05
      %v4290 = vadd.f32 %v4282, 1e-05
      %v4291 = vadd.f32 %v4283, 1e-05
      %v4292 = vadd.f32 %v4284, 1e-05
      %v4293 = vadd.f32 %v4285, 1e-05
      %v4294 = vadd.f32 %v4286, 1e-05
      %v4295 = vadd.f32 %v4287, 1e-05
      %v4296 = vrsqrt.pop %v4288
      %v4297 = vrsqrt.pop %v4289
      %v4298 = vrsqrt.pop %v4290
      %v4299 = vrsqrt.pop %v4291
      %v4300 = vrsqrt.pop %v4292
      %v4301 = vrsqrt.pop %v4293
      %v4302 = vrsqrt.pop %v4294
      %v4303 = vrsqrt.pop %v4295
      %v4304 = vmul.f32 %v4240, %v4296
      %v4305 = vmul.f32 %v4241, %v4297
      %v4306 = vmul.f32 %v4242, %v4298
      %v4307 = vmul.f32 %v4243, %v4299
      %v4308 = vmul.f32 %v4244, %v4300
      %v4309 = vmul.f32 %v4245, %v4301
      %v4310 = vmul.f32 %v4246, %v4302
      %v4311 = vmul.f32 %v4247, %v4303
      %v4312 = vlaneseq
      %v4313 = vshrl.u32 %v4312, 7
      %v4314 = vsub.s32 2, %v4313
      %v4315 = vrot.slane %v247, %v4314
      %v4316 = vmul.f32 %v4304, %v4315
      %v4317 = vmul.f32 %v4305, %v4315
      %v4318 = vmul.f32 %v4306, %v4315
      %v4319 = vmul.f32 %v4307, %v4315
      %v4320 = vmul.f32 %v4308, %v4315
      %v4321 = vmul.f32 %v4309, %v4315
      %v4322 = vmul.f32 %v4310, %v4315
      %v4323 = vmul.f32 %v4311, %v4315
      %v4324 = vlaneseq
      %v4325 = vshrl.u32 %v4324, 7
      %v4326 = vsub.s32 3, %v4325
      %v4327 = vrot.slane %v247, %v4326
      %v4328 = vadd.f32 %v4316, %v4327
      %v4329 = vadd.f32 %v4317, %v4327
      %v4330 = vadd.f32 %v4318, %v4327
      %v4331 = vadd.f32 %v4319, %v4327
      %v4332 = vadd.f32 %v4320, %v4327
      %v4333 = vadd.f32 %v4321, %v4327
      %v4334 = vadd.f32 %v4322, %v4327
      %v4335 = vadd.f32 %v4323, %v4327
      %v4336 = vxor.u32 %v4328, 2147483648
      %v4337 = vxor.u32 %v4329, 2147483648
      %v4338 = vxor.u32 %v4330, 2147483648
      %v4339 = vxor.u32 %v4331, 2147483648
      %v4340 = vxor.u32 %v4332, 2147483648
      %v4341 = vxor.u32 %v4333, 2147483648
      %v4342 = vxor.u32 %v4334, 2147483648
      %v4343 = vxor.u32 %v4335, 2147483648
      %v4344 = vmul.f32 %v4336, 1.442695
      %v4345 = vpow.pop %v4344
      %v4346 = vmul.f32 %v4337, 1.442695
      %v4347 = vpow.pop %v4346
      %v4348 = vmul.f32 %v4338, 1.442695
      %v4349 = vpow.pop %v4348
      %v4350 = vmul.f32 %v4339, 1.442695
      %v4351 = vpow.pop %v4350
      %v4352 = vmul.f32 %v4340, 1.442695
      %v4353 = vpow.pop %v4352
      %v4354 = vmul.f32 %v4341, 1.442695
      %v4355 = vpow.pop %v4354
      %v4356 = vmul.f32 %v4342, 1.442695
      %v4357 = vpow.pop %v4356
      %v4358 = vmul.f32 %v4343, 1.442695
      %v4359 = vpow.pop %v4358
      %v4360 = vadd.f32 %v4345, 1.0
      %v4361 = vadd.f32 %v4347, 1.0
      %v4362 = vadd.f32 %v4349, 1.0
      %v4363 = vadd.f32 %v4351, 1.0
      %v4364 = vadd.f32 %v4353, 1.0
      %v4365 = vadd.f32 %v4355, 1.0
      %v4366 = vadd.f32 %v4357, 1.0
      %v4367 = vadd.f32 %v4359, 1.0
      %v4368 = vrcp.pop %v4360
      %v4369 = vmul.f32 1.0, %v4368
      %v4370 = vrcp.pop %v4361
      %v4371 = vmul.f32 1.0, %v4370
      %v4372 = vrcp.pop %v4362
      %v4373 = vmul.f32 1.0, %v4372
      %v4374 = vrcp.pop %v4363
      %v4375 = vmul.f32 1.0, %v4374
      %v4376 = vrcp.pop %v4364
      %v4377 = vmul.f32 1.0, %v4376
      %v4378 = vrcp.pop %v4365
      %v4379 = vmul.f32 1.0, %v4378
      %v4380 = vrcp.pop %v4366
      %v4381 = vmul.f32 1.0, %v4380
      %v4382 = vrcp.pop %v4367
      %v4383 = vmul.f32 1.0, %v4382
      %v4384 = vmul.f32 %v4328, %v4369
      %v4385 = vmul.f32 %v4329, %v4371
      %v4386 = vmul.f32 %v4330, %v4373
      %v4387 = vmul.f32 %v4331, %v4375
      %v4388 = vmul.f32 %v4332, %v4377
      %v4389 = vmul.f32 %v4333, %v4379
      %v4390 = vmul.f32 %v4334, %v4381
      %v4391 = vmul.f32 %v4335, %v4383
      %v4392 = vld [vmem:[%s3 + $0x7c] sm:$0xf]
      %v4393 = vld [vmem:[%s3 + $0x80] sm:$0xf]
      %v4394 = vld [vmem:[%s3 + $0x84] sm:$0xf]
      %v4395 = vld [vmem:[%s3 + $0x88] sm:$0xf]
      %v4396 = vld [vmem:[%s3 + $0x8c] sm:$0xf]
      %v4397 = vld [vmem:[%s3 + $0x90] sm:$0xf]
      %v4398 = vpack.c.bf16 %v4385, %v4384
      %v4399 = vpack.c.bf16 %v4387, %v4386
      %v4400 = vpack.c.bf16 %v4389, %v4388
      %v4401 = vpack.c.bf16 %v4391, %v4390
      %v4402 = vlaneseq
      %v4403 = vshrl.u32 %v4402, 7
      %v4404 = vsub.s32 4, %v4403
      %v4405 = vrot.slane %v247, %v4404
      %v4412 = vunpack.c.l.b16 %v4392
      %v4413 = vunpack.c.l.b16 %v4393
      %v4414 = vunpack.c.l.b16 %v4394
      %v4415 = vunpack.c.l.b16 %v4395
      %v4416 = vunpack.c.l.b16 %v4396
      %v4417 = vunpack.c.l.b16 %v4397
      %v4418 = vpack.c.b16 %v4413, %v4412
      %v4419 = vpack.c.b16 %v4415, %v4414
      %v4420 = vpack.c.b16 %v4417, %v4416
      %v4425 = vsel %vm961, %v4398, 0
      %v4428 = vsel %vm961, %v4399, 0
      %v4431 = vsel %vm961, %v4400, 0
      %v4434 = vsel %vm961, %v4401, 0
      %4436 = vmatprep.subr.bf16.mxu0 0
      %4437 = vmatpush1.bf16.msra.mxu0 0
      %4438 = vmatprep.subr.bf16.mxu0 0
      %4439 = vmatpush1.bf16.msra.mxu0 0
      %4440 = vmatprep.subr.bf16.mxu0 0
      %4441 = vmatpush1.bf16.msra.mxu0 0
      %4442 = vmatprep.subr.bf16.mxu0 0
      %4443 = vmatpush1.bf16.msra.mxu0 0
      %4444 = vmatprep.subr.bf16.mxu0 0
      %4445 = vmatpush1.bf16.msra.mxu0 0
      %4446 = vmatprep.subr.bf16.mxu0 0
      %4447 = vmatpush1.bf16.msra.mxu0 %v4420
      %4448 = vmatprep.subr.bf16.mxu0 0
      %4449 = vmatpush1.bf16.msra.mxu0 %v4419
      %4450 = vmatprep.subr.bf16.mxu0 0
      %4451 = vmatpush1.bf16.msra.mxu0 %v4418
      %4452 = vmatprep.subr.bf16.mxu0 0
      %4453 = vmatpush2.bf16.msra.mxu0 0
      %4454 = vmatprep.subr.bf16.mxu0 0
      %4455 = vmatpush2.bf16.msra.mxu0 0
      %4456 = vmatprep.subr.bf16.mxu0 0
      %4457 = vmatpush2.bf16.msra.mxu0 0
      %4458 = vmatprep.subr.bf16.mxu0 0
      %4459 = vmatpush2.bf16.msra.mxu0 0
      %4460 = vmatprep.subr.bf16.mxu0 0
      %4461 = vmatpush2.bf16.msra.mxu0 0
      %4462 = vmatprep.subr.bf16.mxu0 0
      %4463 = vmatpush2.bf16.msra.mxu0 0
      %4464 = vmatprep.subr.bf16.mxu0 0
      %4465 = vmatpush2.bf16.msra.mxu0 0
      %4466 = vmatprep.subr.bf16.mxu0 0
      %4467 = vmatpush2.bf16.msra.mxu0 0
      %4468 = vmatprep.mubr.bf16.mxu0 0
      %4469 = vmatmul.mubr.bf16.gmra.mxu0 %v4425
      %v4470 = vpop.f32.mrf.mxu0
      %v4471 = vadd.f32 %v4405, %v4470
      %v4472 = vpop.f32.mrf.mxu0
      %v4473 = vpop.f32.mrf.mxu0
      %v4474 = vadd.f32 %v4405, %v4473
      %v4475 = vpop.f32.mrf.mxu0
      %4476 = vmatprep.mubr.bf16.mxu0 0
      %4477 = vmatmul.mubr.bf16.gmra.mxu0 %v4428
      %v4478 = vpop.f32.mrf.mxu0
      %v4479 = vadd.f32 %v4405, %v4478
      %v4480 = vpop.f32.mrf.mxu0
      %v4481 = vpop.f32.mrf.mxu0
      %v4482 = vadd.f32 %v4405, %v4481
      %v4483 = vpop.f32.mrf.mxu0
      %4484 = vmatprep.mubr.bf16.mxu0 0
      %4485 = vmatmul.mubr.bf16.gmra.mxu0 %v4431
      %v4486 = vpop.f32.mrf.mxu0
      %v4487 = vadd.f32 %v4405, %v4486
      %v4488 = vpop.f32.mrf.mxu0
      %v4489 = vpop.f32.mrf.mxu0
      %v4490 = vadd.f32 %v4405, %v4489
      %v4491 = vpop.f32.mrf.mxu0
      %4492 = vmatprep.mubr.bf16.mxu0 0
      %4493 = vmatmul.mubr.bf16.gmra.mxu0 %v4434
      %v4494 = vpop.f32.mrf.mxu0
      %v4495 = vadd.f32 %v4405, %v4494
      %v4496 = vpop.f32.mrf.mxu0
      %v4497 = vpop.f32.mrf.mxu0
      %v4498 = vadd.f32 %v4405, %v4497
      %v4499 = vpop.f32.mrf.mxu0
      %4500 = vdwg.mxu0
      %v4501 = vsel %vm601, %v4471, 0.0
      %4502 = vadd.xlane.f32.xlu0 %v4501
      %v4503 = vpop.xlane.xlu0 %4502
      %v4504 = vsel %vm601, %v4474, 0.0
      %4505 = vadd.xlane.f32.xlu0 %v4504
      %v4506 = vpop.xlane.xlu0 %4505
      %v4507 = vsel %vm601, %v4479, 0.0
      %4508 = vadd.xlane.f32.xlu0 %v4507
      %v4509 = vpop.xlane.xlu0 %4508
      %v4510 = vsel %vm601, %v4482, 0.0
      %4511 = vadd.xlane.f32.xlu0 %v4510
      %v4512 = vpop.xlane.xlu0 %4511
      %v4513 = vsel %vm601, %v4487, 0.0
      %4514 = vadd.xlane.f32.xlu0 %v4513
      %v4515 = vpop.xlane.xlu0 %4514
      %v4516 = vsel %vm601, %v4490, 0.0
      %4517 = vadd.xlane.f32.xlu0 %v4516
      %v4518 = vpop.xlane.xlu0 %4517
      %v4519 = vsel %vm601, %v4495, 0.0
      %4520 = vadd.xlane.f32.xlu0 %v4519
      %v4521 = vpop.xlane.xlu0 %4520
      %v4522 = vsel %vm601, %v4498, 0.0
      %4523 = vadd.xlane.f32.xlu0 %v4522
      %v4524 = vpop.xlane.xlu0 %4523
      %v4525 = vmul.f32 %v4503, %v626
      %v4526 = vmul.f32 %v4506, %v626
      %v4527 = vmul.f32 %v4509, %v626
      %v4528 = vmul.f32 %v4512, %v626
      %v4529 = vmul.f32 %v4515, %v626
      %v4530 = vmul.f32 %v4518, %v626
      %v4531 = vmul.f32 %v4521, %v626
      %v4532 = vmul.f32 %v4524, %v626
      %v4533 = vsub.f32 %v4471, %v4525
      %v4534 = vsub.f32 %v4474, %v4526
      %v4535 = vsub.f32 %v4479, %v4527
      %v4536 = vsub.f32 %v4482, %v4528
      %v4537 = vsub.f32 %v4487, %v4529
      %v4538 = vsub.f32 %v4490, %v4530
      %v4539 = vsub.f32 %v4495, %v4531
      %v4540 = vsub.f32 %v4498, %v4532
      %v4541 = vmul.f32 %v4533, %v4533
      %v4542 = vmul.f32 %v4534, %v4534
      %v4543 = vmul.f32 %v4535, %v4535
      %v4544 = vmul.f32 %v4536, %v4536
      %v4545 = vmul.f32 %v4537, %v4537
      %v4546 = vmul.f32 %v4538, %v4538
      %v4547 = vmul.f32 %v4539, %v4539
      %v4548 = vmul.f32 %v4540, %v4540
      %v4549 = vsel %vm601, %v4541, 0.0
      %4550 = vadd.xlane.f32.xlu0 %v4549
      %v4551 = vpop.xlane.xlu0 %4550
      %v4552 = vsel %vm601, %v4542, 0.0
      %4553 = vadd.xlane.f32.xlu0 %v4552
      %v4554 = vpop.xlane.xlu0 %4553
      %v4555 = vsel %vm601, %v4543, 0.0
      %4556 = vadd.xlane.f32.xlu0 %v4555
      %v4557 = vpop.xlane.xlu0 %4556
      %v4558 = vsel %vm601, %v4544, 0.0
      %4559 = vadd.xlane.f32.xlu0 %v4558
      %v4560 = vpop.xlane.xlu0 %4559
      %v4561 = vsel %vm601, %v4545, 0.0
      %4562 = vadd.xlane.f32.xlu0 %v4561
      %v4563 = vpop.xlane.xlu0 %4562
      %v4564 = vsel %vm601, %v4546, 0.0
      %4565 = vadd.xlane.f32.xlu0 %v4564
      %v4566 = vpop.xlane.xlu0 %4565
      %v4567 = vsel %vm601, %v4547, 0.0
      %4568 = vadd.xlane.f32.xlu0 %v4567
      %v4569 = vpop.xlane.xlu0 %4568
      %v4570 = vsel %vm601, %v4548, 0.0
      %4571 = vadd.xlane.f32.xlu0 %v4570
      %v4572 = vpop.xlane.xlu0 %4571
      %v4573 = vmul.f32 %v4551, %v626
      %v4574 = vmul.f32 %v4554, %v626
      %v4575 = vmul.f32 %v4557, %v626
      %v4576 = vmul.f32 %v4560, %v626
      %v4577 = vmul.f32 %v4563, %v626
      %v4578 = vmul.f32 %v4566, %v626
      %v4579 = vmul.f32 %v4569, %v626
      %v4580 = vmul.f32 %v4572, %v626
      %v4581 = vadd.f32 %v4573, 1e-05
      %v4582 = vadd.f32 %v4574, 1e-05
      %v4583 = vadd.f32 %v4575, 1e-05
      %v4584 = vadd.f32 %v4576, 1e-05
      %v4585 = vadd.f32 %v4577, 1e-05
      %v4586 = vadd.f32 %v4578, 1e-05
      %v4587 = vadd.f32 %v4579, 1e-05
      %v4588 = vadd.f32 %v4580, 1e-05
      %v4589 = vrsqrt.pop %v4581
      %v4590 = vrsqrt.pop %v4582
      %v4591 = vrsqrt.pop %v4583
      %v4592 = vrsqrt.pop %v4584
      %v4593 = vrsqrt.pop %v4585
      %v4594 = vrsqrt.pop %v4586
      %v4595 = vrsqrt.pop %v4587
      %v4596 = vrsqrt.pop %v4588
      %v4597 = vmul.f32 %v4533, %v4589
      %v4598 = vmul.f32 %v4534, %v4590
      %v4599 = vmul.f32 %v4535, %v4591
      %v4600 = vmul.f32 %v4536, %v4592
      %v4601 = vmul.f32 %v4537, %v4593
      %v4602 = vmul.f32 %v4538, %v4594
      %v4603 = vmul.f32 %v4539, %v4595
      %v4604 = vmul.f32 %v4540, %v4596
      %v4605 = vlaneseq
      %v4606 = vshrl.u32 %v4605, 7
      %v4607 = vsub.s32 5, %v4606
      %v4608 = vrot.slane %v247, %v4607
      %v4609 = vmul.f32 %v4597, %v4608
      %v4610 = vmul.f32 %v4598, %v4608
      %v4611 = vmul.f32 %v4599, %v4608
      %v4612 = vmul.f32 %v4600, %v4608
      %v4613 = vmul.f32 %v4601, %v4608
      %v4614 = vmul.f32 %v4602, %v4608
      %v4615 = vmul.f32 %v4603, %v4608
      %v4616 = vmul.f32 %v4604, %v4608
      %v4617 = vlaneseq
      %v4618 = vshrl.u32 %v4617, 7
      %v4619 = vsub.s32 6, %v4618
      %v4620 = vrot.slane %v247, %v4619
      %v4621 = vadd.f32 %v4609, %v4620
      %v4622 = vadd.f32 %v4610, %v4620
      %v4623 = vadd.f32 %v4611, %v4620
      %v4624 = vadd.f32 %v4612, %v4620
      %v4625 = vadd.f32 %v4613, %v4620
      %v4626 = vadd.f32 %v4614, %v4620
      %v4627 = vadd.f32 %v4615, %v4620
      %v4628 = vadd.f32 %v4616, %v4620
      %v4629 = vxor.u32 %v4621, 2147483648
      %v4630 = vxor.u32 %v4622, 2147483648
      %v4631 = vxor.u32 %v4623, 2147483648
      %v4632 = vxor.u32 %v4624, 2147483648
      %v4633 = vxor.u32 %v4625, 2147483648
      %v4634 = vxor.u32 %v4626, 2147483648
      %v4635 = vxor.u32 %v4627, 2147483648
      %v4636 = vxor.u32 %v4628, 2147483648
      %v4637 = vmul.f32 %v4629, 1.442695
      %v4638 = vpow.pop %v4637
      %v4639 = vmul.f32 %v4630, 1.442695
      %v4640 = vpow.pop %v4639
      %v4641 = vmul.f32 %v4631, 1.442695
      %v4642 = vpow.pop %v4641
      %v4643 = vmul.f32 %v4632, 1.442695
      %v4644 = vpow.pop %v4643
      %v4645 = vmul.f32 %v4633, 1.442695
      %v4646 = vpow.pop %v4645
      %v4647 = vmul.f32 %v4634, 1.442695
      %v4648 = vpow.pop %v4647
      %v4649 = vmul.f32 %v4635, 1.442695
      %v4650 = vpow.pop %v4649
      %v4651 = vmul.f32 %v4636, 1.442695
      %v4652 = vpow.pop %v4651
      %v4653 = vadd.f32 %v4638, 1.0
      %v4654 = vadd.f32 %v4640, 1.0
      %v4655 = vadd.f32 %v4642, 1.0
      %v4656 = vadd.f32 %v4644, 1.0
      %v4657 = vadd.f32 %v4646, 1.0
      %v4658 = vadd.f32 %v4648, 1.0
      %v4659 = vadd.f32 %v4650, 1.0
      %v4660 = vadd.f32 %v4652, 1.0
      %v4661 = vrcp.pop %v4653
      %v4662 = vmul.f32 1.0, %v4661
      %v4663 = vrcp.pop %v4654
      %v4664 = vmul.f32 1.0, %v4663
      %v4665 = vrcp.pop %v4655
      %v4666 = vmul.f32 1.0, %v4665
      %v4667 = vrcp.pop %v4656
      %v4668 = vmul.f32 1.0, %v4667
      %v4669 = vrcp.pop %v4657
      %v4670 = vmul.f32 1.0, %v4669
      %v4671 = vrcp.pop %v4658
      %v4672 = vmul.f32 1.0, %v4671
      %v4673 = vrcp.pop %v4659
      %v4674 = vmul.f32 1.0, %v4673
      %v4675 = vrcp.pop %v4660
      %v4676 = vmul.f32 1.0, %v4675
      %v4677 = vmul.f32 %v4621, %v4662
      %v4678 = vmul.f32 %v4622, %v4664
      %v4679 = vmul.f32 %v4623, %v4666
      %v4680 = vmul.f32 %v4624, %v4668
      %v4681 = vmul.f32 %v4625, %v4670
      %v4682 = vmul.f32 %v4626, %v4672
      %v4683 = vmul.f32 %v4627, %v4674
      %v4684 = vmul.f32 %v4628, %v4676
      %v4685 = vld [vmem:[%s3 + $0x94] sm:$0xf]
      %v4686 = vld [vmem:[%s3 + $0x98] sm:$0xf]
      %v4687 = vld [vmem:[%s3 + $0x9c] sm:$0xf]
      %v4688 = vpack.c.bf16 %v4678, %v4677
      %v4689 = vpack.c.bf16 %v4680, %v4679
      %v4690 = vpack.c.bf16 %v4682, %v4681
      %v4691 = vpack.c.bf16 %v4684, %v4683
      %v4692 = vlaneseq
      %v4693 = vshrl.u32 %v4692, 7
      %v4694 = vsub.s32 7, %v4693
      %v4695 = vrot.slane %v247, %v4694
      %v4699 = vunpack.c.l.b16 %v4685
      %v4700 = vunpack.c.l.b16 %v4686
      %v4701 = vunpack.c.l.b16 %v4687
      %v4702 = vpack.c.b16 %v4700, %v4699
      %v4703 = vpack.c.b16 %v4701, %v4701
      %v4706 = vsel %vm601, %v4688, 0
      %v4709 = vsel %vm601, %v4689, 0
      %v4712 = vsel %vm601, %v4690, 0
      %v4715 = vsel %vm601, %v4691, 0
      %v4718 = vsel %vm4032, %v4703, 0
      %4720 = vmatprep.subr.bf16.mxu0 0
      %4721 = vmatpush1.bf16.msra.mxu0 0
      %4722 = vmatprep.subr.bf16.mxu0 0
      %4723 = vmatpush1.bf16.msra.mxu0 0
      %4724 = vmatprep.subr.bf16.mxu0 0
      %4725 = vmatpush1.bf16.msra.mxu0 0
      %4726 = vmatprep.subr.bf16.mxu0 0
      %4727 = vmatpush1.bf16.msra.mxu0 0
      %4728 = vmatprep.subr.bf16.mxu0 0
      %4729 = vmatpush1.bf16.msra.mxu0 0
      %4730 = vmatprep.subr.bf16.mxu0 0
      %4731 = vmatpush1.bf16.msra.mxu0 0
      %4732 = vmatprep.subr.bf16.mxu0 0
      %4733 = vmatpush1.bf16.msra.mxu0 %v4718
      %4734 = vmatprep.subr.bf16.mxu0 0
      %4735 = vmatpush1.bf16.msra.mxu0 %v4702
      %4736 = vmatprep.subr.bf16.mxu0 0
      %4737 = vmatpush2.bf16.msra.mxu0 0
      %4738 = vmatprep.subr.bf16.mxu0 0
      %4739 = vmatpush2.bf16.msra.mxu0 0
      %4740 = vmatprep.subr.bf16.mxu0 0
      %4741 = vmatpush2.bf16.msra.mxu0 0
      %4742 = vmatprep.subr.bf16.mxu0 0
      %4743 = vmatpush2.bf16.msra.mxu0 0
      %4744 = vmatprep.subr.bf16.mxu0 0
      %4745 = vmatpush2.bf16.msra.mxu0 0
      %4746 = vmatprep.subr.bf16.mxu0 0
      %4747 = vmatpush2.bf16.msra.mxu0 0
      %4748 = vmatprep.subr.bf16.mxu0 0
      %4749 = vmatpush2.bf16.msra.mxu0 0
      %4750 = vmatprep.subr.bf16.mxu0 0
      %4751 = vmatpush2.bf16.msra.mxu0 0
      %4752 = vmatprep.mubr.bf16.mxu0 0
      %4753 = vmatmul.mubr.bf16.gmra.mxu0 %v4706
      %v4754 = vpop.f32.mrf.mxu0
      %v4755 = vadd.f32 %v4695, %v4754
      %v4756 = vpop.f32.mrf.mxu0
      %v4757 = vpop.f32.mrf.mxu0
      %v4758 = vadd.f32 %v4695, %v4757
      %v4759 = vpop.f32.mrf.mxu0
      %4760 = vmatprep.mubr.bf16.mxu0 0
      %4761 = vmatmul.mubr.bf16.gmra.mxu0 %v4709
      %v4762 = vpop.f32.mrf.mxu0
      %v4763 = vadd.f32 %v4695, %v4762
      %v4764 = vpop.f32.mrf.mxu0
      %v4765 = vpop.f32.mrf.mxu0
      %v4766 = vadd.f32 %v4695, %v4765
      %v4767 = vpop.f32.mrf.mxu0
      %4768 = vmatprep.mubr.bf16.mxu0 0
      %4769 = vmatmul.mubr.bf16.gmra.mxu0 %v4712
      %v4770 = vpop.f32.mrf.mxu0
      %v4771 = vadd.f32 %v4695, %v4770
      %v4772 = vpop.f32.mrf.mxu0
      %v4773 = vpop.f32.mrf.mxu0
      %v4774 = vadd.f32 %v4695, %v4773
      %v4775 = vpop.f32.mrf.mxu0
      %4776 = vmatprep.mubr.bf16.mxu0 0
      %4777 = vmatmul.mubr.bf16.gmra.mxu0 %v4715
      %v4778 = vpop.f32.mrf.mxu0
      %v4779 = vadd.f32 %v4695, %v4778
      %v4780 = vpop.f32.mrf.mxu0
      %v4781 = vpop.f32.mrf.mxu0
      %v4782 = vadd.f32 %v4695, %v4781
      %v4783 = vpop.f32.mrf.mxu0
      %4784 = vdwg.mxu0
      %4785 = vst [vmem:[%s217] sm:$0xff] %v4755
      %4786 = vst [vmem:[%s217 + $0x8] sm:$0xff] %v4758
      %4787 = vst [vmem:[%s217 + $0x10] sm:$0xff] %v4763
      %4788 = vst [vmem:[%s217 + $0x18] sm:$0xff] %v4766
      %4789 = vst [vmem:[%s217 + $0x20] sm:$0xff] %v4771
      %4790 = vst [vmem:[%s217 + $0x28] sm:$0xff] %v4774
      %4791 = vst [vmem:[%s217 + $0x30] sm:$0xff] %v4779
      %4792 = vst [vmem:[%s217 + $0x38] sm:$0xff] %v4782
      %p4793 = scmp.lt.s32.totalorder %s15, 7
      %s4794 = scalar_select %p4793, %s15, 7
      %s4795 = smul.addr %s4794, 8
      %s4796 = smul.addr %s4795, 8
      %s4797 = scalar_lea.vmem %s4, %s4796
      // Predicated region
      $region37: #{improved_gnn_forward.1} parent=35 // pred_check
        %p4798 = pneg %p127
      $region38: #{improved_gnn_forward.1} parent=35 // pred_check_branch
        %4800 = sbr.rel (%p4798) target = $region40
      $region39: #{improved_gnn_forward.1} parent=35 // pred_region
        _
      $region40: #{improved_gnn_forward.1} parent=35 // pred_fallthru
        _
    $region36: #{improved_gnn_forward.1} parent=5 // pred_fallthru
      _
    %p4801 = scmp.le.s32.totalorder 2, %s10
    // Predicated region
    $region41: #{improved_gnn_forward.1} parent=5 // pred_check
      %p4802 = pneg %p4801
    $region42: #{improved_gnn_forward.1} parent=5 // pred_check_branch
      %4804 = sbr.rel (%p4802) target = $region44
    $region43: #{improved_gnn_forward.1} parent=5 // pred_region
      %s4805 = ssub.s32 %s10, 2
      // Predicated region
      $region45: #{improved_gnn_forward.1} parent=43 // pred_check
        %p4806 = pneg %p133
      $region46: #{improved_gnn_forward.1} parent=43 // pred_check_branch
        %4808 = sbr.rel (%p4806) target = $region48
      $region47: #{improved_gnn_forward.1} parent=43 // pred_region
        %p4809 = scmp.lt.s32.totalorder %s16, 7
        %s4810 = scalar_select %p4809, %s16, 7
        %s4811 = smul.addr %s4810, 8
        %s4812 = smul.addr %s4811, 8
        %s4813 = scalar_lea.vmem %s4, %s4812
      $region48: #{improved_gnn_forward.1} parent=43 // pred_fallthru
        _
    $region44: #{improved_gnn_forward.1} parent=5 // pred_fallthru
      _
  $region6: #{improved_gnn_forward.1} parent=0 // loop_footer
    %s14 = sadd.s32 1, %s10
  $region7: #{improved_gnn_forward.1} parent=0 // loop_footer_branch
    %9 = sbr.rel target = $region3
  $region8: #{improved_gnn_forward.1} parent=0 // loop_exit
    _

</llo_original>
